<compile_context>
chip_gen: v6e
topology: v6e:2x2x1
jax: 0.10.0
libtpu: 0.0.40
codegen_flags: <defaults>
</compile_context>

<pallas_src>
import functools

import jax
import jax.numpy as jnp
from jax.experimental import pallas as pl
from jax.experimental.pallas import tpu as pltpu

LANE = 128


def _round_up(n, m):
    return ((n + m - 1) // m) * m


def _pad2(a, rows, cols):
    return jnp.pad(a, ((0, rows - a.shape[0]), (0, cols - a.shape[1])))


def _make_encoder_kernel(bf16_activations):
    act_dtype = jnp.bfloat16 if bf16_activations else jnp.float32

    def encoder_kernel(x_ref,
                       w1_ref, b1_ref,
                       w2_ref, b2_ref,
                       w3_ref, b3_ref,
                       w6_ref, b6_ref,
                       o_ref):
        # x_ref / w*_ref are bf16 (native MXU path); biases and output are f32.
        # MXU accumulation is f32 via preferred_element_type.
        def layer(h_bf16, w_ref, b_ref):
            y = jnp.dot(h_bf16, w_ref[...],
                        preferred_element_type=jnp.float32) + b_ref[...]
            h = jnp.tanh(y.astype(act_dtype))
            return h.astype(jnp.bfloat16)

        h = layer(x_ref[...], w1_ref, b1_ref)
        h = layer(h, w2_ref, b2_ref)
        h = layer(h, w3_ref, b3_ref)
        out = jnp.dot(h, w6_ref[...],
                      preferred_element_type=jnp.float32) + b6_ref[...]
        o_ref[...] = out  # already f32 (torch .float())

    return encoder_kernel


def prepare_params(params):
    """One-time: pad weights/biases to lane multiples and cast weights to bf16.

    params: dict with w* of shape [in, out] (f32), b* of shape [1, out] (f32).
    Returns a dict of device arrays ready for encoder_forward.
    """
    D_in, H = params["w1"].shape
    L = params["w6"].shape[1]
    Dp = _round_up(D_in, LANE)   # 276 -> 384
    Hp = _round_up(H, LANE)      # 500 -> 512
    Lp = _round_up(L, LANE)      # 2   -> 128 (lane-dense output stores)

    prepped = {
        "w1": _pad2(params["w1"], Dp, Hp).astype(jnp.bfloat16),
        "w2": _pad2(params["w2"], Hp, Hp).astype(jnp.bfloat16),
        "w3": _pad2(params["w3"], Hp, Hp).astype(jnp.bfloat16),
        "w6": _pad2(params["w6"], Hp, Lp).astype(jnp.bfloat16),
        "b1": _pad2(params["b1"], 1, Hp).astype(jnp.float32),
        "b2": _pad2(params["b2"], 1, Hp).astype(jnp.float32),
        "b3": _pad2(params["b3"], 1, Hp).astype(jnp.float32),
        "b6": _pad2(params["b6"], 1, Lp).astype(jnp.float32),
        # Real (unpadded) input / latent sizes, needed for the output slice.
        "dims": jnp.array([D_in, L], jnp.int32),
    }
    return prepped, (D_in, L)


@functools.partial(jax.jit,
                   static_argnames=("real_dims", "batch_tile",
                                    "bf16_activations"))
def encoder_forward(x, prepped, *, real_dims, batch_tile=256,
                    bf16_activations=False):
    """x: [B, input_dim] float32. prepped: output of prepare_params."""
    B, D_in = x.shape
    D_real, L_real = real_dims
    assert D_in == D_real

    Dp, Hp = prepped["w1"].shape
    Lp = prepped["w6"].shape[1]

    # bf16 tiles need (16, 128) minimum sublane/lane tiling -> tile % 16 == 0.
    tile = min(batch_tile, _round_up(B, 16))
    assert tile % 16 == 0, "batch tile must be a multiple of 16 (bf16 sublanes)"
    Bp = _round_up(B, tile)
    grid = (Bp // tile,)

    xp = _pad2(x, Bp, Dp).astype(jnp.bfloat16)

    # Weights/biases loaded as full blocks (constant block index across the
    # grid -> VMEM-resident). Total bf16 weight footprint ~1.3 MiB, far below
    # the scoped VMEM limit even double-buffered on v7x (32 MiB default).
    def full(shape):
        return pl.BlockSpec(shape, lambda i: (0,) * len(shape))

    in_specs = [
        pl.BlockSpec((tile, Dp), lambda i: (i, 0)),   # x
        full((Dp, Hp)), full((1, Hp)),                # fc1
        full((Hp, Hp)), full((1, Hp)),                # fc2
        full((Hp, Hp)), full((1, Hp)),                # fc3
        full((Hp, Lp)), full((1, Lp)),                # fc6
    ]
    out_spec = pl.BlockSpec((tile, Lp), lambda i: (i, 0))

    flops = 2 * Bp * (Dp * Hp + 2 * Hp * Hp + Hp * Lp)
    bytes_accessed = (
        xp.size * 2
        + sum(int(prepped[k].size) * 2 for k in ("w1", "w2", "w3", "w6"))
        + sum(int(prepped[k].size) * 4 for k in ("b1", "b2", "b3", "b6"))
        + Bp * Lp * 4)

    out_padded = pl.pallas_call(
        _make_encoder_kernel(bf16_activations),
        out_shape=jax.ShapeDtypeStruct((Bp, Lp), jnp.float32),
        grid_spec=pltpu.PrefetchScalarGridSpec(
            num_scalar_prefetch=0,
            grid=grid,
            in_specs=in_specs,
            out_specs=out_spec,
        ),
        compiler_params=pltpu.CompilerParams(
            # Batch axis is independent; with >= 2 tiles (B >= 2*tile) it can
            # be sharded across both TensorCores on v7x. Single-tile grids on
            # v5e/v6e are unaffected.
            dimension_semantics=("parallel",)),
        cost_estimate=pl.CostEstimate(
            flops=flops,
            transcendentals=3 * Bp * Hp,
            bytes_accessed=bytes_accessed),
    )(xp, prepped["w1"], prepped["b1"],
      prepped["w2"], prepped["b2"],
      prepped["w3"], prepped["b3"],
      prepped["w6"], prepped["b6"])

    # Drop batch / latent padding.
    return out_padded[:B, :L_real]


def init_params(key, input_dim, hidden, latent_dim):
    """Deterministic synthetic parameters (shapes match the nn.Linear layers)."""
    ks = jax.random.split(key, 8)
    scale = 0.05
    return {
        "w1": scale * jax.random.normal(ks[0], (input_dim, hidden), jnp.float32),
        "b1": scale * jax.random.normal(ks[1], (1, hidden), jnp.float32),
        "w2": scale * jax.random.normal(ks[2], (hidden, hidden), jnp.float32),
        "b2": scale * jax.random.normal(ks[3], (1, hidden), jnp.float32),
        "w3": scale * jax.random.normal(ks[4], (hidden, hidden), jnp.float32),
        "b3": scale * jax.random.normal(ks[5], (1, hidden), jnp.float32),
        "w6": scale * jax.random.normal(ks[6], (hidden, latent_dim), jnp.float32),
        "b6": scale * jax.random.normal(ks[7], (1, latent_dim), jnp.float32),
    }


def encoder_ref_f32(x, p):
    """Pure-f32 JAX reference (original torch numerics)."""
    h = jnp.tanh(x @ p["w1"] + p["b1"])
    h = jnp.tanh(h @ p["w2"] + p["b2"])
    h = jnp.tanh(h @ p["w3"] + p["b3"])
    return (h @ p["w6"] + p["b6"]).astype(jnp.float32)


def encoder_ref_matched(x, p, *, bf16_activations):
    """Reference mirroring the kernel's bf16-operand / f32-accumulate math."""
    act_dtype = jnp.bfloat16 if bf16_activations else jnp.float32
    bf = lambda a: a.astype(jnp.bfloat16)
    h = x
    for wk, bk in (("w1", "b1"), ("w2", "b2"), ("w3", "b3")):
        y = jnp.dot(bf(h), bf(p[wk]), preferred_element_type=jnp.float32) + p[bk]
        h = jnp.tanh(y.astype(act_dtype))
    out = jnp.dot(bf(h), bf(p["w6"]), preferred_element_type=jnp.float32) + p["b6"]
    return out.astype(jnp.float32)


def _default_bf16_activations():
    """Use bf16 tanh only on generations with a bf16 VPU/EUP datapath."""
    try:
        kind = jax.devices()[0].device_kind.lower()
    except Exception:
        return False
    return ("v6" in kind) or ("v7" in kind)


if __name__ == "__main__":
    # Module-implied feature dims: input_dim = 3 * 92 = 276, hidden = 500,
    # latent_dim = 2. Small batch for the smoke test; tile clamps to 64 so
    # the grid is a single step on every generation.
    batch = 64
    input_dim = 276
    hidden = 500
    latent_dim = 2

    key = jax.random.PRNGKey(0)
    kx, kp = jax.random.split(key)
    x = jax.random.normal(kx, (batch, input_dim), jnp.float32)
    params = init_params(kp, input_dim, hidden, latent_dim)

    # One-time parameter prep (pad + bf16 cast), hoisted out of the hot path.
    prepped, real_dims = prepare_params(params)
    prepped = jax.tree_util.tree_map(jax.block_until_ready, prepped)

    bf16_act = _default_bf16_activations()

    out = encoder_forward(x, prepped, real_dims=real_dims,
                          batch_tile=256, bf16_activations=bf16_act)
    out = jax.block_until_ready(out)

    assert out.shape == (batch, latent_dim)
    assert out.dtype == jnp.float32

    # Tight check vs a reference using the same bf16 rounding points.
    ref_match = encoder_ref_matched(x, params, bf16_activations=bf16_act)
    tol = 2e-2 if bf16_act else 5e-3
    assert jnp.allclose(out, ref_match, atol=tol, rtol=tol), \
        "mismatch vs bf16-matched reference"

    # Loose check vs the exact f32 torch-equivalent math (bf16 operand rounding
    # introduces small deviations; accumulation is still f32).
    ref_f32 = encoder_ref_f32(x, params)
    assert jnp.allclose(out, ref_f32, atol=1e-1, rtol=1e-2), \
        "mismatch vs f32 reference"

    print("KERNEL_OK")
</pallas_src>

<mosaic_0001>
module attributes {stable_mosaic.version = 11 : i64} {
  func.func @encoder_kernel(%arg0: i32, %arg1: memref<64x384xbf16, #tpu.memory_space<vmem>>, %arg2: memref<384x512xbf16, #tpu.memory_space<vmem>>, %arg3: memref<1x512xf32, #tpu.memory_space<vmem>>, %arg4: memref<512x512xbf16, #tpu.memory_space<vmem>>, %arg5: memref<1x512xf32, #tpu.memory_space<vmem>>, %arg6: memref<512x512xbf16, #tpu.memory_space<vmem>>, %arg7: memref<1x512xf32, #tpu.memory_space<vmem>>, %arg8: memref<512x128xbf16, #tpu.memory_space<vmem>>, %arg9: memref<1x128xf32, #tpu.memory_space<vmem>>, %arg10: memref<64x128xf32, #tpu.memory_space<vmem>>) attributes {dimension_semantics = [#tpu.dimension_semantics<parallel>], iteration_bounds = array<i64: 1>, scalar_prefetch = 0 : i64, scratch_operands = 0 : i64, tpu.core_type = #tpu.core_type<tc>, window_params = [{transform_indices = @transform_0, window_bounds = array<i64: 64, 384>}, {pipeline_mode = #tpu.pipeline_mode<synchronous>, transform_indices = @transform_1, window_bounds = array<i64: 384, 512>}, {pipeline_mode = #tpu.pipeline_mode<synchronous>, transform_indices = @transform_2, window_bounds = array<i64: 1, 512>}, {pipeline_mode = #tpu.pipeline_mode<synchronous>, transform_indices = @transform_3, window_bounds = array<i64: 512, 512>}, {pipeline_mode = #tpu.pipeline_mode<synchronous>, transform_indices = @transform_4, window_bounds = array<i64: 1, 512>}, {pipeline_mode = #tpu.pipeline_mode<synchronous>, transform_indices = @transform_5, window_bounds = array<i64: 512, 512>}, {pipeline_mode = #tpu.pipeline_mode<synchronous>, transform_indices = @transform_6, window_bounds = array<i64: 1, 512>}, {pipeline_mode = #tpu.pipeline_mode<synchronous>, transform_indices = @transform_7, window_bounds = array<i64: 512, 128>}, {pipeline_mode = #tpu.pipeline_mode<synchronous>, transform_indices = @transform_8, window_bounds = array<i64: 1, 128>}, {transform_indices = @transform_9, window_bounds = array<i64: 64, 128>}]} {
    %c0 = arith.constant 0 : index
    %c0_0 = arith.constant 0 : index
    %0 = vector.load %arg1[%c0, %c0_0] : memref<64x384xbf16, #tpu.memory_space<vmem>>, vector<64x384xbf16>
    %c0_1 = arith.constant 0 : index
    %c0_2 = arith.constant 0 : index
    %1 = vector.load %arg2[%c0_1, %c0_2] : memref<384x512xbf16, #tpu.memory_space<vmem>>, vector<384x512xbf16>
    %cst = arith.constant dense<0.000000e+00> : vector<64x512xf32>
    %2 = tpu.matmul %0, %1, %cst {dimension_numbers = #tpu.dot_dimension_numbers<[1], [0], [0], [1], [0, 0, 1, 1], [], []>} : vector<64x384xbf16>, vector<384x512xbf16>, vector<64x512xf32> -> vector<64x512xf32>
    %c0_3 = arith.constant 0 : index
    %c0_4 = arith.constant 0 : index
    %3 = vector.load %arg3[%c0_3, %c0_4] : memref<1x512xf32, #tpu.memory_space<vmem>>, vector<1x512xf32>
    %4 = vector.broadcast %3 : vector<1x512xf32> to vector<64x512xf32>
    %5 = arith.addf %2, %4 : vector<64x512xf32>
    %6 = math.tanh %5 : vector<64x512xf32>
    %7 = arith.truncf %6 : vector<64x512xf32> to vector<64x512xbf16>
    %c0_5 = arith.constant 0 : index
    %c0_6 = arith.constant 0 : index
    %8 = vector.load %arg4[%c0_5, %c0_6] : memref<512x512xbf16, #tpu.memory_space<vmem>>, vector<512x512xbf16>
    %cst_7 = arith.constant dense<0.000000e+00> : vector<64x512xf32>
    %9 = tpu.matmul %7, %8, %cst_7 {dimension_numbers = #tpu.dot_dimension_numbers<[1], [0], [0], [1], [0, 0, 1, 1], [], []>} : vector<64x512xbf16>, vector<512x512xbf16>, vector<64x512xf32> -> vector<64x512xf32>
    %c0_8 = arith.constant 0 : index
    %c0_9 = arith.constant 0 : index
    %10 = vector.load %arg5[%c0_8, %c0_9] : memref<1x512xf32, #tpu.memory_space<vmem>>, vector<1x512xf32>
    %11 = vector.broadcast %10 : vector<1x512xf32> to vector<64x512xf32>
    %12 = arith.addf %9, %11 : vector<64x512xf32>
    %13 = math.tanh %12 : vector<64x512xf32>
    %14 = arith.truncf %13 : vector<64x512xf32> to vector<64x512xbf16>
    %c0_10 = arith.constant 0 : index
    %c0_11 = arith.constant 0 : index
    %15 = vector.load %arg6[%c0_10, %c0_11] : memref<512x512xbf16, #tpu.memory_space<vmem>>, vector<512x512xbf16>
    %cst_12 = arith.constant dense<0.000000e+00> : vector<64x512xf32>
    %16 = tpu.matmul %14, %15, %cst_12 {dimension_numbers = #tpu.dot_dimension_numbers<[1], [0], [0], [1], [0, 0, 1, 1], [], []>} : vector<64x512xbf16>, vector<512x512xbf16>, vector<64x512xf32> -> vector<64x512xf32>
    %c0_13 = arith.constant 0 : index
    %c0_14 = arith.constant 0 : index
    %17 = vector.load %arg7[%c0_13, %c0_14] : memref<1x512xf32, #tpu.memory_space<vmem>>, vector<1x512xf32>
    %18 = vector.broadcast %17 : vector<1x512xf32> to vector<64x512xf32>
    %19 = arith.addf %16, %18 : vector<64x512xf32>
    %20 = math.tanh %19 : vector<64x512xf32>
    %21 = arith.truncf %20 : vector<64x512xf32> to vector<64x512xbf16>
    %c0_15 = arith.constant 0 : index
    %c0_16 = arith.constant 0 : index
    %22 = vector.load %arg8[%c0_15, %c0_16] : memref<512x128xbf16, #tpu.memory_space<vmem>>, vector<512x128xbf16>
    %cst_17 = arith.constant dense<0.000000e+00> : vector<64x128xf32>
    %23 = tpu.matmul %21, %22, %cst_17 {dimension_numbers = #tpu.dot_dimension_numbers<[1], [0], [0], [1], [0, 0, 1, 1], [], []>} : vector<64x512xbf16>, vector<512x128xbf16>, vector<64x128xf32> -> vector<64x128xf32>
    %c0_18 = arith.constant 0 : index
    %c0_19 = arith.constant 0 : index
    %24 = vector.load %arg9[%c0_18, %c0_19] : memref<1x128xf32, #tpu.memory_space<vmem>>, vector<1x128xf32>
    %25 = vector.broadcast %24 : vector<1x128xf32> to vector<64x128xf32>
    %26 = arith.addf %23, %25 : vector<64x128xf32>
    %c0_20 = arith.constant 0 : index
    %c0_21 = arith.constant 0 : index
    %27 = vector.load %arg10[%c0_20, %c0_21] : memref<64x128xf32, #tpu.memory_space<vmem>>, vector<64x128xf32>
    tpu.vector_store %arg10[%c0_20, %c0_21], %26 {strides = array<i32>} : memref<64x128xf32, #tpu.memory_space<vmem>>, vector<64x128xf32>,
    return
  }
  func.func @transform_0(%arg0: i32) -> (i32, i32) {
    %c0_i32 = arith.constant 0 : i32
    %c0_i32_0 = arith.constant 0 : i32
    return %arg0, %c0_i32 : i32, i32
  }
  func.func @transform_1(%arg0: i32) -> (i32, i32) {
    %c0_i32 = arith.constant 0 : i32
    %c0_i32_0 = arith.constant 0 : i32
    %c0_i32_1 = arith.constant 0 : i32
    return %c0_i32, %c0_i32_0 : i32, i32
  }
  func.func @transform_2(%arg0: i32) -> (i32, i32) {
    %c0_i32 = arith.constant 0 : i32
    %c0_i32_0 = arith.constant 0 : i32
    %c0_i32_1 = arith.constant 0 : i32
    return %c0_i32, %c0_i32_0 : i32, i32
  }
  func.func @transform_3(%arg0: i32) -> (i32, i32) {
    %c0_i32 = arith.constant 0 : i32
    %c0_i32_0 = arith.constant 0 : i32
    %c0_i32_1 = arith.constant 0 : i32
    return %c0_i32, %c0_i32_0 : i32, i32
  }
  func.func @transform_4(%arg0: i32) -> (i32, i32) {
    %c0_i32 = arith.constant 0 : i32
    %c0_i32_0 = arith.constant 0 : i32
    %c0_i32_1 = arith.constant 0 : i32
    return %c0_i32, %c0_i32_0 : i32, i32
  }
  func.func @transform_5(%arg0: i32) -> (i32, i32) {
    %c0_i32 = arith.constant 0 : i32
    %c0_i32_0 = arith.constant 0 : i32
    %c0_i32_1 = arith.constant 0 : i32
    return %c0_i32, %c0_i32_0 : i32, i32
  }
  func.func @transform_6(%arg0: i32) -> (i32, i32) {
    %c0_i32 = arith.constant 0 : i32
    %c0_i32_0 = arith.constant 0 : i32
    %c0_i32_1 = arith.constant 0 : i32
    return %c0_i32, %c0_i32_0 : i32, i32
  }
  func.func @transform_7(%arg0: i32) -> (i32, i32) {
    %c0_i32 = arith.constant 0 : i32
    %c0_i32_0 = arith.constant 0 : i32
    %c0_i32_1 = arith.constant 0 : i32
    return %c0_i32, %c0_i32_0 : i32, i32
  }
  func.func @transform_8(%arg0: i32) -> (i32, i32) {
    %c0_i32 = arith.constant 0 : i32
    %c0_i32_0 = arith.constant 0 : i32
    %c0_i32_1 = arith.constant 0 : i32
    return %c0_i32, %c0_i32_0 : i32, i32
  }
  func.func @transform_9(%arg0: i32) -> (i32, i32) {
    %c0_i32 = arith.constant 0 : i32
    %c0_i32_0 = arith.constant 0 : i32
    return %arg0, %c0_i32 : i32, i32
  }
}

</mosaic_0001>

<llo_original>
// kernel: encoder_forward.1
$region0: #{encoder_forward.1}
  #allocation0 [shape = 'u32[]', space=smem, size = 0x4, offset = 0x4, fixed_abs, tag = 'smem constant byte address 0x4 - core index']
  #allocation1 [shape = 'u32[144,128]{1,0:T(1,128)}', space=vmem, size = 0x12000, scoped, tag = 'internal scratch']
  %s0 = inlined_call_operand.vmem [shape: bf16[64,384], index: 0, kind: input, shape index: {}]
  %s1 = inlined_call_operand.hbm [shape: bf16[384,512], index: 1, kind: input, shape index: {}]
  %s2 = inlined_call_operand.vmem [shape: f32[1,512], index: 2, kind: input, shape index: {}]
  %s3 = inlined_call_operand.hbm [shape: bf16[512,512], index: 3, kind: input, shape index: {}]
  %s4 = inlined_call_operand.vmem [shape: f32[1,512], index: 4, kind: input, shape index: {}]
  %s5 = inlined_call_operand.hbm [shape: bf16[512,512], index: 5, kind: input, shape index: {}]
  %s6 = inlined_call_operand.vmem [shape: f32[1,512], index: 6, kind: input, shape index: {}]
  %s7 = inlined_call_operand.vmem [shape: bf16[512,128], index: 7, kind: input, shape index: {}]
  %s8 = inlined_call_operand.vmem [shape: f32[1,128], index: 8, kind: input, shape index: {}]
  %s9 = inlined_call_operand.vmem [shape: f32[64,128], index: 9, kind: output, shape index: {}]
  %s10 = sld [smem:[#allocation0]]
  $region58: #{encoder_forward.1} parent=0
    _
  %s12 = ssub.s32 1, %s10
  %s13 = scalar_select 0, %s12, %s10
  $region1: #{encoder_forward.1} parent=0
    #allocation2 [shape = 'u8[393216]{0}', space=vmem, size = 0x60000, scoped, tag = 'input window, operand 1, single buffered']
    #allocation3 [shape = 's32[1]{0}', space=sflag, size = 0x4, scoped, tag = 'scoped memory for encoder_forward.1']
    #allocation4 [shape = 'u8[524288]{0}', space=vmem, size = 0x80000, scoped, tag = 'input window, operand 3, single buffered']
    #allocation5 [shape = 's32[1]{0}', space=sflag, size = 0x4, scoped, tag = 'scoped memory for encoder_forward.1']
    #allocation6 [shape = 'u8[524288]{0}', space=vmem, size = 0x80000, scoped, tag = 'input window, operand 5, single buffered']
    %14 = vsyncpa [#allocation3], 0
    %15 = vsyncpa [#allocation5], 0
    // Predicated region
    $region2: #{encoder_forward.1} parent=1 // pred_check
      _
    $region3: #{encoder_forward.1} parent=1 // pred_check_branch
      %17 = sbr.rel (0) target = $region5
    $region4: #{encoder_forward.1} parent=1 // pred_region
      _
    $region5: #{encoder_forward.1} parent=1 // pred_fallthru
      _
    // Predicated region
    $region6: #{encoder_forward.1} parent=1 // pred_check
      _
    $region7: #{encoder_forward.1} parent=1 // pred_check_branch
      %19 = sbr.rel (0) target = $region9
    $region8: #{encoder_forward.1} parent=1 // pred_region
      %s21 = ssub.s32 12288, 12288
      %22 = vsyncadd [#allocation3], %s21
      %s23 = sshll.u32 [#allocation2], 4
      %s24 = int_to_ptr.vmem [resolvable:$true] %s23
      %29 = dma.hbm_to_vmem [thread:$0]  %s1, 12288, %s24, [#allocation3], 256, 256, 16
    $region9: #{encoder_forward.1} parent=1 // pred_fallthru
      _
    // Predicated region
    $region10: #{encoder_forward.1} parent=1 // pred_check
      _
    $region11: #{encoder_forward.1} parent=1 // pred_check_branch
      %31 = sbr.rel (0) target = $region13
    $region12: #{encoder_forward.1} parent=1 // pred_region
      _
    $region13: #{encoder_forward.1} parent=1 // pred_fallthru
      _
    // Predicated region
    $region14: #{encoder_forward.1} parent=1 // pred_check
      _
    $region15: #{encoder_forward.1} parent=1 // pred_check_branch
      %33 = sbr.rel (0) target = $region17
    $region16: #{encoder_forward.1} parent=1 // pred_region
      %s35 = ssub.s32 16384, 16384
      %36 = vsyncadd [#allocation5], %s35
      %s37 = sshll.u32 [#allocation4], 4
      %s38 = int_to_ptr.vmem [resolvable:$true] %s37
      %43 = dma.hbm_to_vmem [thread:$0]  %s3, 16384, %s38, [#allocation5], 256, 256, 16
    $region17: #{encoder_forward.1} parent=1 // pred_fallthru
      _
    // Predicated region
    $region18: #{encoder_forward.1} parent=1 // pred_check
      _
    $region19: #{encoder_forward.1} parent=1 // pred_check_branch
      %45 = sbr.rel (0) target = $region21
    $region20: #{encoder_forward.1} parent=1 // pred_region
      _
    $region21: #{encoder_forward.1} parent=1 // pred_fallthru
      _
    // Predicated region
    $region22: #{encoder_forward.1} parent=1 // pred_check
      _
    $region23: #{encoder_forward.1} parent=1 // pred_check_branch
      %47 = sbr.rel (0) target = $region25
    $region24: #{encoder_forward.1} parent=1 // pred_region
      %s49 = ssub.s32 16384, 16384
      %50 = vsyncadd [#allocation5], %s49
      %s51 = sshll.u32 [#allocation6], 4
      %s52 = int_to_ptr.vmem [resolvable:$true] %s51
      %57 = dma.hbm_to_vmem [thread:$0]  %s5, 16384, %s52, [#allocation5], 256, 256, 16
    $region25: #{encoder_forward.1} parent=1 // pred_fallthru
      _
    // Predicated region
    $region26: #{encoder_forward.1} parent=1 // pred_check
      _
    $region27: #{encoder_forward.1} parent=1 // pred_check_branch
      %59 = sbr.rel (0) target = $region29
    $region28: #{encoder_forward.1} parent=1 // pred_region
      _
    $region29: #{encoder_forward.1} parent=1 // pred_fallthru
      _
    // Predicated region
    $region30: #{encoder_forward.1} parent=1 // pred_check
      _
    $region31: #{encoder_forward.1} parent=1 // pred_check_branch
      %61 = sbr.rel (0) target = $region33
    $region32: #{encoder_forward.1} parent=1 // pred_region
      _
    $region33: #{encoder_forward.1} parent=1 // pred_fallthru
      _
    // Predicated region
    $region34: #{encoder_forward.1} parent=1 // pred_check
      _
    $region35: #{encoder_forward.1} parent=1 // pred_check_branch
      %63 = sbr.rel (0) target = $region37
    $region36: #{encoder_forward.1} parent=1 // pred_region
      _
    $region37: #{encoder_forward.1} parent=1 // pred_fallthru
      _
    // Predicated region
    $region38: #{encoder_forward.1} parent=1 // pred_check
      _
    $region39: #{encoder_forward.1} parent=1 // pred_check_branch
      %65 = sbr.rel (0) target = $region41
    $region40: #{encoder_forward.1} parent=1 // pred_region
      %66 = dma.done [#allocation3], 12288
    $region41: #{encoder_forward.1} parent=1 // pred_fallthru
      _
    // Predicated region
    $region42: #{encoder_forward.1} parent=1 // pred_check
      _
    $region43: #{encoder_forward.1} parent=1 // pred_check_branch
      %68 = sbr.rel (0) target = $region45
    $region44: #{encoder_forward.1} parent=1 // pred_region
      %69 = dma.done [#allocation5], 16384
    $region45: #{encoder_forward.1} parent=1 // pred_fallthru
      _
    // Predicated region
    $region46: #{encoder_forward.1} parent=1 // pred_check
      _
    $region47: #{encoder_forward.1} parent=1 // pred_check_branch
      %71 = sbr.rel (0) target = $region49
    $region48: #{encoder_forward.1} parent=1 // pred_region
      %72 = dma.done [#allocation5], 16384
    $region49: #{encoder_forward.1} parent=1 // pred_fallthru
      _
    %v74 = vld [vmem:[%s0] sm:$0xff]
    %v75 = vld [vmem:[%s0 + $0x8] sm:$0xf]
    %v76 = vld [vmem:[%s0 + $0xc] sm:$0xff]
    %v77 = vld [vmem:[%s0 + $0x14] sm:$0xf]
    %v78 = vld [vmem:[%s0 + $0x18] sm:$0xff]
    %v79 = vld [vmem:[%s0 + $0x20] sm:$0xf]
    %v80 = vld [vmem:[%s0 + $0x24] sm:$0xff]
    %v81 = vld [vmem:[%s0 + $0x2c] sm:$0xf]
    %v82 = vld [vmem:[%s0 + $0x30] sm:$0xff]
    %v83 = vld [vmem:[%s0 + $0x38] sm:$0xf]
    %v84 = vld [vmem:[%s0 + $0x3c] sm:$0xff]
    %v85 = vld [vmem:[%s0 + $0x44] sm:$0xf]
    %v86 = vld [vmem:[%s0 + $0x48] sm:$0xff]
    %v87 = vld [vmem:[%s0 + $0x50] sm:$0xf]
    %v88 = vld [vmem:[%s0 + $0x54] sm:$0xff]
    %v89 = vld [vmem:[%s0 + $0x5c] sm:$0xf]
    %v90 = vld [vmem:[#allocation2] sm:$0xff]
    %v91 = vld [vmem:[#allocation2 + $0x8] sm:$0xff]
    %v92 = vld [vmem:[#allocation2 + $0x10] sm:$0xff]
    %v93 = vld [vmem:[#allocation2 + $0x18] sm:$0xff]
    %v94 = vld [vmem:[#allocation2 + $0x20] sm:$0xff]
    %v95 = vld [vmem:[#allocation2 + $0x28] sm:$0xff]
    %v96 = vld [vmem:[#allocation2 + $0x30] sm:$0xff]
    %v97 = vld [vmem:[#allocation2 + $0x38] sm:$0xff]
    %v98 = vld [vmem:[#allocation2 + $0x40] sm:$0xff]
    %v99 = vld [vmem:[#allocation2 + $0x48] sm:$0xff]
    %v100 = vld [vmem:[#allocation2 + $0x50] sm:$0xff]
    %v101 = vld [vmem:[#allocation2 + $0x58] sm:$0xff]
    %v102 = vld [vmem:[#allocation2 + $0x60] sm:$0xff]
    %v103 = vld [vmem:[#allocation2 + $0x68] sm:$0xff]
    %v104 = vld [vmem:[#allocation2 + $0x70] sm:$0xff]
    %v105 = vld [vmem:[#allocation2 + $0x78] sm:$0xff]
    %v106 = vld [vmem:[#allocation2 + $0x80] sm:$0xff]
    %v107 = vld [vmem:[#allocation2 + $0x88] sm:$0xff]
    %v108 = vld [vmem:[#allocation2 + $0x90] sm:$0xff]
    %v109 = vld [vmem:[#allocation2 + $0x98] sm:$0xff]
    %v110 = vld [vmem:[#allocation2 + $0xa0] sm:$0xff]
    %v111 = vld [vmem:[#allocation2 + $0xa8] sm:$0xff]
    %v112 = vld [vmem:[#allocation2 + $0xb0] sm:$0xff]
    %v113 = vld [vmem:[#allocation2 + $0xb8] sm:$0xff]
    %v114 = vld [vmem:[#allocation2 + $0xc0] sm:$0xff]
    %v115 = vld [vmem:[#allocation2 + $0xc8] sm:$0xff]
    %v116 = vld [vmem:[#allocation2 + $0xd0] sm:$0xff]
    %v117 = vld [vmem:[#allocation2 + $0xd8] sm:$0xff]
    %v118 = vld [vmem:[#allocation2 + $0xe0] sm:$0xff]
    %v119 = vld [vmem:[#allocation2 + $0xe8] sm:$0xff]
    %v120 = vld [vmem:[#allocation2 + $0xf0] sm:$0xff]
    %v121 = vld [vmem:[#allocation2 + $0xf8] sm:$0xff]
    %v122 = vld [vmem:[#allocation2 + $0x100] sm:$0xff]
    %v123 = vld [vmem:[#allocation2 + $0x108] sm:$0xff]
    %v124 = vld [vmem:[#allocation2 + $0x110] sm:$0xff]
    %v125 = vld [vmem:[#allocation2 + $0x118] sm:$0xff]
    %v126 = vld [vmem:[#allocation2 + $0x120] sm:$0xff]
    %v127 = vld [vmem:[#allocation2 + $0x128] sm:$0xff]
    %v128 = vld [vmem:[#allocation2 + $0x130] sm:$0xff]
    %v129 = vld [vmem:[#allocation2 + $0x138] sm:$0xff]
    %v130 = vld [vmem:[#allocation2 + $0x140] sm:$0xff]
    %v131 = vld [vmem:[#allocation2 + $0x148] sm:$0xff]
    %v132 = vld [vmem:[#allocation2 + $0x150] sm:$0xff]
    %v133 = vld [vmem:[#allocation2 + $0x158] sm:$0xff]
    %v134 = vld [vmem:[#allocation2 + $0x160] sm:$0xff]
    %v135 = vld [vmem:[#allocation2 + $0x168] sm:$0xff]
    %v136 = vld [vmem:[#allocation2 + $0x170] sm:$0xff]
    %v137 = vld [vmem:[#allocation2 + $0x178] sm:$0xff]
    %v138 = vld [vmem:[#allocation2 + $0x180] sm:$0xff]
    %v139 = vld [vmem:[#allocation2 + $0x188] sm:$0xff]
    %v140 = vld [vmem:[#allocation2 + $0x190] sm:$0xff]
    %v141 = vld [vmem:[#allocation2 + $0x198] sm:$0xff]
    %v142 = vld [vmem:[#allocation2 + $0x1a0] sm:$0xff]
    %v143 = vld [vmem:[#allocation2 + $0x1a8] sm:$0xff]
    %v144 = vld [vmem:[#allocation2 + $0x1b0] sm:$0xff]
    %v145 = vld [vmem:[#allocation2 + $0x1b8] sm:$0xff]
    %v146 = vld [vmem:[#allocation2 + $0x1c0] sm:$0xff]
    %v147 = vld [vmem:[#allocation2 + $0x1c8] sm:$0xff]
    %v148 = vld [vmem:[#allocation2 + $0x1d0] sm:$0xff]
    %v149 = vld [vmem:[#allocation2 + $0x1d8] sm:$0xff]
    %v150 = vld [vmem:[#allocation2 + $0x1e0] sm:$0xff]
    %v151 = vld [vmem:[#allocation2 + $0x1e8] sm:$0xff]
    %v152 = vld [vmem:[#allocation2 + $0x1f0] sm:$0xff]
    %v153 = vld [vmem:[#allocation2 + $0x1f8] sm:$0xff]
    %v154 = vld [vmem:[#allocation2 + $0x200] sm:$0xff]
    %v155 = vld [vmem:[#allocation2 + $0x208] sm:$0xff]
    %v156 = vld [vmem:[#allocation2 + $0x210] sm:$0xff]
    %v157 = vld [vmem:[#allocation2 + $0x218] sm:$0xff]
    %v158 = vld [vmem:[#allocation2 + $0x220] sm:$0xff]
    %v159 = vld [vmem:[#allocation2 + $0x228] sm:$0xff]
    %v160 = vld [vmem:[#allocation2 + $0x230] sm:$0xff]
    %v161 = vld [vmem:[#allocation2 + $0x238] sm:$0xff]
    %v162 = vld [vmem:[#allocation2 + $0x240] sm:$0xff]
    %v163 = vld [vmem:[#allocation2 + $0x248] sm:$0xff]
    %v164 = vld [vmem:[#allocation2 + $0x250] sm:$0xff]
    %v165 = vld [vmem:[#allocation2 + $0x258] sm:$0xff]
    %v166 = vld [vmem:[#allocation2 + $0x260] sm:$0xff]
    %v167 = vld [vmem:[#allocation2 + $0x268] sm:$0xff]
    %v168 = vld [vmem:[#allocation2 + $0x270] sm:$0xff]
    %v169 = vld [vmem:[#allocation2 + $0x278] sm:$0xff]
    %v170 = vld [vmem:[#allocation2 + $0x280] sm:$0xff]
    %v171 = vld [vmem:[#allocation2 + $0x288] sm:$0xff]
    %v172 = vld [vmem:[#allocation2 + $0x290] sm:$0xff]
    %v173 = vld [vmem:[#allocation2 + $0x298] sm:$0xff]
    %v174 = vld [vmem:[#allocation2 + $0x2a0] sm:$0xff]
    %v175 = vld [vmem:[#allocation2 + $0x2a8] sm:$0xff]
    %v176 = vld [vmem:[#allocation2 + $0x2b0] sm:$0xff]
    %v177 = vld [vmem:[#allocation2 + $0x2b8] sm:$0xff]
    %v178 = vld [vmem:[#allocation2 + $0x2c0] sm:$0xff]
    %v179 = vld [vmem:[#allocation2 + $0x2c8] sm:$0xff]
    %v180 = vld [vmem:[#allocation2 + $0x2d0] sm:$0xff]
    %v181 = vld [vmem:[#allocation2 + $0x2d8] sm:$0xff]
    %v182 = vld [vmem:[#allocation2 + $0x2e0] sm:$0xff]
    %v183 = vld [vmem:[#allocation2 + $0x2e8] sm:$0xff]
    %v184 = vld [vmem:[#allocation2 + $0x2f0] sm:$0xff]
    %v185 = vld [vmem:[#allocation2 + $0x2f8] sm:$0xff]
    %v186 = vld [vmem:[%s2] sm:$0xf]
    %v188 = vlaneseq
    %v189 = vshrl.u32 %v188, 7
    %v190 = vsub.s32 0, %v189
    %v191 = vrot.slane %v186, %v190
    %v192 = vlaneseq
    %v193 = vshrl.u32 %v192, 7
    %v194 = vsub.s32 1, %v193
    %v195 = vrot.slane %v186, %v194
    %v196 = vlaneseq
    %v197 = vshrl.u32 %v196, 7
    %v198 = vsub.s32 2, %v197
    %v199 = vrot.slane %v186, %v198
    %v200 = vlaneseq
    %v201 = vshrl.u32 %v200, 7
    %v202 = vsub.s32 3, %v201
    %v203 = vrot.slane %v186, %v202
    %v224 = vunpack.c.l.b16 %v74
    %v225 = vunpack.c.h.b16 %v74
    %v226 = vunpack.c.l.b16 %v75
    %v227 = vunpack.c.l.b16 %v76
    %v228 = vunpack.c.h.b16 %v76
    %v229 = vunpack.c.l.b16 %v77
    %v230 = vunpack.c.l.b16 %v78
    %v231 = vunpack.c.h.b16 %v78
    %v232 = vunpack.c.l.b16 %v79
    %v233 = vunpack.c.l.b16 %v80
    %v234 = vunpack.c.h.b16 %v80
    %v235 = vunpack.c.l.b16 %v81
    %v236 = vunpack.c.l.b16 %v82
    %v237 = vunpack.c.h.b16 %v82
    %v238 = vunpack.c.l.b16 %v83
    %v239 = vunpack.c.l.b16 %v84
    %v240 = vunpack.c.h.b16 %v84
    %v241 = vunpack.c.l.b16 %v85
    %v242 = vunpack.c.l.b16 %v86
    %v243 = vunpack.c.h.b16 %v86
    %v244 = vunpack.c.l.b16 %v87
    %v245 = vunpack.c.l.b16 %v88
    %v246 = vunpack.c.h.b16 %v88
    %v247 = vunpack.c.l.b16 %v89
    %v248 = vpack.c.b16 %v227, %v224
    %v249 = vpack.c.b16 %v228, %v225
    %v250 = vpack.c.b16 %v229, %v226
    %v251 = vpack.c.b16 %v233, %v230
    %v252 = vpack.c.b16 %v234, %v231
    %v253 = vpack.c.b16 %v235, %v232
    %v254 = vpack.c.b16 %v239, %v236
    %v255 = vpack.c.b16 %v240, %v237
    %v256 = vpack.c.b16 %v241, %v238
    %v257 = vpack.c.b16 %v245, %v242
    %v258 = vpack.c.b16 %v246, %v243
    %v259 = vpack.c.b16 %v247, %v244
    %v368 = vunpack.c.l.b16 %v90
    %v369 = vunpack.c.h.b16 %v90
    %v370 = vunpack.c.l.b16 %v91
    %v371 = vunpack.c.h.b16 %v91
    %v372 = vunpack.c.l.b16 %v92
    %v373 = vunpack.c.h.b16 %v92
    %v374 = vunpack.c.l.b16 %v93
    %v375 = vunpack.c.h.b16 %v93
    %v376 = vunpack.c.l.b16 %v94
    %v377 = vunpack.c.h.b16 %v94
    %v378 = vunpack.c.l.b16 %v95
    %v379 = vunpack.c.h.b16 %v95
    %v380 = vunpack.c.l.b16 %v96
    %v381 = vunpack.c.h.b16 %v96
    %v382 = vunpack.c.l.b16 %v97
    %v383 = vunpack.c.h.b16 %v97
    %v384 = vunpack.c.l.b16 %v98
    %v385 = vunpack.c.h.b16 %v98
    %v386 = vunpack.c.l.b16 %v99
    %v387 = vunpack.c.h.b16 %v99
    %v388 = vunpack.c.l.b16 %v100
    %v389 = vunpack.c.h.b16 %v100
    %v390 = vunpack.c.l.b16 %v101
    %v391 = vunpack.c.h.b16 %v101
    %v392 = vunpack.c.l.b16 %v102
    %v393 = vunpack.c.h.b16 %v102
    %v394 = vunpack.c.l.b16 %v103
    %v395 = vunpack.c.h.b16 %v103
    %v396 = vunpack.c.l.b16 %v104
    %v397 = vunpack.c.h.b16 %v104
    %v398 = vunpack.c.l.b16 %v105
    %v399 = vunpack.c.h.b16 %v105
    %v400 = vunpack.c.l.b16 %v106
    %v401 = vunpack.c.h.b16 %v106
    %v402 = vunpack.c.l.b16 %v107
    %v403 = vunpack.c.h.b16 %v107
    %v404 = vunpack.c.l.b16 %v108
    %v405 = vunpack.c.h.b16 %v108
    %v406 = vunpack.c.l.b16 %v109
    %v407 = vunpack.c.h.b16 %v109
    %v408 = vunpack.c.l.b16 %v110
    %v409 = vunpack.c.h.b16 %v110
    %v410 = vunpack.c.l.b16 %v111
    %v411 = vunpack.c.h.b16 %v111
    %v412 = vunpack.c.l.b16 %v112
    %v413 = vunpack.c.h.b16 %v112
    %v414 = vunpack.c.l.b16 %v113
    %v415 = vunpack.c.h.b16 %v113
    %v416 = vunpack.c.l.b16 %v114
    %v417 = vunpack.c.h.b16 %v114
    %v418 = vunpack.c.l.b16 %v115
    %v419 = vunpack.c.h.b16 %v115
    %v420 = vunpack.c.l.b16 %v116
    %v421 = vunpack.c.h.b16 %v116
    %v422 = vunpack.c.l.b16 %v117
    %v423 = vunpack.c.h.b16 %v117
    %v424 = vunpack.c.l.b16 %v118
    %v425 = vunpack.c.h.b16 %v118
    %v426 = vunpack.c.l.b16 %v119
    %v427 = vunpack.c.h.b16 %v119
    %v428 = vunpack.c.l.b16 %v120
    %v429 = vunpack.c.h.b16 %v120
    %v430 = vunpack.c.l.b16 %v121
    %v431 = vunpack.c.h.b16 %v121
    %v432 = vunpack.c.l.b16 %v122
    %v433 = vunpack.c.h.b16 %v122
    %v434 = vunpack.c.l.b16 %v123
    %v435 = vunpack.c.h.b16 %v123
    %v436 = vunpack.c.l.b16 %v124
    %v437 = vunpack.c.h.b16 %v124
    %v438 = vunpack.c.l.b16 %v125
    %v439 = vunpack.c.h.b16 %v125
    %v440 = vunpack.c.l.b16 %v126
    %v441 = vunpack.c.h.b16 %v126
    %v442 = vunpack.c.l.b16 %v127
    %v443 = vunpack.c.h.b16 %v127
    %v444 = vunpack.c.l.b16 %v128
    %v445 = vunpack.c.h.b16 %v128
    %v446 = vunpack.c.l.b16 %v129
    %v447 = vunpack.c.h.b16 %v129
    %v448 = vunpack.c.l.b16 %v130
    %v449 = vunpack.c.h.b16 %v130
    %v450 = vunpack.c.l.b16 %v131
    %v451 = vunpack.c.h.b16 %v131
    %v452 = vunpack.c.l.b16 %v132
    %v453 = vunpack.c.h.b16 %v132
    %v454 = vunpack.c.l.b16 %v133
    %v455 = vunpack.c.h.b16 %v133
    %v456 = vunpack.c.l.b16 %v134
    %v457 = vunpack.c.h.b16 %v134
    %v458 = vunpack.c.l.b16 %v135
    %v459 = vunpack.c.h.b16 %v135
    %v460 = vunpack.c.l.b16 %v136
    %v461 = vunpack.c.h.b16 %v136
    %v462 = vunpack.c.l.b16 %v137
    %v463 = vunpack.c.h.b16 %v137
    %v464 = vunpack.c.l.b16 %v138
    %v465 = vunpack.c.h.b16 %v138
    %v466 = vunpack.c.l.b16 %v139
    %v467 = vunpack.c.h.b16 %v139
    %v468 = vunpack.c.l.b16 %v140
    %v469 = vunpack.c.h.b16 %v140
    %v470 = vunpack.c.l.b16 %v141
    %v471 = vunpack.c.h.b16 %v141
    %v472 = vunpack.c.l.b16 %v142
    %v473 = vunpack.c.h.b16 %v142
    %v474 = vunpack.c.l.b16 %v143
    %v475 = vunpack.c.h.b16 %v143
    %v476 = vunpack.c.l.b16 %v144
    %v477 = vunpack.c.h.b16 %v144
    %v478 = vunpack.c.l.b16 %v145
    %v479 = vunpack.c.h.b16 %v145
    %v480 = vunpack.c.l.b16 %v146
    %v481 = vunpack.c.h.b16 %v146
    %v482 = vunpack.c.l.b16 %v147
    %v483 = vunpack.c.h.b16 %v147
    %v484 = vunpack.c.l.b16 %v148
    %v485 = vunpack.c.h.b16 %v148
    %v486 = vunpack.c.l.b16 %v149
    %v487 = vunpack.c.h.b16 %v149
    %v488 = vunpack.c.l.b16 %v150
    %v489 = vunpack.c.h.b16 %v150
    %v490 = vunpack.c.l.b16 %v151
    %v491 = vunpack.c.h.b16 %v151
    %v492 = vunpack.c.l.b16 %v152
    %v493 = vunpack.c.h.b16 %v152
    %v494 = vunpack.c.l.b16 %v153
    %v495 = vunpack.c.h.b16 %v153
    %v496 = vunpack.c.l.b16 %v154
    %v497 = vunpack.c.h.b16 %v154
    %v498 = vunpack.c.l.b16 %v155
    %v499 = vunpack.c.h.b16 %v155
    %v500 = vunpack.c.l.b16 %v156
    %v501 = vunpack.c.h.b16 %v156
    %v502 = vunpack.c.l.b16 %v157
    %v503 = vunpack.c.h.b16 %v157
    %v504 = vunpack.c.l.b16 %v158
    %v505 = vunpack.c.h.b16 %v158
    %v506 = vunpack.c.l.b16 %v159
    %v507 = vunpack.c.h.b16 %v159
    %v508 = vunpack.c.l.b16 %v160
    %v509 = vunpack.c.h.b16 %v160
    %v510 = vunpack.c.l.b16 %v161
    %v511 = vunpack.c.h.b16 %v161
    %v512 = vunpack.c.l.b16 %v162
    %v513 = vunpack.c.h.b16 %v162
    %v514 = vunpack.c.l.b16 %v163
    %v515 = vunpack.c.h.b16 %v163
    %v516 = vunpack.c.l.b16 %v164
    %v517 = vunpack.c.h.b16 %v164
    %v518 = vunpack.c.l.b16 %v165
    %v519 = vunpack.c.h.b16 %v165
    %v520 = vunpack.c.l.b16 %v166
    %v521 = vunpack.c.h.b16 %v166
    %v522 = vunpack.c.l.b16 %v167
    %v523 = vunpack.c.h.b16 %v167
    %v524 = vunpack.c.l.b16 %v168
    %v525 = vunpack.c.h.b16 %v168
    %v526 = vunpack.c.l.b16 %v169
    %v527 = vunpack.c.h.b16 %v169
    %v528 = vunpack.c.l.b16 %v170
    %v529 = vunpack.c.h.b16 %v170
    %v530 = vunpack.c.l.b16 %v171
    %v531 = vunpack.c.h.b16 %v171
    %v532 = vunpack.c.l.b16 %v172
    %v533 = vunpack.c.h.b16 %v172
    %v534 = vunpack.c.l.b16 %v173
    %v535 = vunpack.c.h.b16 %v173
    %v536 = vunpack.c.l.b16 %v174
    %v537 = vunpack.c.h.b16 %v174
    %v538 = vunpack.c.l.b16 %v175
    %v539 = vunpack.c.h.b16 %v175
    %v540 = vunpack.c.l.b16 %v176
    %v541 = vunpack.c.h.b16 %v176
    %v542 = vunpack.c.l.b16 %v177
    %v543 = vunpack.c.h.b16 %v177
    %v544 = vunpack.c.l.b16 %v178
    %v545 = vunpack.c.h.b16 %v178
    %v546 = vunpack.c.l.b16 %v179
    %v547 = vunpack.c.h.b16 %v179
    %v548 = vunpack.c.l.b16 %v180
    %v549 = vunpack.c.h.b16 %v180
    %v550 = vunpack.c.l.b16 %v181
    %v551 = vunpack.c.h.b16 %v181
    %v552 = vunpack.c.l.b16 %v182
    %v553 = vunpack.c.h.b16 %v182
    %v554 = vunpack.c.l.b16 %v183
    %v555 = vunpack.c.h.b16 %v183
    %v556 = vunpack.c.l.b16 %v184
    %v557 = vunpack.c.h.b16 %v184
    %v558 = vunpack.c.l.b16 %v185
    %v559 = vunpack.c.h.b16 %v185
    %v560 = vpack.c.b16 %v372, %v368
    %v561 = vpack.c.b16 %v373, %v369
    %v562 = vpack.c.b16 %v374, %v370
    %v563 = vpack.c.b16 %v375, %v371
    %v564 = vpack.c.b16 %v380, %v376
    %v565 = vpack.c.b16 %v381, %v377
    %v566 = vpack.c.b16 %v382, %v378
    %v567 = vpack.c.b16 %v383, %v379
    %v568 = vpack.c.b16 %v388, %v384
    %v569 = vpack.c.b16 %v389, %v385
    %v570 = vpack.c.b16 %v390, %v386
    %v571 = vpack.c.b16 %v391, %v387
    %v572 = vpack.c.b16 %v396, %v392
    %v573 = vpack.c.b16 %v397, %v393
    %v574 = vpack.c.b16 %v398, %v394
    %v575 = vpack.c.b16 %v399, %v395
    %v576 = vpack.c.b16 %v404, %v400
    %v577 = vpack.c.b16 %v405, %v401
    %v578 = vpack.c.b16 %v406, %v402
    %v579 = vpack.c.b16 %v407, %v403
    %v580 = vpack.c.b16 %v412, %v408
    %v581 = vpack.c.b16 %v413, %v409
    %v582 = vpack.c.b16 %v414, %v410
    %v583 = vpack.c.b16 %v415, %v411
    %v584 = vpack.c.b16 %v420, %v416
    %v585 = vpack.c.b16 %v421, %v417
    %v586 = vpack.c.b16 %v422, %v418
    %v587 = vpack.c.b16 %v423, %v419
    %v588 = vpack.c.b16 %v428, %v424
    %v589 = vpack.c.b16 %v429, %v425
    %v590 = vpack.c.b16 %v430, %v426
    %v591 = vpack.c.b16 %v431, %v427
    %v592 = vpack.c.b16 %v436, %v432
    %v593 = vpack.c.b16 %v437, %v433
    %v594 = vpack.c.b16 %v438, %v434
    %v595 = vpack.c.b16 %v439, %v435
    %v596 = vpack.c.b16 %v444, %v440
    %v597 = vpack.c.b16 %v445, %v441
    %v598 = vpack.c.b16 %v446, %v442
    %v599 = vpack.c.b16 %v447, %v443
    %v600 = vpack.c.b16 %v452, %v448
    %v601 = vpack.c.b16 %v453, %v449
    %v602 = vpack.c.b16 %v454, %v450
    %v603 = vpack.c.b16 %v455, %v451
    %v604 = vpack.c.b16 %v460, %v456
    %v605 = vpack.c.b16 %v461, %v457
    %v606 = vpack.c.b16 %v462, %v458
    %v607 = vpack.c.b16 %v463, %v459
    %v608 = vpack.c.b16 %v468, %v464
    %v609 = vpack.c.b16 %v469, %v465
    %v610 = vpack.c.b16 %v470, %v466
    %v611 = vpack.c.b16 %v471, %v467
    %v612 = vpack.c.b16 %v476, %v472
    %v613 = vpack.c.b16 %v477, %v473
    %v614 = vpack.c.b16 %v478, %v474
    %v615 = vpack.c.b16 %v479, %v475
    %v616 = vpack.c.b16 %v484, %v480
    %v617 = vpack.c.b16 %v485, %v481
    %v618 = vpack.c.b16 %v486, %v482
    %v619 = vpack.c.b16 %v487, %v483
    %v620 = vpack.c.b16 %v492, %v488
    %v621 = vpack.c.b16 %v493, %v489
    %v622 = vpack.c.b16 %v494, %v490
    %v623 = vpack.c.b16 %v495, %v491
    %v624 = vpack.c.b16 %v500, %v496
    %v625 = vpack.c.b16 %v501, %v497
    %v626 = vpack.c.b16 %v502, %v498
    %v627 = vpack.c.b16 %v503, %v499
    %v628 = vpack.c.b16 %v508, %v504
    %v629 = vpack.c.b16 %v509, %v505
    %v630 = vpack.c.b16 %v510, %v506
    %v631 = vpack.c.b16 %v511, %v507
    %v632 = vpack.c.b16 %v516, %v512
    %v633 = vpack.c.b16 %v517, %v513
    %v634 = vpack.c.b16 %v518, %v514
    %v635 = vpack.c.b16 %v519, %v515
    %v636 = vpack.c.b16 %v524, %v520
    %v637 = vpack.c.b16 %v525, %v521
    %v638 = vpack.c.b16 %v526, %v522
    %v639 = vpack.c.b16 %v527, %v523
    %v640 = vpack.c.b16 %v532, %v528
    %v641 = vpack.c.b16 %v533, %v529
    %v642 = vpack.c.b16 %v534, %v530
    %v643 = vpack.c.b16 %v535, %v531
    %v644 = vpack.c.b16 %v540, %v536
    %v645 = vpack.c.b16 %v541, %v537
    %v646 = vpack.c.b16 %v542, %v538
    %v647 = vpack.c.b16 %v543, %v539
    %v648 = vpack.c.b16 %v548, %v544
    %v649 = vpack.c.b16 %v549, %v545
    %v650 = vpack.c.b16 %v550, %v546
    %v651 = vpack.c.b16 %v551, %v547
    %v652 = vpack.c.b16 %v556, %v552
    %v653 = vpack.c.b16 %v557, %v553
    %v654 = vpack.c.b16 %v558, %v554
    %v655 = vpack.c.b16 %v559, %v555
    %752 = vmatprep.subr.bf16.mxu0 %v589
    %753 = vmatpush1.bf16.msra.mxu0 %v588
    %754 = vmatprep.subr.bf16.mxu0 %v585
    %755 = vmatpush1.bf16.msra.mxu0 %v584
    %756 = vmatprep.subr.bf16.mxu0 %v581
    %757 = vmatpush1.bf16.msra.mxu0 %v580
    %758 = vmatprep.subr.bf16.mxu0 %v577
    %759 = vmatpush1.bf16.msra.mxu0 %v576
    %760 = vmatprep.subr.bf16.mxu0 %v573
    %761 = vmatpush1.bf16.msra.mxu0 %v572
    %762 = vmatprep.subr.bf16.mxu0 %v569
    %763 = vmatpush1.bf16.msra.mxu0 %v568
    %764 = vmatprep.subr.bf16.mxu0 %v565
    %765 = vmatpush1.bf16.msra.mxu0 %v564
    %766 = vmatprep.subr.bf16.mxu0 %v561
    %767 = vmatpush1.bf16.msra.mxu0 %v560
    %768 = vmatprep.subr.bf16.mxu0 %v621
    %769 = vmatpush2.bf16.msra.mxu0 %v620
    %770 = vmatprep.subr.bf16.mxu0 %v617
    %771 = vmatpush2.bf16.msra.mxu0 %v616
    %772 = vmatprep.subr.bf16.mxu0 %v613
    %773 = vmatpush2.bf16.msra.mxu0 %v612
    %774 = vmatprep.subr.bf16.mxu0 %v609
    %775 = vmatpush2.bf16.msra.mxu0 %v608
    %776 = vmatprep.subr.bf16.mxu0 %v605
    %777 = vmatpush2.bf16.msra.mxu0 %v604
    %778 = vmatprep.subr.bf16.mxu0 %v601
    %779 = vmatpush2.bf16.msra.mxu0 %v600
    %780 = vmatprep.subr.bf16.mxu0 %v597
    %781 = vmatpush2.bf16.msra.mxu0 %v596
    %782 = vmatprep.subr.bf16.mxu0 %v593
    %783 = vmatpush2.bf16.msra.mxu0 %v592
    %784 = vmatprep.mubr.bf16.mxu0 %v249
    %785 = vmatmul.mubr.bf16.gmra.mxu0 %v248
    %v786 = vpop.f32.mrf.mxu0
    %v787 = vadd.f32 %v191, %v786
    %v788 = vpop.f32.mrf.mxu0
    %v789 = vadd.f32 %v195, %v788
    %v790 = vpop.f32.mrf.mxu0
    %v791 = vadd.f32 %v191, %v790
    %v792 = vpop.f32.mrf.mxu0
    %v793 = vadd.f32 %v195, %v792
    %794 = vmatprep.mubr.bf16.mxu0 %v252
    %795 = vmatmul.mubr.bf16.gmra.mxu0 %v251
    %v796 = vpop.f32.mrf.mxu0
    %v797 = vadd.f32 %v191, %v796
    %v798 = vpop.f32.mrf.mxu0
    %v799 = vadd.f32 %v195, %v798
    %v800 = vpop.f32.mrf.mxu0
    %v801 = vadd.f32 %v191, %v800
    %v802 = vpop.f32.mrf.mxu0
    %v803 = vadd.f32 %v195, %v802
    %804 = vmatprep.mubr.bf16.mxu0 %v255
    %805 = vmatmul.mubr.bf16.gmra.mxu0 %v254
    %v806 = vpop.f32.mrf.mxu0
    %v807 = vadd.f32 %v191, %v806
    %v808 = vpop.f32.mrf.mxu0
    %v809 = vadd.f32 %v195, %v808
    %v810 = vpop.f32.mrf.mxu0
    %v811 = vadd.f32 %v191, %v810
    %v812 = vpop.f32.mrf.mxu0
    %v813 = vadd.f32 %v195, %v812
    %814 = vmatprep.mubr.bf16.mxu0 %v258
    %815 = vmatmul.mubr.bf16.gmra.mxu0 %v257
    %v816 = vpop.f32.mrf.mxu0
    %v817 = vadd.f32 %v191, %v816
    %v818 = vpop.f32.mrf.mxu0
    %v819 = vadd.f32 %v195, %v818
    %v820 = vpop.f32.mrf.mxu0
    %v821 = vadd.f32 %v191, %v820
    %v822 = vpop.f32.mrf.mxu0
    %v823 = vadd.f32 %v195, %v822
    %824 = vdwg.mxu0
    %825 = vmatprep.subr.bf16.mxu0 %v653
    %826 = vmatpush1.bf16.msra.mxu0 %v652
    %827 = vmatprep.subr.bf16.mxu0 %v649
    %828 = vmatpush1.bf16.msra.mxu0 %v648
    %829 = vmatprep.subr.bf16.mxu0 %v645
    %830 = vmatpush1.bf16.msra.mxu0 %v644
    %831 = vmatprep.subr.bf16.mxu0 %v641
    %832 = vmatpush1.bf16.msra.mxu0 %v640
    %833 = vmatprep.subr.bf16.mxu0 %v637
    %834 = vmatpush1.bf16.msra.mxu0 %v636
    %835 = vmatprep.subr.bf16.mxu0 %v633
    %836 = vmatpush1.bf16.msra.mxu0 %v632
    %837 = vmatprep.subr.bf16.mxu0 %v629
    %838 = vmatpush1.bf16.msra.mxu0 %v628
    %839 = vmatprep.subr.bf16.mxu0 %v625
    %840 = vmatpush1.bf16.msra.mxu0 %v624
    %841 = vmatprep.subr.bf16.mxu0 0
    %842 = vmatpush2.bf16.msra.mxu0 0
    %843 = vmatprep.subr.bf16.mxu0 0
    %844 = vmatpush2.bf16.msra.mxu0 0
    %845 = vmatprep.subr.bf16.mxu0 0
    %846 = vmatpush2.bf16.msra.mxu0 0
    %847 = vmatprep.subr.bf16.mxu0 0
    %848 = vmatpush2.bf16.msra.mxu0 0
    %849 = vmatprep.subr.bf16.mxu0 0
    %850 = vmatpush2.bf16.msra.mxu0 0
    %851 = vmatprep.subr.bf16.mxu0 0
    %852 = vmatpush2.bf16.msra.mxu0 0
    %853 = vmatprep.subr.bf16.mxu0 0
    %854 = vmatpush2.bf16.msra.mxu0 0
    %855 = vmatprep.subr.bf16.mxu0 0
    %856 = vmatpush2.bf16.msra.mxu0 0
    %857 = vmatprep.mubr.bf16.mxu0 0
    %858 = vmatmul.mubr.bf16.gmra.mxu0 %v250
    %v859 = vpop.f32.mrf.mxu0
    %v860 = vadd.f32 %v787, %v859
    %v861 = vpop.f32.mrf.mxu0
    %v862 = vadd.f32 %v789, %v861
    %v863 = vpop.f32.mrf.mxu0
    %v864 = vadd.f32 %v791, %v863
    %v865 = vpop.f32.mrf.mxu0
    %v866 = vadd.f32 %v793, %v865
    %867 = vmatprep.mubr.bf16.mxu0 0
    %868 = vmatmul.mubr.bf16.gmra.mxu0 %v253
    %v869 = vpop.f32.mrf.mxu0
    %v870 = vadd.f32 %v797, %v869
    %v871 = vpop.f32.mrf.mxu0
    %v872 = vadd.f32 %v799, %v871
    %v873 = vpop.f32.mrf.mxu0
    %v874 = vadd.f32 %v801, %v873
    %v875 = vpop.f32.mrf.mxu0
    %v876 = vadd.f32 %v803, %v875
    %877 = vmatprep.mubr.bf16.mxu0 0
    %878 = vmatmul.mubr.bf16.gmra.mxu0 %v256
    %v879 = vpop.f32.mrf.mxu0
    %v880 = vadd.f32 %v807, %v879
    %v881 = vpop.f32.mrf.mxu0
    %v882 = vadd.f32 %v809, %v881
    %v883 = vpop.f32.mrf.mxu0
    %v884 = vadd.f32 %v811, %v883
    %v885 = vpop.f32.mrf.mxu0
    %v886 = vadd.f32 %v813, %v885
    %887 = vmatprep.mubr.bf16.mxu0 0
    %888 = vmatmul.mubr.bf16.gmra.mxu0 %v259
    %v889 = vpop.f32.mrf.mxu0
    %v890 = vadd.f32 %v817, %v889
    %v891 = vpop.f32.mrf.mxu0
    %v892 = vadd.f32 %v819, %v891
    %v893 = vpop.f32.mrf.mxu0
    %v894 = vadd.f32 %v821, %v893
    %v895 = vpop.f32.mrf.mxu0
    %v896 = vadd.f32 %v823, %v895
    %897 = vdwg.mxu0
    %898 = vmatprep.subr.bf16.mxu0 %v591
    %899 = vmatpush1.bf16.msra.mxu0 %v590
    %900 = vmatprep.subr.bf16.mxu0 %v587
    %901 = vmatpush1.bf16.msra.mxu0 %v586
    %902 = vmatprep.subr.bf16.mxu0 %v583
    %903 = vmatpush1.bf16.msra.mxu0 %v582
    %904 = vmatprep.subr.bf16.mxu0 %v579
    %905 = vmatpush1.bf16.msra.mxu0 %v578
    %906 = vmatprep.subr.bf16.mxu0 %v575
    %907 = vmatpush1.bf16.msra.mxu0 %v574
    %908 = vmatprep.subr.bf16.mxu0 %v571
    %909 = vmatpush1.bf16.msra.mxu0 %v570
    %910 = vmatprep.subr.bf16.mxu0 %v567
    %911 = vmatpush1.bf16.msra.mxu0 %v566
    %912 = vmatprep.subr.bf16.mxu0 %v563
    %913 = vmatpush1.bf16.msra.mxu0 %v562
    %914 = vmatprep.subr.bf16.mxu0 %v623
    %915 = vmatpush2.bf16.msra.mxu0 %v622
    %916 = vmatprep.subr.bf16.mxu0 %v619
    %917 = vmatpush2.bf16.msra.mxu0 %v618
    %918 = vmatprep.subr.bf16.mxu0 %v615
    %919 = vmatpush2.bf16.msra.mxu0 %v614
    %920 = vmatprep.subr.bf16.mxu0 %v611
    %921 = vmatpush2.bf16.msra.mxu0 %v610
    %922 = vmatprep.subr.bf16.mxu0 %v607
    %923 = vmatpush2.bf16.msra.mxu0 %v606
    %924 = vmatprep.subr.bf16.mxu0 %v603
    %925 = vmatpush2.bf16.msra.mxu0 %v602
    %926 = vmatprep.subr.bf16.mxu0 %v599
    %927 = vmatpush2.bf16.msra.mxu0 %v598
    %928 = vmatprep.subr.bf16.mxu0 %v595
    %929 = vmatpush2.bf16.msra.mxu0 %v594
    %930 = vmatprep.mubr.bf16.mxu0 %v249
    %931 = vmatmul.mubr.bf16.gmra.mxu0 %v248
    %v932 = vpop.f32.mrf.mxu0
    %v933 = vadd.f32 %v199, %v932
    %v934 = vpop.f32.mrf.mxu0
    %v935 = vadd.f32 %v203, %v934
    %v936 = vpop.f32.mrf.mxu0
    %v937 = vadd.f32 %v199, %v936
    %v938 = vpop.f32.mrf.mxu0
    %v939 = vadd.f32 %v203, %v938
    %940 = vmatprep.mubr.bf16.mxu0 %v252
    %941 = vmatmul.mubr.bf16.gmra.mxu0 %v251
    %v942 = vpop.f32.mrf.mxu0
    %v943 = vadd.f32 %v199, %v942
    %v944 = vpop.f32.mrf.mxu0
    %v945 = vadd.f32 %v203, %v944
    %v946 = vpop.f32.mrf.mxu0
    %v947 = vadd.f32 %v199, %v946
    %v948 = vpop.f32.mrf.mxu0
    %v949 = vadd.f32 %v203, %v948
    %950 = vmatprep.mubr.bf16.mxu0 %v255
    %951 = vmatmul.mubr.bf16.gmra.mxu0 %v254
    %v952 = vpop.f32.mrf.mxu0
    %v953 = vadd.f32 %v199, %v952
    %v954 = vpop.f32.mrf.mxu0
    %v955 = vadd.f32 %v203, %v954
    %v956 = vpop.f32.mrf.mxu0
    %v957 = vadd.f32 %v199, %v956
    %v958 = vpop.f32.mrf.mxu0
    %v959 = vadd.f32 %v203, %v958
    %960 = vmatprep.mubr.bf16.mxu0 %v258
    %961 = vmatmul.mubr.bf16.gmra.mxu0 %v257
    %v962 = vpop.f32.mrf.mxu0
    %v963 = vadd.f32 %v199, %v962
    %v964 = vpop.f32.mrf.mxu0
    %v965 = vadd.f32 %v203, %v964
    %v966 = vpop.f32.mrf.mxu0
    %v967 = vadd.f32 %v199, %v966
    %v968 = vpop.f32.mrf.mxu0
    %v969 = vadd.f32 %v203, %v968
    %970 = vdwg.mxu0
    %971 = vmatprep.subr.bf16.mxu0 %v655
    %972 = vmatpush1.bf16.msra.mxu0 %v654
    %973 = vmatprep.subr.bf16.mxu0 %v651
    %974 = vmatpush1.bf16.msra.mxu0 %v650
    %975 = vmatprep.subr.bf16.mxu0 %v647
    %976 = vmatpush1.bf16.msra.mxu0 %v646
    %977 = vmatprep.subr.bf16.mxu0 %v643
    %978 = vmatpush1.bf16.msra.mxu0 %v642
    %979 = vmatprep.subr.bf16.mxu0 %v639
    %980 = vmatpush1.bf16.msra.mxu0 %v638
    %981 = vmatprep.subr.bf16.mxu0 %v635
    %982 = vmatpush1.bf16.msra.mxu0 %v634
    %983 = vmatprep.subr.bf16.mxu0 %v631
    %984 = vmatpush1.bf16.msra.mxu0 %v630
    %985 = vmatprep.subr.bf16.mxu0 %v627
    %986 = vmatpush1.bf16.msra.mxu0 %v626
    %987 = vmatprep.subr.bf16.mxu0 0
    %988 = vmatpush2.bf16.msra.mxu0 0
    %989 = vmatprep.subr.bf16.mxu0 0
    %990 = vmatpush2.bf16.msra.mxu0 0
    %991 = vmatprep.subr.bf16.mxu0 0
    %992 = vmatpush2.bf16.msra.mxu0 0
    %993 = vmatprep.subr.bf16.mxu0 0
    %994 = vmatpush2.bf16.msra.mxu0 0
    %995 = vmatprep.subr.bf16.mxu0 0
    %996 = vmatpush2.bf16.msra.mxu0 0
    %997 = vmatprep.subr.bf16.mxu0 0
    %998 = vmatpush2.bf16.msra.mxu0 0
    %999 = vmatprep.subr.bf16.mxu0 0
    %1000 = vmatpush2.bf16.msra.mxu0 0
    %1001 = vmatprep.subr.bf16.mxu0 0
    %1002 = vmatpush2.bf16.msra.mxu0 0
    %1003 = vmatprep.mubr.bf16.mxu0 0
    %1004 = vmatmul.mubr.bf16.gmra.mxu0 %v250
    %v1005 = vpop.f32.mrf.mxu0
    %v1006 = vadd.f32 %v933, %v1005
    %v1007 = vpop.f32.mrf.mxu0
    %v1008 = vadd.f32 %v935, %v1007
    %v1009 = vpop.f32.mrf.mxu0
    %v1010 = vadd.f32 %v937, %v1009
    %v1011 = vpop.f32.mrf.mxu0
    %v1012 = vadd.f32 %v939, %v1011
    %1013 = vmatprep.mubr.bf16.mxu0 0
    %1014 = vmatmul.mubr.bf16.gmra.mxu0 %v253
    %v1015 = vpop.f32.mrf.mxu0
    %v1016 = vadd.f32 %v943, %v1015
    %v1017 = vpop.f32.mrf.mxu0
    %v1018 = vadd.f32 %v945, %v1017
    %v1019 = vpop.f32.mrf.mxu0
    %v1020 = vadd.f32 %v947, %v1019
    %v1021 = vpop.f32.mrf.mxu0
    %v1022 = vadd.f32 %v949, %v1021
    %1023 = vmatprep.mubr.bf16.mxu0 0
    %1024 = vmatmul.mubr.bf16.gmra.mxu0 %v256
    %v1025 = vpop.f32.mrf.mxu0
    %v1026 = vadd.f32 %v953, %v1025
    %v1027 = vpop.f32.mrf.mxu0
    %v1028 = vadd.f32 %v955, %v1027
    %v1029 = vpop.f32.mrf.mxu0
    %v1030 = vadd.f32 %v957, %v1029
    %v1031 = vpop.f32.mrf.mxu0
    %v1032 = vadd.f32 %v959, %v1031
    %1033 = vmatprep.mubr.bf16.mxu0 0
    %1034 = vmatmul.mubr.bf16.gmra.mxu0 %v259
    %v1035 = vpop.f32.mrf.mxu0
    %v1036 = vadd.f32 %v963, %v1035
    %v1037 = vpop.f32.mrf.mxu0
    %v1038 = vadd.f32 %v965, %v1037
    %v1039 = vpop.f32.mrf.mxu0
    %v1040 = vadd.f32 %v967, %v1039
    %v1041 = vpop.f32.mrf.mxu0
    %v1042 = vadd.f32 %v969, %v1041
    %1043 = vdwg.mxu0
    %v1044 = vtanh.pop %v860
    %v1045 = vtanh.pop %v862
    %v1046 = vtanh.pop %v1006
    %v1047 = vtanh.pop %v1008
    %v1048 = vtanh.pop %v864
    %v1049 = vtanh.pop %v866
    %v1050 = vtanh.pop %v1010
    %v1051 = vtanh.pop %v1012
    %v1052 = vtanh.pop %v870
    %v1053 = vtanh.pop %v872
    %v1054 = vtanh.pop %v1016
    %v1055 = vtanh.pop %v1018
    %v1056 = vtanh.pop %v874
    %v1057 = vtanh.pop %v876
    %v1058 = vtanh.pop %v1020
    %v1059 = vtanh.pop %v1022
    %v1060 = vtanh.pop %v880
    %v1061 = vtanh.pop %v882
    %v1062 = vtanh.pop %v1026
    %v1063 = vtanh.pop %v1028
    %v1064 = vtanh.pop %v884
    %v1065 = vtanh.pop %v886
    %v1066 = vtanh.pop %v1030
    %v1067 = vtanh.pop %v1032
    %v1068 = vtanh.pop %v890
    %v1069 = vtanh.pop %v892
    %v1070 = vtanh.pop %v1036
    %v1071 = vtanh.pop %v1038
    %v1072 = vtanh.pop %v894
    %v1073 = vtanh.pop %v896
    %v1074 = vtanh.pop %v1040
    %v1075 = vtanh.pop %v1042
    %v1076 = vpack.c.bf16 %v1048, %v1044
    %v1077 = vpack.c.bf16 %v1049, %v1045
    %v1078 = vpack.c.bf16 %v1050, %v1046
    %v1079 = vpack.c.bf16 %v1051, %v1047
    %v1080 = vpack.c.bf16 %v1056, %v1052
    %v1081 = vpack.c.bf16 %v1057, %v1053
    %v1082 = vpack.c.bf16 %v1058, %v1054
    %v1083 = vpack.c.bf16 %v1059, %v1055
    %v1084 = vpack.c.bf16 %v1064, %v1060
    %v1085 = vpack.c.bf16 %v1065, %v1061
    %v1086 = vpack.c.bf16 %v1066, %v1062
    %v1087 = vpack.c.bf16 %v1067, %v1063
    %v1088 = vpack.c.bf16 %v1072, %v1068
    %v1089 = vpack.c.bf16 %v1073, %v1069
    %v1090 = vpack.c.bf16 %v1074, %v1070
    %v1091 = vpack.c.bf16 %v1075, %v1071
    %v1092 = vld [vmem:[#allocation4] sm:$0xff]
    %v1093 = vld [vmem:[#allocation4 + $0x8] sm:$0xff]
    %v1094 = vld [vmem:[#allocation4 + $0x10] sm:$0xff]
    %v1095 = vld [vmem:[#allocation4 + $0x18] sm:$0xff]
    %v1096 = vld [vmem:[#allocation4 + $0x20] sm:$0xff]
    %v1097 = vld [vmem:[#allocation4 + $0x28] sm:$0xff]
    %v1098 = vld [vmem:[#allocation4 + $0x30] sm:$0xff]
    %v1099 = vld [vmem:[#allocation4 + $0x38] sm:$0xff]
    %v1100 = vld [vmem:[#allocation4 + $0x40] sm:$0xff]
    %v1101 = vld [vmem:[#allocation4 + $0x48] sm:$0xff]
    %v1102 = vld [vmem:[#allocation4 + $0x50] sm:$0xff]
    %v1103 = vld [vmem:[#allocation4 + $0x58] sm:$0xff]
    %v1104 = vld [vmem:[#allocation4 + $0x60] sm:$0xff]
    %v1105 = vld [vmem:[#allocation4 + $0x68] sm:$0xff]
    %v1106 = vld [vmem:[#allocation4 + $0x70] sm:$0xff]
    %v1107 = vld [vmem:[#allocation4 + $0x78] sm:$0xff]
    %v1108 = vld [vmem:[#allocation4 + $0x80] sm:$0xff]
    %v1109 = vld [vmem:[#allocation4 + $0x88] sm:$0xff]
    %v1110 = vld [vmem:[#allocation4 + $0x90] sm:$0xff]
    %v1111 = vld [vmem:[#allocation4 + $0x98] sm:$0xff]
    %v1112 = vld [vmem:[#allocation4 + $0xa0] sm:$0xff]
    %v1113 = vld [vmem:[#allocation4 + $0xa8] sm:$0xff]
    %v1114 = vld [vmem:[#allocation4 + $0xb0] sm:$0xff]
    %v1115 = vld [vmem:[#allocation4 + $0xb8] sm:$0xff]
    %v1116 = vld [vmem:[#allocation4 + $0xc0] sm:$0xff]
    %v1117 = vld [vmem:[#allocation4 + $0xc8] sm:$0xff]
    %v1118 = vld [vmem:[#allocation4 + $0xd0] sm:$0xff]
    %v1119 = vld [vmem:[#allocation4 + $0xd8] sm:$0xff]
    %v1120 = vld [vmem:[#allocation4 + $0xe0] sm:$0xff]
    %v1121 = vld [vmem:[#allocation4 + $0xe8] sm:$0xff]
    %v1122 = vld [vmem:[#allocation4 + $0xf0] sm:$0xff]
    %v1123 = vld [vmem:[#allocation4 + $0xf8] sm:$0xff]
    %v1124 = vld [vmem:[#allocation4 + $0x100] sm:$0xff]
    %v1125 = vld [vmem:[#allocation4 + $0x108] sm:$0xff]
    %v1126 = vld [vmem:[#allocation4 + $0x110] sm:$0xff]
    %v1127 = vld [vmem:[#allocation4 + $0x118] sm:$0xff]
    %v1128 = vld [vmem:[#allocation4 + $0x120] sm:$0xff]
    %v1129 = vld [vmem:[#allocation4 + $0x128] sm:$0xff]
    %v1130 = vld [vmem:[#allocation4 + $0x130] sm:$0xff]
    %v1131 = vld [vmem:[#allocation4 + $0x138] sm:$0xff]
    %v1132 = vld [vmem:[#allocation4 + $0x140] sm:$0xff]
    %v1133 = vld [vmem:[#allocation4 + $0x148] sm:$0xff]
    %v1134 = vld [vmem:[#allocation4 + $0x150] sm:$0xff]
    %v1135 = vld [vmem:[#allocation4 + $0x158] sm:$0xff]
    %v1136 = vld [vmem:[#allocation4 + $0x160] sm:$0xff]
    %v1137 = vld [vmem:[#allocation4 + $0x168] sm:$0xff]
    %v1138 = vld [vmem:[#allocation4 + $0x170] sm:$0xff]
    %v1139 = vld [vmem:[#allocation4 + $0x178] sm:$0xff]
    %v1140 = vld [vmem:[#allocation4 + $0x180] sm:$0xff]
    %v1141 = vld [vmem:[#allocation4 + $0x188] sm:$0xff]
    %v1142 = vld [vmem:[#allocation4 + $0x190] sm:$0xff]
    %v1143 = vld [vmem:[#allocation4 + $0x198] sm:$0xff]
    %v1144 = vld [vmem:[#allocation4 + $0x1a0] sm:$0xff]
    %v1145 = vld [vmem:[#allocation4 + $0x1a8] sm:$0xff]
    %v1146 = vld [vmem:[#allocation4 + $0x1b0] sm:$0xff]
    %v1147 = vld [vmem:[#allocation4 + $0x1b8] sm:$0xff]
    %v1148 = vld [vmem:[#allocation4 + $0x1c0] sm:$0xff]
    %v1149 = vld [vmem:[#allocation4 + $0x1c8] sm:$0xff]
    %v1150 = vld [vmem:[#allocation4 + $0x1d0] sm:$0xff]
    %v1151 = vld [vmem:[#allocation4 + $0x1d8] sm:$0xff]
    %v1152 = vld [vmem:[#allocation4 + $0x1e0] sm:$0xff]
    %v1153 = vld [vmem:[#allocation4 + $0x1e8] sm:$0xff]
    %v1154 = vld [vmem:[#allocation4 + $0x1f0] sm:$0xff]
    %v1155 = vld [vmem:[#allocation4 + $0x1f8] sm:$0xff]
    %v1156 = vld [vmem:[#allocation4 + $0x200] sm:$0xff]
    %v1157 = vld [vmem:[#allocation4 + $0x208] sm:$0xff]
    %v1158 = vld [vmem:[#allocation4 + $0x210] sm:$0xff]
    %v1159 = vld [vmem:[#allocation4 + $0x218] sm:$0xff]
    %v1160 = vld [vmem:[#allocation4 + $0x220] sm:$0xff]
    %v1161 = vld [vmem:[#allocation4 + $0x228] sm:$0xff]
    %v1162 = vld [vmem:[#allocation4 + $0x230] sm:$0xff]
    %v1163 = vld [vmem:[#allocation4 + $0x238] sm:$0xff]
    %v1164 = vld [vmem:[#allocation4 + $0x240] sm:$0xff]
    %v1165 = vld [vmem:[#allocation4 + $0x248] sm:$0xff]
    %v1166 = vld [vmem:[#allocation4 + $0x250] sm:$0xff]
    %v1167 = vld [vmem:[#allocation4 + $0x258] sm:$0xff]
    %v1168 = vld [vmem:[#allocation4 + $0x260] sm:$0xff]
    %v1169 = vld [vmem:[#allocation4 + $0x268] sm:$0xff]
    %v1170 = vld [vmem:[#allocation4 + $0x270] sm:$0xff]
    %v1171 = vld [vmem:[#allocation4 + $0x278] sm:$0xff]
    %v1172 = vld [vmem:[#allocation4 + $0x280] sm:$0xff]
    %v1173 = vld [vmem:[#allocation4 + $0x288] sm:$0xff]
    %v1174 = vld [vmem:[#allocation4 + $0x290] sm:$0xff]
    %v1175 = vld [vmem:[#allocation4 + $0x298] sm:$0xff]
    %v1176 = vld [vmem:[#allocation4 + $0x2a0] sm:$0xff]
    %v1177 = vld [vmem:[#allocation4 + $0x2a8] sm:$0xff]
    %v1178 = vld [vmem:[#allocation4 + $0x2b0] sm:$0xff]
    %v1179 = vld [vmem:[#allocation4 + $0x2b8] sm:$0xff]
    %v1180 = vld [vmem:[#allocation4 + $0x2c0] sm:$0xff]
    %v1181 = vld [vmem:[#allocation4 + $0x2c8] sm:$0xff]
    %v1182 = vld [vmem:[#allocation4 + $0x2d0] sm:$0xff]
    %v1183 = vld [vmem:[#allocation4 + $0x2d8] sm:$0xff]
    %v1184 = vld [vmem:[#allocation4 + $0x2e0] sm:$0xff]
    %v1185 = vld [vmem:[#allocation4 + $0x2e8] sm:$0xff]
    %v1186 = vld [vmem:[#allocation4 + $0x2f0] sm:$0xff]
    %v1187 = vld [vmem:[#allocation4 + $0x2f8] sm:$0xff]
    %v1188 = vld [vmem:[#allocation4 + $0x300] sm:$0xff]
    %v1189 = vld [vmem:[#allocation4 + $0x308] sm:$0xff]
    %v1190 = vld [vmem:[#allocation4 + $0x310] sm:$0xff]
    %v1191 = vld [vmem:[#allocation4 + $0x318] sm:$0xff]
    %v1192 = vld [vmem:[#allocation4 + $0x320] sm:$0xff]
    %v1193 = vld [vmem:[#allocation4 + $0x328] sm:$0xff]
    %v1194 = vld [vmem:[#allocation4 + $0x330] sm:$0xff]
    %v1195 = vld [vmem:[#allocation4 + $0x338] sm:$0xff]
    %v1196 = vld [vmem:[#allocation4 + $0x340] sm:$0xff]
    %v1197 = vld [vmem:[#allocation4 + $0x348] sm:$0xff]
    %v1198 = vld [vmem:[#allocation4 + $0x350] sm:$0xff]
    %v1199 = vld [vmem:[#allocation4 + $0x358] sm:$0xff]
    %v1200 = vld [vmem:[#allocation4 + $0x360] sm:$0xff]
    %v1201 = vld [vmem:[#allocation4 + $0x368] sm:$0xff]
    %v1202 = vld [vmem:[#allocation4 + $0x370] sm:$0xff]
    %v1203 = vld [vmem:[#allocation4 + $0x378] sm:$0xff]
    %v1204 = vld [vmem:[#allocation4 + $0x380] sm:$0xff]
    %v1205 = vld [vmem:[#allocation4 + $0x388] sm:$0xff]
    %v1206 = vld [vmem:[#allocation4 + $0x390] sm:$0xff]
    %v1207 = vld [vmem:[#allocation4 + $0x398] sm:$0xff]
    %v1208 = vld [vmem:[#allocation4 + $0x3a0] sm:$0xff]
    %v1209 = vld [vmem:[#allocation4 + $0x3a8] sm:$0xff]
    %v1210 = vld [vmem:[#allocation4 + $0x3b0] sm:$0xff]
    %v1211 = vld [vmem:[#allocation4 + $0x3b8] sm:$0xff]
    %v1212 = vld [vmem:[#allocation4 + $0x3c0] sm:$0xff]
    %v1213 = vld [vmem:[#allocation4 + $0x3c8] sm:$0xff]
    %v1214 = vld [vmem:[#allocation4 + $0x3d0] sm:$0xff]
    %v1215 = vld [vmem:[#allocation4 + $0x3d8] sm:$0xff]
    %v1216 = vld [vmem:[#allocation4 + $0x3e0] sm:$0xff]
    %v1217 = vld [vmem:[#allocation4 + $0x3e8] sm:$0xff]
    %v1218 = vld [vmem:[#allocation4 + $0x3f0] sm:$0xff]
    %v1219 = vld [vmem:[#allocation4 + $0x3f8] sm:$0xff]
    %v1220 = vld [vmem:[%s4] sm:$0xf]
    %v1222 = vlaneseq
    %v1223 = vshrl.u32 %v1222, 7
    %v1224 = vsub.s32 0, %v1223
    %v1225 = vrot.slane %v1220, %v1224
    %v1226 = vlaneseq
    %v1227 = vshrl.u32 %v1226, 7
    %v1228 = vsub.s32 1, %v1227
    %v1229 = vrot.slane %v1220, %v1228
    %v1230 = vlaneseq
    %v1231 = vshrl.u32 %v1230, 7
    %v1232 = vsub.s32 2, %v1231
    %v1233 = vrot.slane %v1220, %v1232
    %v1234 = vlaneseq
    %v1235 = vshrl.u32 %v1234, 7
    %v1236 = vsub.s32 3, %v1235
    %v1237 = vrot.slane %v1220, %v1236
    %v1370 = vunpack.c.l.b16 %v1092
    %v1371 = vunpack.c.h.b16 %v1092
    %v1372 = vunpack.c.l.b16 %v1093
    %v1373 = vunpack.c.h.b16 %v1093
    %v1374 = vunpack.c.l.b16 %v1094
    %v1375 = vunpack.c.h.b16 %v1094
    %v1376 = vunpack.c.l.b16 %v1095
    %v1377 = vunpack.c.h.b16 %v1095
    %v1378 = vunpack.c.l.b16 %v1096
    %v1379 = vunpack.c.h.b16 %v1096
    %v1380 = vunpack.c.l.b16 %v1097
    %v1381 = vunpack.c.h.b16 %v1097
    %v1382 = vunpack.c.l.b16 %v1098
    %v1383 = vunpack.c.h.b16 %v1098
    %v1384 = vunpack.c.l.b16 %v1099
    %v1385 = vunpack.c.h.b16 %v1099
    %v1386 = vunpack.c.l.b16 %v1100
    %v1387 = vunpack.c.h.b16 %v1100
    %v1388 = vunpack.c.l.b16 %v1101
    %v1389 = vunpack.c.h.b16 %v1101
    %v1390 = vunpack.c.l.b16 %v1102
    %v1391 = vunpack.c.h.b16 %v1102
    %v1392 = vunpack.c.l.b16 %v1103
    %v1393 = vunpack.c.h.b16 %v1103
    %v1394 = vunpack.c.l.b16 %v1104
    %v1395 = vunpack.c.h.b16 %v1104
    %v1396 = vunpack.c.l.b16 %v1105
    %v1397 = vunpack.c.h.b16 %v1105
    %v1398 = vunpack.c.l.b16 %v1106
    %v1399 = vunpack.c.h.b16 %v1106
    %v1400 = vunpack.c.l.b16 %v1107
    %v1401 = vunpack.c.h.b16 %v1107
    %v1402 = vunpack.c.l.b16 %v1108
    %v1403 = vunpack.c.h.b16 %v1108
    %v1404 = vunpack.c.l.b16 %v1109
    %v1405 = vunpack.c.h.b16 %v1109
    %v1406 = vunpack.c.l.b16 %v1110
    %v1407 = vunpack.c.h.b16 %v1110
    %v1408 = vunpack.c.l.b16 %v1111
    %v1409 = vunpack.c.h.b16 %v1111
    %v1410 = vunpack.c.l.b16 %v1112
    %v1411 = vunpack.c.h.b16 %v1112
    %v1412 = vunpack.c.l.b16 %v1113
    %v1413 = vunpack.c.h.b16 %v1113
    %v1414 = vunpack.c.l.b16 %v1114
    %v1415 = vunpack.c.h.b16 %v1114
    %v1416 = vunpack.c.l.b16 %v1115
    %v1417 = vunpack.c.h.b16 %v1115
    %v1418 = vunpack.c.l.b16 %v1116
    %v1419 = vunpack.c.h.b16 %v1116
    %v1420 = vunpack.c.l.b16 %v1117
    %v1421 = vunpack.c.h.b16 %v1117
    %v1422 = vunpack.c.l.b16 %v1118
    %v1423 = vunpack.c.h.b16 %v1118
    %v1424 = vunpack.c.l.b16 %v1119
    %v1425 = vunpack.c.h.b16 %v1119
    %v1426 = vunpack.c.l.b16 %v1120
    %v1427 = vunpack.c.h.b16 %v1120
    %v1428 = vunpack.c.l.b16 %v1121
    %v1429 = vunpack.c.h.b16 %v1121
    %v1430 = vunpack.c.l.b16 %v1122
    %v1431 = vunpack.c.h.b16 %v1122
    %v1432 = vunpack.c.l.b16 %v1123
    %v1433 = vunpack.c.h.b16 %v1123
    %v1434 = vunpack.c.l.b16 %v1124
    %v1435 = vunpack.c.h.b16 %v1124
    %v1436 = vunpack.c.l.b16 %v1125
    %v1437 = vunpack.c.h.b16 %v1125
    %v1438 = vunpack.c.l.b16 %v1126
    %v1439 = vunpack.c.h.b16 %v1126
    %v1440 = vunpack.c.l.b16 %v1127
    %v1441 = vunpack.c.h.b16 %v1127
    %v1442 = vunpack.c.l.b16 %v1128
    %v1443 = vunpack.c.h.b16 %v1128
    %v1444 = vunpack.c.l.b16 %v1129
    %v1445 = vunpack.c.h.b16 %v1129
    %v1446 = vunpack.c.l.b16 %v1130
    %v1447 = vunpack.c.h.b16 %v1130
    %v1448 = vunpack.c.l.b16 %v1131
    %v1449 = vunpack.c.h.b16 %v1131
    %v1450 = vunpack.c.l.b16 %v1132
    %v1451 = vunpack.c.h.b16 %v1132
    %v1452 = vunpack.c.l.b16 %v1133
    %v1453 = vunpack.c.h.b16 %v1133
    %v1454 = vunpack.c.l.b16 %v1134
    %v1455 = vunpack.c.h.b16 %v1134
    %v1456 = vunpack.c.l.b16 %v1135
    %v1457 = vunpack.c.h.b16 %v1135
    %v1458 = vunpack.c.l.b16 %v1136
    %v1459 = vunpack.c.h.b16 %v1136
    %v1460 = vunpack.c.l.b16 %v1137
    %v1461 = vunpack.c.h.b16 %v1137
    %v1462 = vunpack.c.l.b16 %v1138
    %v1463 = vunpack.c.h.b16 %v1138
    %v1464 = vunpack.c.l.b16 %v1139
    %v1465 = vunpack.c.h.b16 %v1139
    %v1466 = vunpack.c.l.b16 %v1140
    %v1467 = vunpack.c.h.b16 %v1140
    %v1468 = vunpack.c.l.b16 %v1141
    %v1469 = vunpack.c.h.b16 %v1141
    %v1470 = vunpack.c.l.b16 %v1142
    %v1471 = vunpack.c.h.b16 %v1142
    %v1472 = vunpack.c.l.b16 %v1143
    %v1473 = vunpack.c.h.b16 %v1143
    %v1474 = vunpack.c.l.b16 %v1144
    %v1475 = vunpack.c.h.b16 %v1144
    %v1476 = vunpack.c.l.b16 %v1145
    %v1477 = vunpack.c.h.b16 %v1145
    %v1478 = vunpack.c.l.b16 %v1146
    %v1479 = vunpack.c.h.b16 %v1146
    %v1480 = vunpack.c.l.b16 %v1147
    %v1481 = vunpack.c.h.b16 %v1147
    %v1482 = vunpack.c.l.b16 %v1148
    %v1483 = vunpack.c.h.b16 %v1148
    %v1484 = vunpack.c.l.b16 %v1149
    %v1485 = vunpack.c.h.b16 %v1149
    %v1486 = vunpack.c.l.b16 %v1150
    %v1487 = vunpack.c.h.b16 %v1150
    %v1488 = vunpack.c.l.b16 %v1151
    %v1489 = vunpack.c.h.b16 %v1151
    %v1490 = vunpack.c.l.b16 %v1152
    %v1491 = vunpack.c.h.b16 %v1152
    %v1492 = vunpack.c.l.b16 %v1153
    %v1493 = vunpack.c.h.b16 %v1153
    %v1494 = vunpack.c.l.b16 %v1154
    %v1495 = vunpack.c.h.b16 %v1154
    %v1496 = vunpack.c.l.b16 %v1155
    %v1497 = vunpack.c.h.b16 %v1155
    %v1498 = vunpack.c.l.b16 %v1156
    %v1499 = vunpack.c.h.b16 %v1156
    %v1500 = vunpack.c.l.b16 %v1157
    %v1501 = vunpack.c.h.b16 %v1157
    %v1502 = vunpack.c.l.b16 %v1158
    %v1503 = vunpack.c.h.b16 %v1158
    %v1504 = vunpack.c.l.b16 %v1159
    %v1505 = vunpack.c.h.b16 %v1159
    %v1506 = vunpack.c.l.b16 %v1160
    %v1507 = vunpack.c.h.b16 %v1160
    %v1508 = vunpack.c.l.b16 %v1161
    %v1509 = vunpack.c.h.b16 %v1161
    %v1510 = vunpack.c.l.b16 %v1162
    %v1511 = vunpack.c.h.b16 %v1162
    %v1512 = vunpack.c.l.b16 %v1163
    %v1513 = vunpack.c.h.b16 %v1163
    %v1514 = vunpack.c.l.b16 %v1164
    %v1515 = vunpack.c.h.b16 %v1164
    %v1516 = vunpack.c.l.b16 %v1165
    %v1517 = vunpack.c.h.b16 %v1165
    %v1518 = vunpack.c.l.b16 %v1166
    %v1519 = vunpack.c.h.b16 %v1166
    %v1520 = vunpack.c.l.b16 %v1167
    %v1521 = vunpack.c.h.b16 %v1167
    %v1522 = vunpack.c.l.b16 %v1168
    %v1523 = vunpack.c.h.b16 %v1168
    %v1524 = vunpack.c.l.b16 %v1169
    %v1525 = vunpack.c.h.b16 %v1169
    %v1526 = vunpack.c.l.b16 %v1170
    %v1527 = vunpack.c.h.b16 %v1170
    %v1528 = vunpack.c.l.b16 %v1171
    %v1529 = vunpack.c.h.b16 %v1171
    %v1530 = vunpack.c.l.b16 %v1172
    %v1531 = vunpack.c.h.b16 %v1172
    %v1532 = vunpack.c.l.b16 %v1173
    %v1533 = vunpack.c.h.b16 %v1173
    %v1534 = vunpack.c.l.b16 %v1174
    %v1535 = vunpack.c.h.b16 %v1174
    %v1536 = vunpack.c.l.b16 %v1175
    %v1537 = vunpack.c.h.b16 %v1175
    %v1538 = vunpack.c.l.b16 %v1176
    %v1539 = vunpack.c.h.b16 %v1176
    %v1540 = vunpack.c.l.b16 %v1177
    %v1541 = vunpack.c.h.b16 %v1177
    %v1542 = vunpack.c.l.b16 %v1178
    %v1543 = vunpack.c.h.b16 %v1178
    %v1544 = vunpack.c.l.b16 %v1179
    %v1545 = vunpack.c.h.b16 %v1179
    %v1546 = vunpack.c.l.b16 %v1180
    %v1547 = vunpack.c.h.b16 %v1180
    %v1548 = vunpack.c.l.b16 %v1181
    %v1549 = vunpack.c.h.b16 %v1181
    %v1550 = vunpack.c.l.b16 %v1182
    %v1551 = vunpack.c.h.b16 %v1182
    %v1552 = vunpack.c.l.b16 %v1183
    %v1553 = vunpack.c.h.b16 %v1183
    %v1554 = vunpack.c.l.b16 %v1184
    %v1555 = vunpack.c.h.b16 %v1184
    %v1556 = vunpack.c.l.b16 %v1185
    %v1557 = vunpack.c.h.b16 %v1185
    %v1558 = vunpack.c.l.b16 %v1186
    %v1559 = vunpack.c.h.b16 %v1186
    %v1560 = vunpack.c.l.b16 %v1187
    %v1561 = vunpack.c.h.b16 %v1187
    %v1562 = vunpack.c.l.b16 %v1188
    %v1563 = vunpack.c.h.b16 %v1188
    %v1564 = vunpack.c.l.b16 %v1189
    %v1565 = vunpack.c.h.b16 %v1189
    %v1566 = vunpack.c.l.b16 %v1190
    %v1567 = vunpack.c.h.b16 %v1190
    %v1568 = vunpack.c.l.b16 %v1191
    %v1569 = vunpack.c.h.b16 %v1191
    %v1570 = vunpack.c.l.b16 %v1192
    %v1571 = vunpack.c.h.b16 %v1192
    %v1572 = vunpack.c.l.b16 %v1193
    %v1573 = vunpack.c.h.b16 %v1193
    %v1574 = vunpack.c.l.b16 %v1194
    %v1575 = vunpack.c.h.b16 %v1194
    %v1576 = vunpack.c.l.b16 %v1195
    %v1577 = vunpack.c.h.b16 %v1195
    %v1578 = vunpack.c.l.b16 %v1196
    %v1579 = vunpack.c.h.b16 %v1196
    %v1580 = vunpack.c.l.b16 %v1197
    %v1581 = vunpack.c.h.b16 %v1197
    %v1582 = vunpack.c.l.b16 %v1198
    %v1583 = vunpack.c.h.b16 %v1198
    %v1584 = vunpack.c.l.b16 %v1199
    %v1585 = vunpack.c.h.b16 %v1199
    %v1586 = vunpack.c.l.b16 %v1200
    %v1587 = vunpack.c.h.b16 %v1200
    %v1588 = vunpack.c.l.b16 %v1201
    %v1589 = vunpack.c.h.b16 %v1201
    %v1590 = vunpack.c.l.b16 %v1202
    %v1591 = vunpack.c.h.b16 %v1202
    %v1592 = vunpack.c.l.b16 %v1203
    %v1593 = vunpack.c.h.b16 %v1203
    %v1594 = vunpack.c.l.b16 %v1204
    %v1595 = vunpack.c.h.b16 %v1204
    %v1596 = vunpack.c.l.b16 %v1205
    %v1597 = vunpack.c.h.b16 %v1205
    %v1598 = vunpack.c.l.b16 %v1206
    %v1599 = vunpack.c.h.b16 %v1206
    %v1600 = vunpack.c.l.b16 %v1207
    %v1601 = vunpack.c.h.b16 %v1207
    %v1602 = vunpack.c.l.b16 %v1208
    %v1603 = vunpack.c.h.b16 %v1208
    %v1604 = vunpack.c.l.b16 %v1209
    %v1605 = vunpack.c.h.b16 %v1209
    %v1606 = vunpack.c.l.b16 %v1210
    %v1607 = vunpack.c.h.b16 %v1210
    %v1608 = vunpack.c.l.b16 %v1211
    %v1609 = vunpack.c.h.b16 %v1211
    %v1610 = vunpack.c.l.b16 %v1212
    %v1611 = vunpack.c.h.b16 %v1212
    %v1612 = vunpack.c.l.b16 %v1213
    %v1613 = vunpack.c.h.b16 %v1213
    %v1614 = vunpack.c.l.b16 %v1214
    %v1615 = vunpack.c.h.b16 %v1214
    %v1616 = vunpack.c.l.b16 %v1215
    %v1617 = vunpack.c.h.b16 %v1215
    %v1618 = vunpack.c.l.b16 %v1216
    %v1619 = vunpack.c.h.b16 %v1216
    %v1620 = vunpack.c.l.b16 %v1217
    %v1621 = vunpack.c.h.b16 %v1217
    %v1622 = vunpack.c.l.b16 %v1218
    %v1623 = vunpack.c.h.b16 %v1218
    %v1624 = vunpack.c.l.b16 %v1219
    %v1625 = vunpack.c.h.b16 %v1219
    %v1626 = vpack.c.b16 %v1374, %v1370
    %v1627 = vpack.c.b16 %v1375, %v1371
    %v1628 = vpack.c.b16 %v1376, %v1372
    %v1629 = vpack.c.b16 %v1377, %v1373
    %v1630 = vpack.c.b16 %v1382, %v1378
    %v1631 = vpack.c.b16 %v1383, %v1379
    %v1632 = vpack.c.b16 %v1384, %v1380
    %v1633 = vpack.c.b16 %v1385, %v1381
    %v1634 = vpack.c.b16 %v1390, %v1386
    %v1635 = vpack.c.b16 %v1391, %v1387
    %v1636 = vpack.c.b16 %v1392, %v1388
    %v1637 = vpack.c.b16 %v1393, %v1389
    %v1638 = vpack.c.b16 %v1398, %v1394
    %v1639 = vpack.c.b16 %v1399, %v1395
    %v1640 = vpack.c.b16 %v1400, %v1396
    %v1641 = vpack.c.b16 %v1401, %v1397
    %v1642 = vpack.c.b16 %v1406, %v1402
    %v1643 = vpack.c.b16 %v1407, %v1403
    %v1644 = vpack.c.b16 %v1408, %v1404
    %v1645 = vpack.c.b16 %v1409, %v1405
    %v1646 = vpack.c.b16 %v1414, %v1410
    %v1647 = vpack.c.b16 %v1415, %v1411
    %v1648 = vpack.c.b16 %v1416, %v1412
    %v1649 = vpack.c.b16 %v1417, %v1413
    %v1650 = vpack.c.b16 %v1422, %v1418
    %v1651 = vpack.c.b16 %v1423, %v1419
    %v1652 = vpack.c.b16 %v1424, %v1420
    %v1653 = vpack.c.b16 %v1425, %v1421
    %v1654 = vpack.c.b16 %v1430, %v1426
    %v1655 = vpack.c.b16 %v1431, %v1427
    %v1656 = vpack.c.b16 %v1432, %v1428
    %v1657 = vpack.c.b16 %v1433, %v1429
    %v1658 = vpack.c.b16 %v1438, %v1434
    %v1659 = vpack.c.b16 %v1439, %v1435
    %v1660 = vpack.c.b16 %v1440, %v1436
    %v1661 = vpack.c.b16 %v1441, %v1437
    %v1662 = vpack.c.b16 %v1446, %v1442
    %v1663 = vpack.c.b16 %v1447, %v1443
    %v1664 = vpack.c.b16 %v1448, %v1444
    %v1665 = vpack.c.b16 %v1449, %v1445
    %v1666 = vpack.c.b16 %v1454, %v1450
    %v1667 = vpack.c.b16 %v1455, %v1451
    %v1668 = vpack.c.b16 %v1456, %v1452
    %v1669 = vpack.c.b16 %v1457, %v1453
    %v1670 = vpack.c.b16 %v1462, %v1458
    %v1671 = vpack.c.b16 %v1463, %v1459
    %v1672 = vpack.c.b16 %v1464, %v1460
    %v1673 = vpack.c.b16 %v1465, %v1461
    %v1674 = vpack.c.b16 %v1470, %v1466
    %v1675 = vpack.c.b16 %v1471, %v1467
    %v1676 = vpack.c.b16 %v1472, %v1468
    %v1677 = vpack.c.b16 %v1473, %v1469
    %v1678 = vpack.c.b16 %v1478, %v1474
    %v1679 = vpack.c.b16 %v1479, %v1475
    %v1680 = vpack.c.b16 %v1480, %v1476
    %v1681 = vpack.c.b16 %v1481, %v1477
    %v1682 = vpack.c.b16 %v1486, %v1482
    %v1683 = vpack.c.b16 %v1487, %v1483
    %v1684 = vpack.c.b16 %v1488, %v1484
    %v1685 = vpack.c.b16 %v1489, %v1485
    %v1686 = vpack.c.b16 %v1494, %v1490
    %v1687 = vpack.c.b16 %v1495, %v1491
    %v1688 = vpack.c.b16 %v1496, %v1492
    %v1689 = vpack.c.b16 %v1497, %v1493
    %v1690 = vpack.c.b16 %v1502, %v1498
    %v1691 = vpack.c.b16 %v1503, %v1499
    %v1692 = vpack.c.b16 %v1504, %v1500
    %v1693 = vpack.c.b16 %v1505, %v1501
    %v1694 = vpack.c.b16 %v1510, %v1506
    %v1695 = vpack.c.b16 %v1511, %v1507
    %v1696 = vpack.c.b16 %v1512, %v1508
    %v1697 = vpack.c.b16 %v1513, %v1509
    %v1698 = vpack.c.b16 %v1518, %v1514
    %v1699 = vpack.c.b16 %v1519, %v1515
    %v1700 = vpack.c.b16 %v1520, %v1516
    %v1701 = vpack.c.b16 %v1521, %v1517
    %v1702 = vpack.c.b16 %v1526, %v1522
    %v1703 = vpack.c.b16 %v1527, %v1523
    %v1704 = vpack.c.b16 %v1528, %v1524
    %v1705 = vpack.c.b16 %v1529, %v1525
    %v1706 = vpack.c.b16 %v1534, %v1530
    %v1707 = vpack.c.b16 %v1535, %v1531
    %v1708 = vpack.c.b16 %v1536, %v1532
    %v1709 = vpack.c.b16 %v1537, %v1533
    %v1710 = vpack.c.b16 %v1542, %v1538
    %v1711 = vpack.c.b16 %v1543, %v1539
    %v1712 = vpack.c.b16 %v1544, %v1540
    %v1713 = vpack.c.b16 %v1545, %v1541
    %v1714 = vpack.c.b16 %v1550, %v1546
    %v1715 = vpack.c.b16 %v1551, %v1547
    %v1716 = vpack.c.b16 %v1552, %v1548
    %v1717 = vpack.c.b16 %v1553, %v1549
    %v1718 = vpack.c.b16 %v1558, %v1554
    %v1719 = vpack.c.b16 %v1559, %v1555
    %v1720 = vpack.c.b16 %v1560, %v1556
    %v1721 = vpack.c.b16 %v1561, %v1557
    %v1722 = vpack.c.b16 %v1566, %v1562
    %v1723 = vpack.c.b16 %v1567, %v1563
    %v1724 = vpack.c.b16 %v1568, %v1564
    %v1725 = vpack.c.b16 %v1569, %v1565
    %v1726 = vpack.c.b16 %v1574, %v1570
    %v1727 = vpack.c.b16 %v1575, %v1571
    %v1728 = vpack.c.b16 %v1576, %v1572
    %v1729 = vpack.c.b16 %v1577, %v1573
    %v1730 = vpack.c.b16 %v1582, %v1578
    %v1731 = vpack.c.b16 %v1583, %v1579
    %v1732 = vpack.c.b16 %v1584, %v1580
    %v1733 = vpack.c.b16 %v1585, %v1581
    %v1734 = vpack.c.b16 %v1590, %v1586
    %v1735 = vpack.c.b16 %v1591, %v1587
    %v1736 = vpack.c.b16 %v1592, %v1588
    %v1737 = vpack.c.b16 %v1593, %v1589
    %v1738 = vpack.c.b16 %v1598, %v1594
    %v1739 = vpack.c.b16 %v1599, %v1595
    %v1740 = vpack.c.b16 %v1600, %v1596
    %v1741 = vpack.c.b16 %v1601, %v1597
    %v1742 = vpack.c.b16 %v1606, %v1602
    %v1743 = vpack.c.b16 %v1607, %v1603
    %v1744 = vpack.c.b16 %v1608, %v1604
    %v1745 = vpack.c.b16 %v1609, %v1605
    %v1746 = vpack.c.b16 %v1614, %v1610
    %v1747 = vpack.c.b16 %v1615, %v1611
    %v1748 = vpack.c.b16 %v1616, %v1612
    %v1749 = vpack.c.b16 %v1617, %v1613
    %v1750 = vpack.c.b16 %v1622, %v1618
    %v1751 = vpack.c.b16 %v1623, %v1619
    %v1752 = vpack.c.b16 %v1624, %v1620
    %v1753 = vpack.c.b16 %v1625, %v1621
    %1882 = vmatprep.subr.bf16.mxu0 %v1655
    %1883 = vmatpush1.bf16.msra.mxu0 %v1654
    %1884 = vmatprep.subr.bf16.mxu0 %v1651
    %1885 = vmatpush1.bf16.msra.mxu0 %v1650
    %1886 = vmatprep.subr.bf16.mxu0 %v1647
    %1887 = vmatpush1.bf16.msra.mxu0 %v1646
    %1888 = vmatprep.subr.bf16.mxu0 %v1643
    %1889 = vmatpush1.bf16.msra.mxu0 %v1642
    %1890 = vmatprep.subr.bf16.mxu0 %v1639
    %1891 = vmatpush1.bf16.msra.mxu0 %v1638
    %1892 = vmatprep.subr.bf16.mxu0 %v1635
    %1893 = vmatpush1.bf16.msra.mxu0 %v1634
    %1894 = vmatprep.subr.bf16.mxu0 %v1631
    %1895 = vmatpush1.bf16.msra.mxu0 %v1630
    %1896 = vmatprep.subr.bf16.mxu0 %v1627
    %1897 = vmatpush1.bf16.msra.mxu0 %v1626
    %1898 = vmatprep.subr.bf16.mxu0 %v1687
    %1899 = vmatpush2.bf16.msra.mxu0 %v1686
    %1900 = vmatprep.subr.bf16.mxu0 %v1683
    %1901 = vmatpush2.bf16.msra.mxu0 %v1682
    %1902 = vmatprep.subr.bf16.mxu0 %v1679
    %1903 = vmatpush2.bf16.msra.mxu0 %v1678
    %1904 = vmatprep.subr.bf16.mxu0 %v1675
    %1905 = vmatpush2.bf16.msra.mxu0 %v1674
    %1906 = vmatprep.subr.bf16.mxu0 %v1671
    %1907 = vmatpush2.bf16.msra.mxu0 %v1670
    %1908 = vmatprep.subr.bf16.mxu0 %v1667
    %1909 = vmatpush2.bf16.msra.mxu0 %v1666
    %1910 = vmatprep.subr.bf16.mxu0 %v1663
    %1911 = vmatpush2.bf16.msra.mxu0 %v1662
    %1912 = vmatprep.subr.bf16.mxu0 %v1659
    %1913 = vmatpush2.bf16.msra.mxu0 %v1658
    %1914 = vmatprep.mubr.bf16.mxu0 %v1077
    %1915 = vmatmul.mubr.bf16.gmra.mxu0 %v1076
    %v1916 = vpop.f32.mrf.mxu0
    %v1917 = vadd.f32 %v1225, %v1916
    %v1918 = vpop.f32.mrf.mxu0
    %v1919 = vadd.f32 %v1229, %v1918
    %v1920 = vpop.f32.mrf.mxu0
    %v1921 = vadd.f32 %v1225, %v1920
    %v1922 = vpop.f32.mrf.mxu0
    %v1923 = vadd.f32 %v1229, %v1922
    %1924 = vmatprep.mubr.bf16.mxu0 %v1081
    %1925 = vmatmul.mubr.bf16.gmra.mxu0 %v1080
    %v1926 = vpop.f32.mrf.mxu0
    %v1927 = vadd.f32 %v1225, %v1926
    %v1928 = vpop.f32.mrf.mxu0
    %v1929 = vadd.f32 %v1229, %v1928
    %v1930 = vpop.f32.mrf.mxu0
    %v1931 = vadd.f32 %v1225, %v1930
    %v1932 = vpop.f32.mrf.mxu0
    %v1933 = vadd.f32 %v1229, %v1932
    %1934 = vmatprep.mubr.bf16.mxu0 %v1085
    %1935 = vmatmul.mubr.bf16.gmra.mxu0 %v1084
    %v1936 = vpop.f32.mrf.mxu0
    %v1937 = vadd.f32 %v1225, %v1936
    %v1938 = vpop.f32.mrf.mxu0
    %v1939 = vadd.f32 %v1229, %v1938
    %v1940 = vpop.f32.mrf.mxu0
    %v1941 = vadd.f32 %v1225, %v1940
    %v1942 = vpop.f32.mrf.mxu0
    %v1943 = vadd.f32 %v1229, %v1942
    %1944 = vmatprep.mubr.bf16.mxu0 %v1089
    %1945 = vmatmul.mubr.bf16.gmra.mxu0 %v1088
    %v1946 = vpop.f32.mrf.mxu0
    %v1947 = vadd.f32 %v1225, %v1946
    %v1948 = vpop.f32.mrf.mxu0
    %v1949 = vadd.f32 %v1229, %v1948
    %v1950 = vpop.f32.mrf.mxu0
    %v1951 = vadd.f32 %v1225, %v1950
    %v1952 = vpop.f32.mrf.mxu0
    %v1953 = vadd.f32 %v1229, %v1952
    %1954 = vdwg.mxu0
    %1955 = vmatprep.subr.bf16.mxu0 %v1719
    %1956 = vmatpush1.bf16.msra.mxu0 %v1718
    %1957 = vmatprep.subr.bf16.mxu0 %v1715
    %1958 = vmatpush1.bf16.msra.mxu0 %v1714
    %1959 = vmatprep.subr.bf16.mxu0 %v1711
    %1960 = vmatpush1.bf16.msra.mxu0 %v1710
    %1961 = vmatprep.subr.bf16.mxu0 %v1707
    %1962 = vmatpush1.bf16.msra.mxu0 %v1706
    %1963 = vmatprep.subr.bf16.mxu0 %v1703
    %1964 = vmatpush1.bf16.msra.mxu0 %v1702
    %1965 = vmatprep.subr.bf16.mxu0 %v1699
    %1966 = vmatpush1.bf16.msra.mxu0 %v1698
    %1967 = vmatprep.subr.bf16.mxu0 %v1695
    %1968 = vmatpush1.bf16.msra.mxu0 %v1694
    %1969 = vmatprep.subr.bf16.mxu0 %v1691
    %1970 = vmatpush1.bf16.msra.mxu0 %v1690
    %1971 = vmatprep.subr.bf16.mxu0 %v1751
    %1972 = vmatpush2.bf16.msra.mxu0 %v1750
    %1973 = vmatprep.subr.bf16.mxu0 %v1747
    %1974 = vmatpush2.bf16.msra.mxu0 %v1746
    %1975 = vmatprep.subr.bf16.mxu0 %v1743
    %1976 = vmatpush2.bf16.msra.mxu0 %v1742
    %1977 = vmatprep.subr.bf16.mxu0 %v1739
    %1978 = vmatpush2.bf16.msra.mxu0 %v1738
    %1979 = vmatprep.subr.bf16.mxu0 %v1735
    %1980 = vmatpush2.bf16.msra.mxu0 %v1734
    %1981 = vmatprep.subr.bf16.mxu0 %v1731
    %1982 = vmatpush2.bf16.msra.mxu0 %v1730
    %1983 = vmatprep.subr.bf16.mxu0 %v1727
    %1984 = vmatpush2.bf16.msra.mxu0 %v1726
    %1985 = vmatprep.subr.bf16.mxu0 %v1723
    %1986 = vmatpush2.bf16.msra.mxu0 %v1722
    %1987 = vmatprep.mubr.bf16.mxu0 %v1079
    %1988 = vmatmul.mubr.bf16.gmra.mxu0 %v1078
    %v1989 = vpop.f32.mrf.mxu0
    %v1990 = vadd.f32 %v1917, %v1989
    %v1991 = vpop.f32.mrf.mxu0
    %v1992 = vadd.f32 %v1919, %v1991
    %v1993 = vpop.f32.mrf.mxu0
    %v1994 = vadd.f32 %v1921, %v1993
    %v1995 = vpop.f32.mrf.mxu0
    %v1996 = vadd.f32 %v1923, %v1995
    %1997 = vmatprep.mubr.bf16.mxu0 %v1083
    %1998 = vmatmul.mubr.bf16.gmra.mxu0 %v1082
    %v1999 = vpop.f32.mrf.mxu0
    %v2000 = vadd.f32 %v1927, %v1999
    %v2001 = vpop.f32.mrf.mxu0
    %v2002 = vadd.f32 %v1929, %v2001
    %v2003 = vpop.f32.mrf.mxu0
    %v2004 = vadd.f32 %v1931, %v2003
    %v2005 = vpop.f32.mrf.mxu0
    %v2006 = vadd.f32 %v1933, %v2005
    %2007 = vmatprep.mubr.bf16.mxu0 %v1087
    %2008 = vmatmul.mubr.bf16.gmra.mxu0 %v1086
    %v2009 = vpop.f32.mrf.mxu0
    %v2010 = vadd.f32 %v1937, %v2009
    %v2011 = vpop.f32.mrf.mxu0
    %v2012 = vadd.f32 %v1939, %v2011
    %v2013 = vpop.f32.mrf.mxu0
    %v2014 = vadd.f32 %v1941, %v2013
    %v2015 = vpop.f32.mrf.mxu0
    %v2016 = vadd.f32 %v1943, %v2015
    %2017 = vmatprep.mubr.bf16.mxu0 %v1091
    %2018 = vmatmul.mubr.bf16.gmra.mxu0 %v1090
    %v2019 = vpop.f32.mrf.mxu0
    %v2020 = vadd.f32 %v1947, %v2019
    %v2021 = vpop.f32.mrf.mxu0
    %v2022 = vadd.f32 %v1949, %v2021
    %v2023 = vpop.f32.mrf.mxu0
    %v2024 = vadd.f32 %v1951, %v2023
    %v2025 = vpop.f32.mrf.mxu0
    %v2026 = vadd.f32 %v1953, %v2025
    %2027 = vdwg.mxu0
    %2028 = vmatprep.subr.bf16.mxu0 %v1657
    %2029 = vmatpush1.bf16.msra.mxu0 %v1656
    %2030 = vmatprep.subr.bf16.mxu0 %v1653
    %2031 = vmatpush1.bf16.msra.mxu0 %v1652
    %2032 = vmatprep.subr.bf16.mxu0 %v1649
    %2033 = vmatpush1.bf16.msra.mxu0 %v1648
    %2034 = vmatprep.subr.bf16.mxu0 %v1645
    %2035 = vmatpush1.bf16.msra.mxu0 %v1644
    %2036 = vmatprep.subr.bf16.mxu0 %v1641
    %2037 = vmatpush1.bf16.msra.mxu0 %v1640
    %2038 = vmatprep.subr.bf16.mxu0 %v1637
    %2039 = vmatpush1.bf16.msra.mxu0 %v1636
    %2040 = vmatprep.subr.bf16.mxu0 %v1633
    %2041 = vmatpush1.bf16.msra.mxu0 %v1632
    %2042 = vmatprep.subr.bf16.mxu0 %v1629
    %2043 = vmatpush1.bf16.msra.mxu0 %v1628
    %2044 = vmatprep.subr.bf16.mxu0 %v1689
    %2045 = vmatpush2.bf16.msra.mxu0 %v1688
    %2046 = vmatprep.subr.bf16.mxu0 %v1685
    %2047 = vmatpush2.bf16.msra.mxu0 %v1684
    %2048 = vmatprep.subr.bf16.mxu0 %v1681
    %2049 = vmatpush2.bf16.msra.mxu0 %v1680
    %2050 = vmatprep.subr.bf16.mxu0 %v1677
    %2051 = vmatpush2.bf16.msra.mxu0 %v1676
    %2052 = vmatprep.subr.bf16.mxu0 %v1673
    %2053 = vmatpush2.bf16.msra.mxu0 %v1672
    %2054 = vmatprep.subr.bf16.mxu0 %v1669
    %2055 = vmatpush2.bf16.msra.mxu0 %v1668
    %2056 = vmatprep.subr.bf16.mxu0 %v1665
    %2057 = vmatpush2.bf16.msra.mxu0 %v1664
    %2058 = vmatprep.subr.bf16.mxu0 %v1661
    %2059 = vmatpush2.bf16.msra.mxu0 %v1660
    %2060 = vmatprep.mubr.bf16.mxu0 %v1077
    %2061 = vmatmul.mubr.bf16.gmra.mxu0 %v1076
    %v2062 = vpop.f32.mrf.mxu0
    %v2063 = vadd.f32 %v1233, %v2062
    %v2064 = vpop.f32.mrf.mxu0
    %v2065 = vadd.f32 %v1237, %v2064
    %v2066 = vpop.f32.mrf.mxu0
    %v2067 = vadd.f32 %v1233, %v2066
    %v2068 = vpop.f32.mrf.mxu0
    %v2069 = vadd.f32 %v1237, %v2068
    %2070 = vmatprep.mubr.bf16.mxu0 %v1081
    %2071 = vmatmul.mubr.bf16.gmra.mxu0 %v1080
    %v2072 = vpop.f32.mrf.mxu0
    %v2073 = vadd.f32 %v1233, %v2072
    %v2074 = vpop.f32.mrf.mxu0
    %v2075 = vadd.f32 %v1237, %v2074
    %v2076 = vpop.f32.mrf.mxu0
    %v2077 = vadd.f32 %v1233, %v2076
    %v2078 = vpop.f32.mrf.mxu0
    %v2079 = vadd.f32 %v1237, %v2078
    %2080 = vmatprep.mubr.bf16.mxu0 %v1085
    %2081 = vmatmul.mubr.bf16.gmra.mxu0 %v1084
    %v2082 = vpop.f32.mrf.mxu0
    %v2083 = vadd.f32 %v1233, %v2082
    %v2084 = vpop.f32.mrf.mxu0
    %v2085 = vadd.f32 %v1237, %v2084
    %v2086 = vpop.f32.mrf.mxu0
    %v2087 = vadd.f32 %v1233, %v2086
    %v2088 = vpop.f32.mrf.mxu0
    %v2089 = vadd.f32 %v1237, %v2088
    %2090 = vmatprep.mubr.bf16.mxu0 %v1089
    %2091 = vmatmul.mubr.bf16.gmra.mxu0 %v1088
    %v2092 = vpop.f32.mrf.mxu0
    %v2093 = vadd.f32 %v1233, %v2092
    %v2094 = vpop.f32.mrf.mxu0
    %v2095 = vadd.f32 %v1237, %v2094
    %v2096 = vpop.f32.mrf.mxu0
    %v2097 = vadd.f32 %v1233, %v2096
    %v2098 = vpop.f32.mrf.mxu0
    %v2099 = vadd.f32 %v1237, %v2098
    %2100 = vdwg.mxu0
    %2101 = vmatprep.subr.bf16.mxu0 %v1721
    %2102 = vmatpush1.bf16.msra.mxu0 %v1720
    %2103 = vmatprep.subr.bf16.mxu0 %v1717
    %2104 = vmatpush1.bf16.msra.mxu0 %v1716
    %2105 = vmatprep.subr.bf16.mxu0 %v1713
    %2106 = vmatpush1.bf16.msra.mxu0 %v1712
    %2107 = vmatprep.subr.bf16.mxu0 %v1709
    %2108 = vmatpush1.bf16.msra.mxu0 %v1708
    %2109 = vmatprep.subr.bf16.mxu0 %v1705
    %2110 = vmatpush1.bf16.msra.mxu0 %v1704
    %2111 = vmatprep.subr.bf16.mxu0 %v1701
    %2112 = vmatpush1.bf16.msra.mxu0 %v1700
    %2113 = vmatprep.subr.bf16.mxu0 %v1697
    %2114 = vmatpush1.bf16.msra.mxu0 %v1696
    %2115 = vmatprep.subr.bf16.mxu0 %v1693
    %2116 = vmatpush1.bf16.msra.mxu0 %v1692
    %2117 = vmatprep.subr.bf16.mxu0 %v1753
    %2118 = vmatpush2.bf16.msra.mxu0 %v1752
    %2119 = vmatprep.subr.bf16.mxu0 %v1749
    %2120 = vmatpush2.bf16.msra.mxu0 %v1748
    %2121 = vmatprep.subr.bf16.mxu0 %v1745
    %2122 = vmatpush2.bf16.msra.mxu0 %v1744
    %2123 = vmatprep.subr.bf16.mxu0 %v1741
    %2124 = vmatpush2.bf16.msra.mxu0 %v1740
    %2125 = vmatprep.subr.bf16.mxu0 %v1737
    %2126 = vmatpush2.bf16.msra.mxu0 %v1736
    %2127 = vmatprep.subr.bf16.mxu0 %v1733
    %2128 = vmatpush2.bf16.msra.mxu0 %v1732
    %2129 = vmatprep.subr.bf16.mxu0 %v1729
    %2130 = vmatpush2.bf16.msra.mxu0 %v1728
    %2131 = vmatprep.subr.bf16.mxu0 %v1725
    %2132 = vmatpush2.bf16.msra.mxu0 %v1724
    %2133 = vmatprep.mubr.bf16.mxu0 %v1079
    %2134 = vmatmul.mubr.bf16.gmra.mxu0 %v1078
    %v2135 = vpop.f32.mrf.mxu0
    %v2136 = vadd.f32 %v2063, %v2135
    %v2137 = vpop.f32.mrf.mxu0
    %v2138 = vadd.f32 %v2065, %v2137
    %v2139 = vpop.f32.mrf.mxu0
    %v2140 = vadd.f32 %v2067, %v2139
    %v2141 = vpop.f32.mrf.mxu0
    %v2142 = vadd.f32 %v2069, %v2141
    %2143 = vmatprep.mubr.bf16.mxu0 %v1083
    %2144 = vmatmul.mubr.bf16.gmra.mxu0 %v1082
    %v2145 = vpop.f32.mrf.mxu0
    %v2146 = vadd.f32 %v2073, %v2145
    %v2147 = vpop.f32.mrf.mxu0
    %v2148 = vadd.f32 %v2075, %v2147
    %v2149 = vpop.f32.mrf.mxu0
    %v2150 = vadd.f32 %v2077, %v2149
    %v2151 = vpop.f32.mrf.mxu0
    %v2152 = vadd.f32 %v2079, %v2151
    %2153 = vmatprep.mubr.bf16.mxu0 %v1087
    %2154 = vmatmul.mubr.bf16.gmra.mxu0 %v1086
    %v2155 = vpop.f32.mrf.mxu0
    %v2156 = vadd.f32 %v2083, %v2155
    %v2157 = vpop.f32.mrf.mxu0
    %v2158 = vadd.f32 %v2085, %v2157
    %v2159 = vpop.f32.mrf.mxu0
    %v2160 = vadd.f32 %v2087, %v2159
    %v2161 = vpop.f32.mrf.mxu0
    %v2162 = vadd.f32 %v2089, %v2161
    %2163 = vmatprep.mubr.bf16.mxu0 %v1091
    %2164 = vmatmul.mubr.bf16.gmra.mxu0 %v1090
    %v2165 = vpop.f32.mrf.mxu0
    %v2166 = vadd.f32 %v2093, %v2165
    %v2167 = vpop.f32.mrf.mxu0
    %v2168 = vadd.f32 %v2095, %v2167
    %v2169 = vpop.f32.mrf.mxu0
    %v2170 = vadd.f32 %v2097, %v2169
    %v2171 = vpop.f32.mrf.mxu0
    %v2172 = vadd.f32 %v2099, %v2171
    %2173 = vdwg.mxu0
    %v2174 = vtanh.pop %v1990
    %v2175 = vtanh.pop %v1992
    %v2176 = vtanh.pop %v2136
    %v2177 = vtanh.pop %v2138
    %v2178 = vtanh.pop %v1994
    %v2179 = vtanh.pop %v1996
    %v2180 = vtanh.pop %v2140
    %v2181 = vtanh.pop %v2142
    %v2182 = vtanh.pop %v2000
    %v2183 = vtanh.pop %v2002
    %v2184 = vtanh.pop %v2146
    %v2185 = vtanh.pop %v2148
    %v2186 = vtanh.pop %v2004
    %v2187 = vtanh.pop %v2006
    %v2188 = vtanh.pop %v2150
    %v2189 = vtanh.pop %v2152
    %v2190 = vtanh.pop %v2010
    %v2191 = vtanh.pop %v2012
    %v2192 = vtanh.pop %v2156
    %v2193 = vtanh.pop %v2158
    %v2194 = vtanh.pop %v2014
    %v2195 = vtanh.pop %v2016
    %v2196 = vtanh.pop %v2160
    %v2197 = vtanh.pop %v2162
    %v2198 = vtanh.pop %v2020
    %v2199 = vtanh.pop %v2022
    %v2200 = vtanh.pop %v2166
    %v2201 = vtanh.pop %v2168
    %v2202 = vtanh.pop %v2024
    %v2203 = vtanh.pop %v2026
    %v2204 = vtanh.pop %v2170
    %v2205 = vtanh.pop %v2172
    %v2206 = vpack.c.bf16 %v2178, %v2174
    %v2207 = vpack.c.bf16 %v2179, %v2175
    %v2208 = vpack.c.bf16 %v2180, %v2176
    %v2209 = vpack.c.bf16 %v2181, %v2177
    %v2210 = vpack.c.bf16 %v2186, %v2182
    %v2211 = vpack.c.bf16 %v2187, %v2183
    %v2212 = vpack.c.bf16 %v2188, %v2184
    %v2213 = vpack.c.bf16 %v2189, %v2185
    %v2214 = vpack.c.bf16 %v2194, %v2190
    %v2215 = vpack.c.bf16 %v2195, %v2191
    %v2216 = vpack.c.bf16 %v2196, %v2192
    %v2217 = vpack.c.bf16 %v2197, %v2193
    %v2218 = vpack.c.bf16 %v2202, %v2198
    %v2219 = vpack.c.bf16 %v2203, %v2199
    %v2220 = vpack.c.bf16 %v2204, %v2200
    %v2221 = vpack.c.bf16 %v2205, %v2201
    %v2222 = vld [vmem:[#allocation6] sm:$0xff]
    %v2223 = vld [vmem:[#allocation6 + $0x8] sm:$0xff]
    %v2224 = vld [vmem:[#allocation6 + $0x10] sm:$0xff]
    %v2225 = vld [vmem:[#allocation6 + $0x18] sm:$0xff]
    %v2226 = vld [vmem:[#allocation6 + $0x20] sm:$0xff]
    %v2227 = vld [vmem:[#allocation6 + $0x28] sm:$0xff]
    %v2228 = vld [vmem:[#allocation6 + $0x30] sm:$0xff]
    %v2229 = vld [vmem:[#allocation6 + $0x38] sm:$0xff]
    %v2230 = vld [vmem:[#allocation6 + $0x40] sm:$0xff]
    %v2231 = vld [vmem:[#allocation6 + $0x48] sm:$0xff]
    %v2232 = vld [vmem:[#allocation6 + $0x50] sm:$0xff]
    %v2233 = vld [vmem:[#allocation6 + $0x58] sm:$0xff]
    %v2234 = vld [vmem:[#allocation6 + $0x60] sm:$0xff]
    %v2235 = vld [vmem:[#allocation6 + $0x68] sm:$0xff]
    %v2236 = vld [vmem:[#allocation6 + $0x70] sm:$0xff]
    %v2237 = vld [vmem:[#allocation6 + $0x78] sm:$0xff]
    %v2238 = vld [vmem:[#allocation6 + $0x80] sm:$0xff]
    %v2239 = vld [vmem:[#allocation6 + $0x88] sm:$0xff]
    %v2240 = vld [vmem:[#allocation6 + $0x90] sm:$0xff]
    %v2241 = vld [vmem:[#allocation6 + $0x98] sm:$0xff]
    %v2242 = vld [vmem:[#allocation6 + $0xa0] sm:$0xff]
    %v2243 = vld [vmem:[#allocation6 + $0xa8] sm:$0xff]
    %v2244 = vld [vmem:[#allocation6 + $0xb0] sm:$0xff]
    %v2245 = vld [vmem:[#allocation6 + $0xb8] sm:$0xff]
    %v2246 = vld [vmem:[#allocation6 + $0xc0] sm:$0xff]
    %v2247 = vld [vmem:[#allocation6 + $0xc8] sm:$0xff]
    %v2248 = vld [vmem:[#allocation6 + $0xd0] sm:$0xff]
    %v2249 = vld [vmem:[#allocation6 + $0xd8] sm:$0xff]
    %v2250 = vld [vmem:[#allocation6 + $0xe0] sm:$0xff]
    %v2251 = vld [vmem:[#allocation6 + $0xe8] sm:$0xff]
    %v2252 = vld [vmem:[#allocation6 + $0xf0] sm:$0xff]
    %v2253 = vld [vmem:[#allocation6 + $0xf8] sm:$0xff]
    %v2254 = vld [vmem:[#allocation6 + $0x100] sm:$0xff]
    %v2255 = vld [vmem:[#allocation6 + $0x108] sm:$0xff]
    %v2256 = vld [vmem:[#allocation6 + $0x110] sm:$0xff]
    %v2257 = vld [vmem:[#allocation6 + $0x118] sm:$0xff]
    %v2258 = vld [vmem:[#allocation6 + $0x120] sm:$0xff]
    %v2259 = vld [vmem:[#allocation6 + $0x128] sm:$0xff]
    %v2260 = vld [vmem:[#allocation6 + $0x130] sm:$0xff]
    %v2261 = vld [vmem:[#allocation6 + $0x138] sm:$0xff]
    %v2262 = vld [vmem:[#allocation6 + $0x140] sm:$0xff]
    %v2263 = vld [vmem:[#allocation6 + $0x148] sm:$0xff]
    %v2264 = vld [vmem:[#allocation6 + $0x150] sm:$0xff]
    %v2265 = vld [vmem:[#allocation6 + $0x158] sm:$0xff]
    %v2266 = vld [vmem:[#allocation6 + $0x160] sm:$0xff]
    %v2267 = vld [vmem:[#allocation6 + $0x168] sm:$0xff]
    %v2268 = vld [vmem:[#allocation6 + $0x170] sm:$0xff]
    %v2269 = vld [vmem:[#allocation6 + $0x178] sm:$0xff]
    %v2270 = vld [vmem:[#allocation6 + $0x180] sm:$0xff]
    %v2271 = vld [vmem:[#allocation6 + $0x188] sm:$0xff]
    %v2272 = vld [vmem:[#allocation6 + $0x190] sm:$0xff]
    %v2273 = vld [vmem:[#allocation6 + $0x198] sm:$0xff]
    %v2274 = vld [vmem:[#allocation6 + $0x1a0] sm:$0xff]
    %v2275 = vld [vmem:[#allocation6 + $0x1a8] sm:$0xff]
    %v2276 = vld [vmem:[#allocation6 + $0x1b0] sm:$0xff]
    %v2277 = vld [vmem:[#allocation6 + $0x1b8] sm:$0xff]
    %v2278 = vld [vmem:[#allocation6 + $0x1c0] sm:$0xff]
    %v2279 = vld [vmem:[#allocation6 + $0x1c8] sm:$0xff]
    %v2280 = vld [vmem:[#allocation6 + $0x1d0] sm:$0xff]
    %v2281 = vld [vmem:[#allocation6 + $0x1d8] sm:$0xff]
    %v2282 = vld [vmem:[#allocation6 + $0x1e0] sm:$0xff]
    %v2283 = vld [vmem:[#allocation6 + $0x1e8] sm:$0xff]
    %v2284 = vld [vmem:[#allocation6 + $0x1f0] sm:$0xff]
    %v2285 = vld [vmem:[#allocation6 + $0x1f8] sm:$0xff]
    %v2286 = vld [vmem:[#allocation6 + $0x200] sm:$0xff]
    %v2287 = vld [vmem:[#allocation6 + $0x208] sm:$0xff]
    %v2288 = vld [vmem:[#allocation6 + $0x210] sm:$0xff]
    %v2289 = vld [vmem:[#allocation6 + $0x218] sm:$0xff]
    %v2290 = vld [vmem:[#allocation6 + $0x220] sm:$0xff]
    %v2291 = vld [vmem:[#allocation6 + $0x228] sm:$0xff]
    %v2292 = vld [vmem:[#allocation6 + $0x230] sm:$0xff]
    %v2293 = vld [vmem:[#allocation6 + $0x238] sm:$0xff]
    %v2294 = vld [vmem:[#allocation6 + $0x240] sm:$0xff]
    %v2295 = vld [vmem:[#allocation6 + $0x248] sm:$0xff]
    %v2296 = vld [vmem:[#allocation6 + $0x250] sm:$0xff]
    %v2297 = vld [vmem:[#allocation6 + $0x258] sm:$0xff]
    %v2298 = vld [vmem:[#allocation6 + $0x260] sm:$0xff]
    %v2299 = vld [vmem:[#allocation6 + $0x268] sm:$0xff]
    %v2300 = vld [vmem:[#allocation6 + $0x270] sm:$0xff]
    %v2301 = vld [vmem:[#allocation6 + $0x278] sm:$0xff]
    %v2302 = vld [vmem:[#allocation6 + $0x280] sm:$0xff]
    %v2303 = vld [vmem:[#allocation6 + $0x288] sm:$0xff]
    %v2304 = vld [vmem:[#allocation6 + $0x290] sm:$0xff]
    %v2305 = vld [vmem:[#allocation6 + $0x298] sm:$0xff]
    %v2306 = vld [vmem:[#allocation6 + $0x2a0] sm:$0xff]
    %v2307 = vld [vmem:[#allocation6 + $0x2a8] sm:$0xff]
    %v2308 = vld [vmem:[#allocation6 + $0x2b0] sm:$0xff]
    %v2309 = vld [vmem:[#allocation6 + $0x2b8] sm:$0xff]
    %v2310 = vld [vmem:[#allocation6 + $0x2c0] sm:$0xff]
    %v2311 = vld [vmem:[#allocation6 + $0x2c8] sm:$0xff]
    %v2312 = vld [vmem:[#allocation6 + $0x2d0] sm:$0xff]
    %v2313 = vld [vmem:[#allocation6 + $0x2d8] sm:$0xff]
    %v2314 = vld [vmem:[#allocation6 + $0x2e0] sm:$0xff]
    %v2315 = vld [vmem:[#allocation6 + $0x2e8] sm:$0xff]
    %v2316 = vld [vmem:[#allocation6 + $0x2f0] sm:$0xff]
    %v2317 = vld [vmem:[#allocation6 + $0x2f8] sm:$0xff]
    %v2318 = vld [vmem:[#allocation6 + $0x300] sm:$0xff]
    %v2319 = vld [vmem:[#allocation6 + $0x308] sm:$0xff]
    %v2320 = vld [vmem:[#allocation6 + $0x310] sm:$0xff]
    %v2321 = vld [vmem:[#allocation6 + $0x318] sm:$0xff]
    %v2322 = vld [vmem:[#allocation6 + $0x320] sm:$0xff]
    %v2323 = vld [vmem:[#allocation6 + $0x328] sm:$0xff]
    %v2324 = vld [vmem:[#allocation6 + $0x330] sm:$0xff]
    %v2325 = vld [vmem:[#allocation6 + $0x338] sm:$0xff]
    %v2326 = vld [vmem:[#allocation6 + $0x340] sm:$0xff]
    %v2327 = vld [vmem:[#allocation6 + $0x348] sm:$0xff]
    %v2328 = vld [vmem:[#allocation6 + $0x350] sm:$0xff]
    %v2329 = vld [vmem:[#allocation6 + $0x358] sm:$0xff]
    %v2330 = vld [vmem:[#allocation6 + $0x360] sm:$0xff]
    %v2331 = vld [vmem:[#allocation6 + $0x368] sm:$0xff]
    %v2332 = vld [vmem:[#allocation6 + $0x370] sm:$0xff]
    %v2333 = vld [vmem:[#allocation6 + $0x378] sm:$0xff]
    %v2334 = vld [vmem:[#allocation6 + $0x380] sm:$0xff]
    %v2335 = vld [vmem:[#allocation6 + $0x388] sm:$0xff]
    %v2336 = vld [vmem:[#allocation6 + $0x390] sm:$0xff]
    %v2337 = vld [vmem:[#allocation6 + $0x398] sm:$0xff]
    %v2338 = vld [vmem:[#allocation6 + $0x3a0] sm:$0xff]
    %v2339 = vld [vmem:[#allocation6 + $0x3a8] sm:$0xff]
    %v2340 = vld [vmem:[#allocation6 + $0x3b0] sm:$0xff]
    %v2341 = vld [vmem:[#allocation6 + $0x3b8] sm:$0xff]
    %v2342 = vld [vmem:[#allocation6 + $0x3c0] sm:$0xff]
    %v2343 = vld [vmem:[#allocation6 + $0x3c8] sm:$0xff]
    %v2344 = vld [vmem:[#allocation6 + $0x3d0] sm:$0xff]
    %v2345 = vld [vmem:[#allocation6 + $0x3d8] sm:$0xff]
    %v2346 = vld [vmem:[#allocation6 + $0x3e0] sm:$0xff]
    %v2347 = vld [vmem:[#allocation6 + $0x3e8] sm:$0xff]
    %v2348 = vld [vmem:[#allocation6 + $0x3f0] sm:$0xff]
    %v2349 = vld [vmem:[#allocation6 + $0x3f8] sm:$0xff]
    %v2350 = vld [vmem:[%s6] sm:$0xf]
    %v2352 = vlaneseq
    %v2353 = vshrl.u32 %v2352, 7
    %v2354 = vsub.s32 0, %v2353
    %v2355 = vrot.slane %v2350, %v2354
    %v2356 = vlaneseq
    %v2357 = vshrl.u32 %v2356, 7
    %v2358 = vsub.s32 1, %v2357
    %v2359 = vrot.slane %v2350, %v2358
    %v2360 = vlaneseq
    %v2361 = vshrl.u32 %v2360, 7
    %v2362 = vsub.s32 2, %v2361
    %v2363 = vrot.slane %v2350, %v2362
    %v2364 = vlaneseq
    %v2365 = vshrl.u32 %v2364, 7
    %v2366 = vsub.s32 3, %v2365
    %v2367 = vrot.slane %v2350, %v2366
    %v2500 = vunpack.c.l.b16 %v2222
    %v2501 = vunpack.c.h.b16 %v2222
    %v2502 = vunpack.c.l.b16 %v2223
    %v2503 = vunpack.c.h.b16 %v2223
    %v2504 = vunpack.c.l.b16 %v2224
    %v2505 = vunpack.c.h.b16 %v2224
    %v2506 = vunpack.c.l.b16 %v2225
    %v2507 = vunpack.c.h.b16 %v2225
    %v2508 = vunpack.c.l.b16 %v2226
    %v2509 = vunpack.c.h.b16 %v2226
    %v2510 = vunpack.c.l.b16 %v2227
    %v2511 = vunpack.c.h.b16 %v2227
    %v2512 = vunpack.c.l.b16 %v2228
    %v2513 = vunpack.c.h.b16 %v2228
    %v2514 = vunpack.c.l.b16 %v2229
    %v2515 = vunpack.c.h.b16 %v2229
    %v2516 = vunpack.c.l.b16 %v2230
    %v2517 = vunpack.c.h.b16 %v2230
    %v2518 = vunpack.c.l.b16 %v2231
    %v2519 = vunpack.c.h.b16 %v2231
    %v2520 = vunpack.c.l.b16 %v2232
    %v2521 = vunpack.c.h.b16 %v2232
    %v2522 = vunpack.c.l.b16 %v2233
    %v2523 = vunpack.c.h.b16 %v2233
    %v2524 = vunpack.c.l.b16 %v2234
    %v2525 = vunpack.c.h.b16 %v2234
    %v2526 = vunpack.c.l.b16 %v2235
    %v2527 = vunpack.c.h.b16 %v2235
    %v2528 = vunpack.c.l.b16 %v2236
    %v2529 = vunpack.c.h.b16 %v2236
    %v2530 = vunpack.c.l.b16 %v2237
    %v2531 = vunpack.c.h.b16 %v2237
    %v2532 = vunpack.c.l.b16 %v2238
    %v2533 = vunpack.c.h.b16 %v2238
    %v2534 = vunpack.c.l.b16 %v2239
    %v2535 = vunpack.c.h.b16 %v2239
    %v2536 = vunpack.c.l.b16 %v2240
    %v2537 = vunpack.c.h.b16 %v2240
    %v2538 = vunpack.c.l.b16 %v2241
    %v2539 = vunpack.c.h.b16 %v2241
    %v2540 = vunpack.c.l.b16 %v2242
    %v2541 = vunpack.c.h.b16 %v2242
    %v2542 = vunpack.c.l.b16 %v2243
    %v2543 = vunpack.c.h.b16 %v2243
    %v2544 = vunpack.c.l.b16 %v2244
    %v2545 = vunpack.c.h.b16 %v2244
    %v2546 = vunpack.c.l.b16 %v2245
    %v2547 = vunpack.c.h.b16 %v2245
    %v2548 = vunpack.c.l.b16 %v2246
    %v2549 = vunpack.c.h.b16 %v2246
    %v2550 = vunpack.c.l.b16 %v2247
    %v2551 = vunpack.c.h.b16 %v2247
    %v2552 = vunpack.c.l.b16 %v2248
    %v2553 = vunpack.c.h.b16 %v2248
    %v2554 = vunpack.c.l.b16 %v2249
    %v2555 = vunpack.c.h.b16 %v2249
    %v2556 = vunpack.c.l.b16 %v2250
    %v2557 = vunpack.c.h.b16 %v2250
    %v2558 = vunpack.c.l.b16 %v2251
    %v2559 = vunpack.c.h.b16 %v2251
    %v2560 = vunpack.c.l.b16 %v2252
    %v2561 = vunpack.c.h.b16 %v2252
    %v2562 = vunpack.c.l.b16 %v2253
    %v2563 = vunpack.c.h.b16 %v2253
    %v2564 = vunpack.c.l.b16 %v2254
    %v2565 = vunpack.c.h.b16 %v2254
    %v2566 = vunpack.c.l.b16 %v2255
    %v2567 = vunpack.c.h.b16 %v2255
    %v2568 = vunpack.c.l.b16 %v2256
    %v2569 = vunpack.c.h.b16 %v2256
    %v2570 = vunpack.c.l.b16 %v2257
    %v2571 = vunpack.c.h.b16 %v2257
    %v2572 = vunpack.c.l.b16 %v2258
    %v2573 = vunpack.c.h.b16 %v2258
    %v2574 = vunpack.c.l.b16 %v2259
    %v2575 = vunpack.c.h.b16 %v2259
    %v2576 = vunpack.c.l.b16 %v2260
    %v2577 = vunpack.c.h.b16 %v2260
    %v2578 = vunpack.c.l.b16 %v2261
    %v2579 = vunpack.c.h.b16 %v2261
    %v2580 = vunpack.c.l.b16 %v2262
    %v2581 = vunpack.c.h.b16 %v2262
    %v2582 = vunpack.c.l.b16 %v2263
    %v2583 = vunpack.c.h.b16 %v2263
    %v2584 = vunpack.c.l.b16 %v2264
    %v2585 = vunpack.c.h.b16 %v2264
    %v2586 = vunpack.c.l.b16 %v2265
    %v2587 = vunpack.c.h.b16 %v2265
    %v2588 = vunpack.c.l.b16 %v2266
    %v2589 = vunpack.c.h.b16 %v2266
    %v2590 = vunpack.c.l.b16 %v2267
    %v2591 = vunpack.c.h.b16 %v2267
    %v2592 = vunpack.c.l.b16 %v2268
    %v2593 = vunpack.c.h.b16 %v2268
    %v2594 = vunpack.c.l.b16 %v2269
    %v2595 = vunpack.c.h.b16 %v2269
    %v2596 = vunpack.c.l.b16 %v2270
    %v2597 = vunpack.c.h.b16 %v2270
    %v2598 = vunpack.c.l.b16 %v2271
    %v2599 = vunpack.c.h.b16 %v2271
    %v2600 = vunpack.c.l.b16 %v2272
    %v2601 = vunpack.c.h.b16 %v2272
    %v2602 = vunpack.c.l.b16 %v2273
    %v2603 = vunpack.c.h.b16 %v2273
    %v2604 = vunpack.c.l.b16 %v2274
    %v2605 = vunpack.c.h.b16 %v2274
    %v2606 = vunpack.c.l.b16 %v2275
    %v2607 = vunpack.c.h.b16 %v2275
    %v2608 = vunpack.c.l.b16 %v2276
    %v2609 = vunpack.c.h.b16 %v2276
    %v2610 = vunpack.c.l.b16 %v2277
    %v2611 = vunpack.c.h.b16 %v2277
    %v2612 = vunpack.c.l.b16 %v2278
    %v2613 = vunpack.c.h.b16 %v2278
    %v2614 = vunpack.c.l.b16 %v2279
    %v2615 = vunpack.c.h.b16 %v2279
    %v2616 = vunpack.c.l.b16 %v2280
    %v2617 = vunpack.c.h.b16 %v2280
    %v2618 = vunpack.c.l.b16 %v2281
    %v2619 = vunpack.c.h.b16 %v2281
    %v2620 = vunpack.c.l.b16 %v2282
    %v2621 = vunpack.c.h.b16 %v2282
    %v2622 = vunpack.c.l.b16 %v2283
    %v2623 = vunpack.c.h.b16 %v2283
    %v2624 = vunpack.c.l.b16 %v2284
    %v2625 = vunpack.c.h.b16 %v2284
    %v2626 = vunpack.c.l.b16 %v2285
    %v2627 = vunpack.c.h.b16 %v2285
    %v2628 = vunpack.c.l.b16 %v2286
    %v2629 = vunpack.c.h.b16 %v2286
    %v2630 = vunpack.c.l.b16 %v2287
    %v2631 = vunpack.c.h.b16 %v2287
    %v2632 = vunpack.c.l.b16 %v2288
    %v2633 = vunpack.c.h.b16 %v2288
    %v2634 = vunpack.c.l.b16 %v2289
    %v2635 = vunpack.c.h.b16 %v2289
    %v2636 = vunpack.c.l.b16 %v2290
    %v2637 = vunpack.c.h.b16 %v2290
    %v2638 = vunpack.c.l.b16 %v2291
    %v2639 = vunpack.c.h.b16 %v2291
    %v2640 = vunpack.c.l.b16 %v2292
    %v2641 = vunpack.c.h.b16 %v2292
    %v2642 = vunpack.c.l.b16 %v2293
    %v2643 = vunpack.c.h.b16 %v2293
    %v2644 = vunpack.c.l.b16 %v2294
    %v2645 = vunpack.c.h.b16 %v2294
    %v2646 = vunpack.c.l.b16 %v2295
    %v2647 = vunpack.c.h.b16 %v2295
    %v2648 = vunpack.c.l.b16 %v2296
    %v2649 = vunpack.c.h.b16 %v2296
    %v2650 = vunpack.c.l.b16 %v2297
    %v2651 = vunpack.c.h.b16 %v2297
    %v2652 = vunpack.c.l.b16 %v2298
    %v2653 = vunpack.c.h.b16 %v2298
    %v2654 = vunpack.c.l.b16 %v2299
    %v2655 = vunpack.c.h.b16 %v2299
    %v2656 = vunpack.c.l.b16 %v2300
    %v2657 = vunpack.c.h.b16 %v2300
    %v2658 = vunpack.c.l.b16 %v2301
    %v2659 = vunpack.c.h.b16 %v2301
    %v2660 = vunpack.c.l.b16 %v2302
    %v2661 = vunpack.c.h.b16 %v2302
    %v2662 = vunpack.c.l.b16 %v2303
    %v2663 = vunpack.c.h.b16 %v2303
    %v2664 = vunpack.c.l.b16 %v2304
    %v2665 = vunpack.c.h.b16 %v2304
    %v2666 = vunpack.c.l.b16 %v2305
    %v2667 = vunpack.c.h.b16 %v2305
    %v2668 = vunpack.c.l.b16 %v2306
    %v2669 = vunpack.c.h.b16 %v2306
    %v2670 = vunpack.c.l.b16 %v2307
    %v2671 = vunpack.c.h.b16 %v2307
    %v2672 = vunpack.c.l.b16 %v2308
    %v2673 = vunpack.c.h.b16 %v2308
    %v2674 = vunpack.c.l.b16 %v2309
    %v2675 = vunpack.c.h.b16 %v2309
    %v2676 = vunpack.c.l.b16 %v2310
    %v2677 = vunpack.c.h.b16 %v2310
    %v2678 = vunpack.c.l.b16 %v2311
    %v2679 = vunpack.c.h.b16 %v2311
    %v2680 = vunpack.c.l.b16 %v2312
    %v2681 = vunpack.c.h.b16 %v2312
    %v2682 = vunpack.c.l.b16 %v2313
    %v2683 = vunpack.c.h.b16 %v2313
    %v2684 = vunpack.c.l.b16 %v2314
    %v2685 = vunpack.c.h.b16 %v2314
    %v2686 = vunpack.c.l.b16 %v2315
    %v2687 = vunpack.c.h.b16 %v2315
    %v2688 = vunpack.c.l.b16 %v2316
    %v2689 = vunpack.c.h.b16 %v2316
    %v2690 = vunpack.c.l.b16 %v2317
    %v2691 = vunpack.c.h.b16 %v2317
    %v2692 = vunpack.c.l.b16 %v2318
    %v2693 = vunpack.c.h.b16 %v2318
    %v2694 = vunpack.c.l.b16 %v2319
    %v2695 = vunpack.c.h.b16 %v2319
    %v2696 = vunpack.c.l.b16 %v2320
    %v2697 = vunpack.c.h.b16 %v2320
    %v2698 = vunpack.c.l.b16 %v2321
    %v2699 = vunpack.c.h.b16 %v2321
    %v2700 = vunpack.c.l.b16 %v2322
    %v2701 = vunpack.c.h.b16 %v2322
    %v2702 = vunpack.c.l.b16 %v2323
    %v2703 = vunpack.c.h.b16 %v2323
    %v2704 = vunpack.c.l.b16 %v2324
    %v2705 = vunpack.c.h.b16 %v2324
    %v2706 = vunpack.c.l.b16 %v2325
    %v2707 = vunpack.c.h.b16 %v2325
    %v2708 = vunpack.c.l.b16 %v2326
    %v2709 = vunpack.c.h.b16 %v2326
    %v2710 = vunpack.c.l.b16 %v2327
    %v2711 = vunpack.c.h.b16 %v2327
    %v2712 = vunpack.c.l.b16 %v2328
    %v2713 = vunpack.c.h.b16 %v2328
    %v2714 = vunpack.c.l.b16 %v2329
    %v2715 = vunpack.c.h.b16 %v2329
    %v2716 = vunpack.c.l.b16 %v2330
    %v2717 = vunpack.c.h.b16 %v2330
    %v2718 = vunpack.c.l.b16 %v2331
    %v2719 = vunpack.c.h.b16 %v2331
    %v2720 = vunpack.c.l.b16 %v2332
    %v2721 = vunpack.c.h.b16 %v2332
    %v2722 = vunpack.c.l.b16 %v2333
    %v2723 = vunpack.c.h.b16 %v2333
    %v2724 = vunpack.c.l.b16 %v2334
    %v2725 = vunpack.c.h.b16 %v2334
    %v2726 = vunpack.c.l.b16 %v2335
    %v2727 = vunpack.c.h.b16 %v2335
    %v2728 = vunpack.c.l.b16 %v2336
    %v2729 = vunpack.c.h.b16 %v2336
    %v2730 = vunpack.c.l.b16 %v2337
    %v2731 = vunpack.c.h.b16 %v2337
    %v2732 = vunpack.c.l.b16 %v2338
    %v2733 = vunpack.c.h.b16 %v2338
    %v2734 = vunpack.c.l.b16 %v2339
    %v2735 = vunpack.c.h.b16 %v2339
    %v2736 = vunpack.c.l.b16 %v2340
    %v2737 = vunpack.c.h.b16 %v2340
    %v2738 = vunpack.c.l.b16 %v2341
    %v2739 = vunpack.c.h.b16 %v2341
    %v2740 = vunpack.c.l.b16 %v2342
    %v2741 = vunpack.c.h.b16 %v2342
    %v2742 = vunpack.c.l.b16 %v2343
    %v2743 = vunpack.c.h.b16 %v2343
    %v2744 = vunpack.c.l.b16 %v2344
    %v2745 = vunpack.c.h.b16 %v2344
    %v2746 = vunpack.c.l.b16 %v2345
    %v2747 = vunpack.c.h.b16 %v2345
    %v2748 = vunpack.c.l.b16 %v2346
    %v2749 = vunpack.c.h.b16 %v2346
    %v2750 = vunpack.c.l.b16 %v2347
    %v2751 = vunpack.c.h.b16 %v2347
    %v2752 = vunpack.c.l.b16 %v2348
    %v2753 = vunpack.c.h.b16 %v2348
    %v2754 = vunpack.c.l.b16 %v2349
    %v2755 = vunpack.c.h.b16 %v2349
    %v2756 = vpack.c.b16 %v2504, %v2500
    %v2757 = vpack.c.b16 %v2505, %v2501
    %v2758 = vpack.c.b16 %v2506, %v2502
    %v2759 = vpack.c.b16 %v2507, %v2503
    %v2760 = vpack.c.b16 %v2512, %v2508
    %v2761 = vpack.c.b16 %v2513, %v2509
    %v2762 = vpack.c.b16 %v2514, %v2510
    %v2763 = vpack.c.b16 %v2515, %v2511
    %v2764 = vpack.c.b16 %v2520, %v2516
    %v2765 = vpack.c.b16 %v2521, %v2517
    %v2766 = vpack.c.b16 %v2522, %v2518
    %v2767 = vpack.c.b16 %v2523, %v2519
    %v2768 = vpack.c.b16 %v2528, %v2524
    %v2769 = vpack.c.b16 %v2529, %v2525
    %v2770 = vpack.c.b16 %v2530, %v2526
    %v2771 = vpack.c.b16 %v2531, %v2527
    %v2772 = vpack.c.b16 %v2536, %v2532
    %v2773 = vpack.c.b16 %v2537, %v2533
    %v2774 = vpack.c.b16 %v2538, %v2534
    %v2775 = vpack.c.b16 %v2539, %v2535
    %v2776 = vpack.c.b16 %v2544, %v2540
    %v2777 = vpack.c.b16 %v2545, %v2541
    %v2778 = vpack.c.b16 %v2546, %v2542
    %v2779 = vpack.c.b16 %v2547, %v2543
    %v2780 = vpack.c.b16 %v2552, %v2548
    %v2781 = vpack.c.b16 %v2553, %v2549
    %v2782 = vpack.c.b16 %v2554, %v2550
    %v2783 = vpack.c.b16 %v2555, %v2551
    %v2784 = vpack.c.b16 %v2560, %v2556
    %v2785 = vpack.c.b16 %v2561, %v2557
    %v2786 = vpack.c.b16 %v2562, %v2558
    %v2787 = vpack.c.b16 %v2563, %v2559
    %v2788 = vpack.c.b16 %v2568, %v2564
    %v2789 = vpack.c.b16 %v2569, %v2565
    %v2790 = vpack.c.b16 %v2570, %v2566
    %v2791 = vpack.c.b16 %v2571, %v2567
    %v2792 = vpack.c.b16 %v2576, %v2572
    %v2793 = vpack.c.b16 %v2577, %v2573
    %v2794 = vpack.c.b16 %v2578, %v2574
    %v2795 = vpack.c.b16 %v2579, %v2575
    %v2796 = vpack.c.b16 %v2584, %v2580
    %v2797 = vpack.c.b16 %v2585, %v2581
    %v2798 = vpack.c.b16 %v2586, %v2582
    %v2799 = vpack.c.b16 %v2587, %v2583
    %v2800 = vpack.c.b16 %v2592, %v2588
    %v2801 = vpack.c.b16 %v2593, %v2589
    %v2802 = vpack.c.b16 %v2594, %v2590
    %v2803 = vpack.c.b16 %v2595, %v2591
    %v2804 = vpack.c.b16 %v2600, %v2596
    %v2805 = vpack.c.b16 %v2601, %v2597
    %v2806 = vpack.c.b16 %v2602, %v2598
    %v2807 = vpack.c.b16 %v2603, %v2599
    %v2808 = vpack.c.b16 %v2608, %v2604
    %v2809 = vpack.c.b16 %v2609, %v2605
    %v2810 = vpack.c.b16 %v2610, %v2606
    %v2811 = vpack.c.b16 %v2611, %v2607
    %v2812 = vpack.c.b16 %v2616, %v2612
    %v2813 = vpack.c.b16 %v2617, %v2613
    %v2814 = vpack.c.b16 %v2618, %v2614
    %v2815 = vpack.c.b16 %v2619, %v2615
    %v2816 = vpack.c.b16 %v2624, %v2620
    %v2817 = vpack.c.b16 %v2625, %v2621
    %v2818 = vpack.c.b16 %v2626, %v2622
    %v2819 = vpack.c.b16 %v2627, %v2623
    %v2820 = vpack.c.b16 %v2632, %v2628
    %v2821 = vpack.c.b16 %v2633, %v2629
    %v2822 = vpack.c.b16 %v2634, %v2630
    %v2823 = vpack.c.b16 %v2635, %v2631
    %v2824 = vpack.c.b16 %v2640, %v2636
    %v2825 = vpack.c.b16 %v2641, %v2637
    %v2826 = vpack.c.b16 %v2642, %v2638
    %v2827 = vpack.c.b16 %v2643, %v2639
    %v2828 = vpack.c.b16 %v2648, %v2644
    %v2829 = vpack.c.b16 %v2649, %v2645
    %v2830 = vpack.c.b16 %v2650, %v2646
    %v2831 = vpack.c.b16 %v2651, %v2647
    %v2832 = vpack.c.b16 %v2656, %v2652
    %v2833 = vpack.c.b16 %v2657, %v2653
    %v2834 = vpack.c.b16 %v2658, %v2654
    %v2835 = vpack.c.b16 %v2659, %v2655
    %v2836 = vpack.c.b16 %v2664, %v2660
    %v2837 = vpack.c.b16 %v2665, %v2661
    %v2838 = vpack.c.b16 %v2666, %v2662
    %v2839 = vpack.c.b16 %v2667, %v2663
    %v2840 = vpack.c.b16 %v2672, %v2668
    %v2841 = vpack.c.b16 %v2673, %v2669
    %v2842 = vpack.c.b16 %v2674, %v2670
    %v2843 = vpack.c.b16 %v2675, %v2671
    %v2844 = vpack.c.b16 %v2680, %v2676
    %v2845 = vpack.c.b16 %v2681, %v2677
    %v2846 = vpack.c.b16 %v2682, %v2678
    %v2847 = vpack.c.b16 %v2683, %v2679
    %v2848 = vpack.c.b16 %v2688, %v2684
    %v2849 = vpack.c.b16 %v2689, %v2685
    %v2850 = vpack.c.b16 %v2690, %v2686
    %v2851 = vpack.c.b16 %v2691, %v2687
    %v2852 = vpack.c.b16 %v2696, %v2692
    %v2853 = vpack.c.b16 %v2697, %v2693
    %v2854 = vpack.c.b16 %v2698, %v2694
    %v2855 = vpack.c.b16 %v2699, %v2695
    %v2856 = vpack.c.b16 %v2704, %v2700
    %v2857 = vpack.c.b16 %v2705, %v2701
    %v2858 = vpack.c.b16 %v2706, %v2702
    %v2859 = vpack.c.b16 %v2707, %v2703
    %v2860 = vpack.c.b16 %v2712, %v2708
    %v2861 = vpack.c.b16 %v2713, %v2709
    %v2862 = vpack.c.b16 %v2714, %v2710
    %v2863 = vpack.c.b16 %v2715, %v2711
    %v2864 = vpack.c.b16 %v2720, %v2716
    %v2865 = vpack.c.b16 %v2721, %v2717
    %v2866 = vpack.c.b16 %v2722, %v2718
    %v2867 = vpack.c.b16 %v2723, %v2719
    %v2868 = vpack.c.b16 %v2728, %v2724
    %v2869 = vpack.c.b16 %v2729, %v2725
    %v2870 = vpack.c.b16 %v2730, %v2726
    %v2871 = vpack.c.b16 %v2731, %v2727
    %v2872 = vpack.c.b16 %v2736, %v2732
    %v2873 = vpack.c.b16 %v2737, %v2733
    %v2874 = vpack.c.b16 %v2738, %v2734
    %v2875 = vpack.c.b16 %v2739, %v2735
    %v2876 = vpack.c.b16 %v2744, %v2740
    %v2877 = vpack.c.b16 %v2745, %v2741
    %v2878 = vpack.c.b16 %v2746, %v2742
    %v2879 = vpack.c.b16 %v2747, %v2743
    %v2880 = vpack.c.b16 %v2752, %v2748
    %v2881 = vpack.c.b16 %v2753, %v2749
    %v2882 = vpack.c.b16 %v2754, %v2750
    %v2883 = vpack.c.b16 %v2755, %v2751
    %3012 = vmatprep.subr.bf16.mxu0 %v2785
    %3013 = vmatpush1.bf16.msra.mxu0 %v2784
    %3014 = vmatprep.subr.bf16.mxu0 %v2781
    %3015 = vmatpush1.bf16.msra.mxu0 %v2780
    %3016 = vmatprep.subr.bf16.mxu0 %v2777
    %3017 = vmatpush1.bf16.msra.mxu0 %v2776
    %3018 = vmatprep.subr.bf16.mxu0 %v2773
    %3019 = vmatpush1.bf16.msra.mxu0 %v2772
    %3020 = vmatprep.subr.bf16.mxu0 %v2769
    %3021 = vmatpush1.bf16.msra.mxu0 %v2768
    %3022 = vmatprep.subr.bf16.mxu0 %v2765
    %3023 = vmatpush1.bf16.msra.mxu0 %v2764
    %3024 = vmatprep.subr.bf16.mxu0 %v2761
    %3025 = vmatpush1.bf16.msra.mxu0 %v2760
    %3026 = vmatprep.subr.bf16.mxu0 %v2757
    %3027 = vmatpush1.bf16.msra.mxu0 %v2756
    %3028 = vmatprep.subr.bf16.mxu0 %v2817
    %3029 = vmatpush2.bf16.msra.mxu0 %v2816
    %3030 = vmatprep.subr.bf16.mxu0 %v2813
    %3031 = vmatpush2.bf16.msra.mxu0 %v2812
    %3032 = vmatprep.subr.bf16.mxu0 %v2809
    %3033 = vmatpush2.bf16.msra.mxu0 %v2808
    %3034 = vmatprep.subr.bf16.mxu0 %v2805
    %3035 = vmatpush2.bf16.msra.mxu0 %v2804
    %3036 = vmatprep.subr.bf16.mxu0 %v2801
    %3037 = vmatpush2.bf16.msra.mxu0 %v2800
    %3038 = vmatprep.subr.bf16.mxu0 %v2797
    %3039 = vmatpush2.bf16.msra.mxu0 %v2796
    %3040 = vmatprep.subr.bf16.mxu0 %v2793
    %3041 = vmatpush2.bf16.msra.mxu0 %v2792
    %3042 = vmatprep.subr.bf16.mxu0 %v2789
    %3043 = vmatpush2.bf16.msra.mxu0 %v2788
    %3044 = vmatprep.mubr.bf16.mxu0 %v2207
    %3045 = vmatmul.mubr.bf16.gmra.mxu0 %v2206
    %v3046 = vpop.f32.mrf.mxu0
    %v3047 = vadd.f32 %v2355, %v3046
    %v3048 = vpop.f32.mrf.mxu0
    %v3049 = vadd.f32 %v2359, %v3048
    %v3050 = vpop.f32.mrf.mxu0
    %v3051 = vadd.f32 %v2355, %v3050
    %v3052 = vpop.f32.mrf.mxu0
    %v3053 = vadd.f32 %v2359, %v3052
    %3054 = vmatprep.mubr.bf16.mxu0 %v2211
    %3055 = vmatmul.mubr.bf16.gmra.mxu0 %v2210
    %v3056 = vpop.f32.mrf.mxu0
    %v3057 = vadd.f32 %v2355, %v3056
    %v3058 = vpop.f32.mrf.mxu0
    %v3059 = vadd.f32 %v2359, %v3058
    %v3060 = vpop.f32.mrf.mxu0
    %v3061 = vadd.f32 %v2355, %v3060
    %v3062 = vpop.f32.mrf.mxu0
    %v3063 = vadd.f32 %v2359, %v3062
    %3064 = vmatprep.mubr.bf16.mxu0 %v2215
    %3065 = vmatmul.mubr.bf16.gmra.mxu0 %v2214
    %v3066 = vpop.f32.mrf.mxu0
    %v3067 = vadd.f32 %v2355, %v3066
    %v3068 = vpop.f32.mrf.mxu0
    %v3069 = vadd.f32 %v2359, %v3068
    %v3070 = vpop.f32.mrf.mxu0
    %v3071 = vadd.f32 %v2355, %v3070
    %v3072 = vpop.f32.mrf.mxu0
    %v3073 = vadd.f32 %v2359, %v3072
    %3074 = vmatprep.mubr.bf16.mxu0 %v2219
    %3075 = vmatmul.mubr.bf16.gmra.mxu0 %v2218
    %v3076 = vpop.f32.mrf.mxu0
    %v3077 = vadd.f32 %v2355, %v3076
    %v3078 = vpop.f32.mrf.mxu0
    %v3079 = vadd.f32 %v2359, %v3078
    %v3080 = vpop.f32.mrf.mxu0
    %v3081 = vadd.f32 %v2355, %v3080
    %v3082 = vpop.f32.mrf.mxu0
    %v3083 = vadd.f32 %v2359, %v3082
    %3084 = vdwg.mxu0
    %3085 = vmatprep.subr.bf16.mxu0 %v2849
    %3086 = vmatpush1.bf16.msra.mxu0 %v2848
    %3087 = vmatprep.subr.bf16.mxu0 %v2845
    %3088 = vmatpush1.bf16.msra.mxu0 %v2844
    %3089 = vmatprep.subr.bf16.mxu0 %v2841
    %3090 = vmatpush1.bf16.msra.mxu0 %v2840
    %3091 = vmatprep.subr.bf16.mxu0 %v2837
    %3092 = vmatpush1.bf16.msra.mxu0 %v2836
    %3093 = vmatprep.subr.bf16.mxu0 %v2833
    %3094 = vmatpush1.bf16.msra.mxu0 %v2832
    %3095 = vmatprep.subr.bf16.mxu0 %v2829
    %3096 = vmatpush1.bf16.msra.mxu0 %v2828
    %3097 = vmatprep.subr.bf16.mxu0 %v2825
    %3098 = vmatpush1.bf16.msra.mxu0 %v2824
    %3099 = vmatprep.subr.bf16.mxu0 %v2821
    %3100 = vmatpush1.bf16.msra.mxu0 %v2820
    %3101 = vmatprep.subr.bf16.mxu0 %v2881
    %3102 = vmatpush2.bf16.msra.mxu0 %v2880
    %3103 = vmatprep.subr.bf16.mxu0 %v2877
    %3104 = vmatpush2.bf16.msra.mxu0 %v2876
    %3105 = vmatprep.subr.bf16.mxu0 %v2873
    %3106 = vmatpush2.bf16.msra.mxu0 %v2872
    %3107 = vmatprep.subr.bf16.mxu0 %v2869
    %3108 = vmatpush2.bf16.msra.mxu0 %v2868
    %3109 = vmatprep.subr.bf16.mxu0 %v2865
    %3110 = vmatpush2.bf16.msra.mxu0 %v2864
    %3111 = vmatprep.subr.bf16.mxu0 %v2861
    %3112 = vmatpush2.bf16.msra.mxu0 %v2860
    %3113 = vmatprep.subr.bf16.mxu0 %v2857
    %3114 = vmatpush2.bf16.msra.mxu0 %v2856
    %3115 = vmatprep.subr.bf16.mxu0 %v2853
    %3116 = vmatpush2.bf16.msra.mxu0 %v2852
    %3117 = vmatprep.mubr.bf16.mxu0 %v2209
    %3118 = vmatmul.mubr.bf16.gmra.mxu0 %v2208
    %v3119 = vpop.f32.mrf.mxu0
    %v3120 = vadd.f32 %v3047, %v3119
    %v3121 = vpop.f32.mrf.mxu0
    %v3122 = vadd.f32 %v3049, %v3121
    %v3123 = vpop.f32.mrf.mxu0
    %v3124 = vadd.f32 %v3051, %v3123
    %v3125 = vpop.f32.mrf.mxu0
    %v3126 = vadd.f32 %v3053, %v3125
    %3127 = vmatprep.mubr.bf16.mxu0 %v2213
    %3128 = vmatmul.mubr.bf16.gmra.mxu0 %v2212
    %v3129 = vpop.f32.mrf.mxu0
    %v3130 = vadd.f32 %v3057, %v3129
    %v3131 = vpop.f32.mrf.mxu0
    %v3132 = vadd.f32 %v3059, %v3131
    %v3133 = vpop.f32.mrf.mxu0
    %v3134 = vadd.f32 %v3061, %v3133
    %v3135 = vpop.f32.mrf.mxu0
    %v3136 = vadd.f32 %v3063, %v3135
    %3137 = vmatprep.mubr.bf16.mxu0 %v2217
    %3138 = vmatmul.mubr.bf16.gmra.mxu0 %v2216
    %v3139 = vpop.f32.mrf.mxu0
    %v3140 = vadd.f32 %v3067, %v3139
    %v3141 = vpop.f32.mrf.mxu0
    %v3142 = vadd.f32 %v3069, %v3141
    %v3143 = vpop.f32.mrf.mxu0
    %v3144 = vadd.f32 %v3071, %v3143
    %v3145 = vpop.f32.mrf.mxu0
    %v3146 = vadd.f32 %v3073, %v3145
    %3147 = vmatprep.mubr.bf16.mxu0 %v2221
    %3148 = vmatmul.mubr.bf16.gmra.mxu0 %v2220
    %v3149 = vpop.f32.mrf.mxu0
    %v3150 = vadd.f32 %v3077, %v3149
    %v3151 = vpop.f32.mrf.mxu0
    %v3152 = vadd.f32 %v3079, %v3151
    %v3153 = vpop.f32.mrf.mxu0
    %v3154 = vadd.f32 %v3081, %v3153
    %v3155 = vpop.f32.mrf.mxu0
    %v3156 = vadd.f32 %v3083, %v3155
    %3157 = vdwg.mxu0
    %3158 = vmatprep.subr.bf16.mxu0 %v2787
    %3159 = vmatpush1.bf16.msra.mxu0 %v2786
    %3160 = vmatprep.subr.bf16.mxu0 %v2783
    %3161 = vmatpush1.bf16.msra.mxu0 %v2782
    %3162 = vmatprep.subr.bf16.mxu0 %v2779
    %3163 = vmatpush1.bf16.msra.mxu0 %v2778
    %3164 = vmatprep.subr.bf16.mxu0 %v2775
    %3165 = vmatpush1.bf16.msra.mxu0 %v2774
    %3166 = vmatprep.subr.bf16.mxu0 %v2771
    %3167 = vmatpush1.bf16.msra.mxu0 %v2770
    %3168 = vmatprep.subr.bf16.mxu0 %v2767
    %3169 = vmatpush1.bf16.msra.mxu0 %v2766
    %3170 = vmatprep.subr.bf16.mxu0 %v2763
    %3171 = vmatpush1.bf16.msra.mxu0 %v2762
    %3172 = vmatprep.subr.bf16.mxu0 %v2759
    %3173 = vmatpush1.bf16.msra.mxu0 %v2758
    %3174 = vmatprep.subr.bf16.mxu0 %v2819
    %3175 = vmatpush2.bf16.msra.mxu0 %v2818
    %3176 = vmatprep.subr.bf16.mxu0 %v2815
    %3177 = vmatpush2.bf16.msra.mxu0 %v2814
    %3178 = vmatprep.subr.bf16.mxu0 %v2811
    %3179 = vmatpush2.bf16.msra.mxu0 %v2810
    %3180 = vmatprep.subr.bf16.mxu0 %v2807
    %3181 = vmatpush2.bf16.msra.mxu0 %v2806
    %3182 = vmatprep.subr.bf16.mxu0 %v2803
    %3183 = vmatpush2.bf16.msra.mxu0 %v2802
    %3184 = vmatprep.subr.bf16.mxu0 %v2799
    %3185 = vmatpush2.bf16.msra.mxu0 %v2798
    %3186 = vmatprep.subr.bf16.mxu0 %v2795
    %3187 = vmatpush2.bf16.msra.mxu0 %v2794
    %3188 = vmatprep.subr.bf16.mxu0 %v2791
    %3189 = vmatpush2.bf16.msra.mxu0 %v2790
    %3190 = vmatprep.mubr.bf16.mxu0 %v2207
    %3191 = vmatmul.mubr.bf16.gmra.mxu0 %v2206
    %v3192 = vpop.f32.mrf.mxu0
    %v3193 = vadd.f32 %v2363, %v3192
    %v3194 = vpop.f32.mrf.mxu0
    %v3195 = vadd.f32 %v2367, %v3194
    %v3196 = vpop.f32.mrf.mxu0
    %v3197 = vadd.f32 %v2363, %v3196
    %v3198 = vpop.f32.mrf.mxu0
    %v3199 = vadd.f32 %v2367, %v3198
    %3200 = vmatprep.mubr.bf16.mxu0 %v2211
    %3201 = vmatmul.mubr.bf16.gmra.mxu0 %v2210
    %v3202 = vpop.f32.mrf.mxu0
    %v3203 = vadd.f32 %v2363, %v3202
    %v3204 = vpop.f32.mrf.mxu0
    %v3205 = vadd.f32 %v2367, %v3204
    %v3206 = vpop.f32.mrf.mxu0
    %v3207 = vadd.f32 %v2363, %v3206
    %v3208 = vpop.f32.mrf.mxu0
    %v3209 = vadd.f32 %v2367, %v3208
    %3210 = vmatprep.mubr.bf16.mxu0 %v2215
    %3211 = vmatmul.mubr.bf16.gmra.mxu0 %v2214
    %v3212 = vpop.f32.mrf.mxu0
    %v3213 = vadd.f32 %v2363, %v3212
    %v3214 = vpop.f32.mrf.mxu0
    %v3215 = vadd.f32 %v2367, %v3214
    %v3216 = vpop.f32.mrf.mxu0
    %v3217 = vadd.f32 %v2363, %v3216
    %v3218 = vpop.f32.mrf.mxu0
    %v3219 = vadd.f32 %v2367, %v3218
    %3220 = vmatprep.mubr.bf16.mxu0 %v2219
    %3221 = vmatmul.mubr.bf16.gmra.mxu0 %v2218
    %v3222 = vpop.f32.mrf.mxu0
    %v3223 = vadd.f32 %v2363, %v3222
    %v3224 = vpop.f32.mrf.mxu0
    %v3225 = vadd.f32 %v2367, %v3224
    %v3226 = vpop.f32.mrf.mxu0
    %v3227 = vadd.f32 %v2363, %v3226
    %v3228 = vpop.f32.mrf.mxu0
    %v3229 = vadd.f32 %v2367, %v3228
    %3230 = vdwg.mxu0
    %3231 = vmatprep.subr.bf16.mxu0 %v2851
    %3232 = vmatpush1.bf16.msra.mxu0 %v2850
    %3233 = vmatprep.subr.bf16.mxu0 %v2847
    %3234 = vmatpush1.bf16.msra.mxu0 %v2846
    %3235 = vmatprep.subr.bf16.mxu0 %v2843
    %3236 = vmatpush1.bf16.msra.mxu0 %v2842
    %3237 = vmatprep.subr.bf16.mxu0 %v2839
    %3238 = vmatpush1.bf16.msra.mxu0 %v2838
    %3239 = vmatprep.subr.bf16.mxu0 %v2835
    %3240 = vmatpush1.bf16.msra.mxu0 %v2834
    %3241 = vmatprep.subr.bf16.mxu0 %v2831
    %3242 = vmatpush1.bf16.msra.mxu0 %v2830
    %3243 = vmatprep.subr.bf16.mxu0 %v2827
    %3244 = vmatpush1.bf16.msra.mxu0 %v2826
    %3245 = vmatprep.subr.bf16.mxu0 %v2823
    %3246 = vmatpush1.bf16.msra.mxu0 %v2822
    %3247 = vmatprep.subr.bf16.mxu0 %v2883
    %3248 = vmatpush2.bf16.msra.mxu0 %v2882
    %3249 = vmatprep.subr.bf16.mxu0 %v2879
    %3250 = vmatpush2.bf16.msra.mxu0 %v2878
    %3251 = vmatprep.subr.bf16.mxu0 %v2875
    %3252 = vmatpush2.bf16.msra.mxu0 %v2874
    %3253 = vmatprep.subr.bf16.mxu0 %v2871
    %3254 = vmatpush2.bf16.msra.mxu0 %v2870
    %3255 = vmatprep.subr.bf16.mxu0 %v2867
    %3256 = vmatpush2.bf16.msra.mxu0 %v2866
    %3257 = vmatprep.subr.bf16.mxu0 %v2863
    %3258 = vmatpush2.bf16.msra.mxu0 %v2862
    %3259 = vmatprep.subr.bf16.mxu0 %v2859
    %3260 = vmatpush2.bf16.msra.mxu0 %v2858
    %3261 = vmatprep.subr.bf16.mxu0 %v2855
    %3262 = vmatpush2.bf16.msra.mxu0 %v2854
    %3263 = vmatprep.mubr.bf16.mxu0 %v2209
    %3264 = vmatmul.mubr.bf16.gmra.mxu0 %v2208
    %v3265 = vpop.f32.mrf.mxu0
    %v3266 = vadd.f32 %v3193, %v3265
    %v3267 = vpop.f32.mrf.mxu0
    %v3268 = vadd.f32 %v3195, %v3267
    %v3269 = vpop.f32.mrf.mxu0
    %v3270 = vadd.f32 %v3197, %v3269
    %v3271 = vpop.f32.mrf.mxu0
    %v3272 = vadd.f32 %v3199, %v3271
    %3273 = vmatprep.mubr.bf16.mxu0 %v2213
    %3274 = vmatmul.mubr.bf16.gmra.mxu0 %v2212
    %v3275 = vpop.f32.mrf.mxu0
    %v3276 = vadd.f32 %v3203, %v3275
    %v3277 = vpop.f32.mrf.mxu0
    %v3278 = vadd.f32 %v3205, %v3277
    %v3279 = vpop.f32.mrf.mxu0
    %v3280 = vadd.f32 %v3207, %v3279
    %v3281 = vpop.f32.mrf.mxu0
    %v3282 = vadd.f32 %v3209, %v3281
    %3283 = vmatprep.mubr.bf16.mxu0 %v2217
    %3284 = vmatmul.mubr.bf16.gmra.mxu0 %v2216
    %v3285 = vpop.f32.mrf.mxu0
    %v3286 = vadd.f32 %v3213, %v3285
    %v3287 = vpop.f32.mrf.mxu0
    %v3288 = vadd.f32 %v3215, %v3287
    %v3289 = vpop.f32.mrf.mxu0
    %v3290 = vadd.f32 %v3217, %v3289
    %v3291 = vpop.f32.mrf.mxu0
    %v3292 = vadd.f32 %v3219, %v3291
    %3293 = vmatprep.mubr.bf16.mxu0 %v2221
    %3294 = vmatmul.mubr.bf16.gmra.mxu0 %v2220
    %v3295 = vpop.f32.mrf.mxu0
    %v3296 = vadd.f32 %v3223, %v3295
    %v3297 = vpop.f32.mrf.mxu0
    %v3298 = vadd.f32 %v3225, %v3297
    %v3299 = vpop.f32.mrf.mxu0
    %v3300 = vadd.f32 %v3227, %v3299
    %v3301 = vpop.f32.mrf.mxu0
    %v3302 = vadd.f32 %v3229, %v3301
    %3303 = vdwg.mxu0
    %v3304 = vtanh.pop %v3120
    %v3305 = vtanh.pop %v3122
    %v3306 = vtanh.pop %v3266
    %v3307 = vtanh.pop %v3268
    %v3308 = vtanh.pop %v3124
    %v3309 = vtanh.pop %v3126
    %v3310 = vtanh.pop %v3270
    %v3311 = vtanh.pop %v3272
    %v3312 = vtanh.pop %v3130
    %v3313 = vtanh.pop %v3132
    %v3314 = vtanh.pop %v3276
    %v3315 = vtanh.pop %v3278
    %v3316 = vtanh.pop %v3134
    %v3317 = vtanh.pop %v3136
    %v3318 = vtanh.pop %v3280
    %v3319 = vtanh.pop %v3282
    %v3320 = vtanh.pop %v3140
    %v3321 = vtanh.pop %v3142
    %v3322 = vtanh.pop %v3286
    %v3323 = vtanh.pop %v3288
    %v3324 = vtanh.pop %v3144
    %v3325 = vtanh.pop %v3146
    %v3326 = vtanh.pop %v3290
    %v3327 = vtanh.pop %v3292
    %v3328 = vtanh.pop %v3150
    %v3329 = vtanh.pop %v3152
    %v3330 = vtanh.pop %v3296
    %v3331 = vtanh.pop %v3298
    %v3332 = vtanh.pop %v3154
    %v3333 = vtanh.pop %v3156
    %v3334 = vtanh.pop %v3300
    %v3335 = vtanh.pop %v3302
    %v3336 = vpack.c.bf16 %v3308, %v3304
    %v3337 = vpack.c.bf16 %v3309, %v3305
    %v3338 = vpack.c.bf16 %v3310, %v3306
    %v3339 = vpack.c.bf16 %v3311, %v3307
    %v3340 = vpack.c.bf16 %v3316, %v3312
    %v3341 = vpack.c.bf16 %v3317, %v3313
    %v3342 = vpack.c.bf16 %v3318, %v3314
    %v3343 = vpack.c.bf16 %v3319, %v3315
    %v3344 = vpack.c.bf16 %v3324, %v3320
    %v3345 = vpack.c.bf16 %v3325, %v3321
    %v3346 = vpack.c.bf16 %v3326, %v3322
    %v3347 = vpack.c.bf16 %v3327, %v3323
    %v3348 = vpack.c.bf16 %v3332, %v3328
    %v3349 = vpack.c.bf16 %v3333, %v3329
    %v3350 = vpack.c.bf16 %v3334, %v3330
    %v3351 = vpack.c.bf16 %v3335, %v3331
    %v3352 = vld [vmem:[%s7] sm:$0xf]
    %v3353 = vld [vmem:[%s7 + $0x4] sm:$0xf]
    %v3354 = vld [vmem:[%s7 + $0x8] sm:$0xf]
    %v3355 = vld [vmem:[%s7 + $0xc] sm:$0xf]
    %v3356 = vld [vmem:[%s7 + $0x10] sm:$0xf]
    %v3357 = vld [vmem:[%s7 + $0x14] sm:$0xf]
    %v3358 = vld [vmem:[%s7 + $0x18] sm:$0xf]
    %v3359 = vld [vmem:[%s7 + $0x1c] sm:$0xf]
    %v3360 = vld [vmem:[%s7 + $0x20] sm:$0xf]
    %v3361 = vld [vmem:[%s7 + $0x24] sm:$0xf]
    %v3362 = vld [vmem:[%s7 + $0x28] sm:$0xf]
    %v3363 = vld [vmem:[%s7 + $0x2c] sm:$0xf]
    %v3364 = vld [vmem:[%s7 + $0x30] sm:$0xf]
    %v3365 = vld [vmem:[%s7 + $0x34] sm:$0xf]
    %v3366 = vld [vmem:[%s7 + $0x38] sm:$0xf]
    %v3367 = vld [vmem:[%s7 + $0x3c] sm:$0xf]
    %v3368 = vld [vmem:[%s7 + $0x40] sm:$0xf]
    %v3369 = vld [vmem:[%s7 + $0x44] sm:$0xf]
    %v3370 = vld [vmem:[%s7 + $0x48] sm:$0xf]
    %v3371 = vld [vmem:[%s7 + $0x4c] sm:$0xf]
    %v3372 = vld [vmem:[%s7 + $0x50] sm:$0xf]
    %v3373 = vld [vmem:[%s7 + $0x54] sm:$0xf]
    %v3374 = vld [vmem:[%s7 + $0x58] sm:$0xf]
    %v3375 = vld [vmem:[%s7 + $0x5c] sm:$0xf]
    %v3376 = vld [vmem:[%s7 + $0x60] sm:$0xf]
    %v3377 = vld [vmem:[%s7 + $0x64] sm:$0xf]
    %v3378 = vld [vmem:[%s7 + $0x68] sm:$0xf]
    %v3379 = vld [vmem:[%s7 + $0x6c] sm:$0xf]
    %v3380 = vld [vmem:[%s7 + $0x70] sm:$0xf]
    %v3381 = vld [vmem:[%s7 + $0x74] sm:$0xf]
    %v3382 = vld [vmem:[%s7 + $0x78] sm:$0xf]
    %v3383 = vld [vmem:[%s7 + $0x7c] sm:$0xf]
    %v3384 = vld [vmem:[%s7 + $0x80] sm:$0xf]
    %v3385 = vld [vmem:[%s7 + $0x84] sm:$0xf]
    %v3386 = vld [vmem:[%s7 + $0x88] sm:$0xf]
    %v3387 = vld [vmem:[%s7 + $0x8c] sm:$0xf]
    %v3388 = vld [vmem:[%s7 + $0x90] sm:$0xf]
    %v3389 = vld [vmem:[%s7 + $0x94] sm:$0xf]
    %v3390 = vld [vmem:[%s7 + $0x98] sm:$0xf]
    %v3391 = vld [vmem:[%s7 + $0x9c] sm:$0xf]
    %v3392 = vld [vmem:[%s7 + $0xa0] sm:$0xf]
    %v3393 = vld [vmem:[%s7 + $0xa4] sm:$0xf]
    %v3394 = vld [vmem:[%s7 + $0xa8] sm:$0xf]
    %v3395 = vld [vmem:[%s7 + $0xac] sm:$0xf]
    %v3396 = vld [vmem:[%s7 + $0xb0] sm:$0xf]
    %v3397 = vld [vmem:[%s7 + $0xb4] sm:$0xf]
    %v3398 = vld [vmem:[%s7 + $0xb8] sm:$0xf]
    %v3399 = vld [vmem:[%s7 + $0xbc] sm:$0xf]
    %v3400 = vld [vmem:[%s7 + $0xc0] sm:$0xf]
    %v3401 = vld [vmem:[%s7 + $0xc4] sm:$0xf]
    %v3402 = vld [vmem:[%s7 + $0xc8] sm:$0xf]
    %v3403 = vld [vmem:[%s7 + $0xcc] sm:$0xf]
    %v3404 = vld [vmem:[%s7 + $0xd0] sm:$0xf]
    %v3405 = vld [vmem:[%s7 + $0xd4] sm:$0xf]
    %v3406 = vld [vmem:[%s7 + $0xd8] sm:$0xf]
    %v3407 = vld [vmem:[%s7 + $0xdc] sm:$0xf]
    %v3408 = vld [vmem:[%s7 + $0xe0] sm:$0xf]
    %v3409 = vld [vmem:[%s7 + $0xe4] sm:$0xf]
    %v3410 = vld [vmem:[%s7 + $0xe8] sm:$0xf]
    %v3411 = vld [vmem:[%s7 + $0xec] sm:$0xf]
    %v3412 = vld [vmem:[%s7 + $0xf0] sm:$0xf]
    %v3413 = vld [vmem:[%s7 + $0xf4] sm:$0xf]
    %v3414 = vld [vmem:[%s7 + $0xf8] sm:$0xf]
    %v3415 = vld [vmem:[%s7 + $0xfc] sm:$0xf]
    %v3416 = vld [vmem:[%s8] sm:$0x1]
    %v3418 = vlaneseq
    %v3419 = vshrl.u32 %v3418, 7
    %v3420 = vsub.s32 0, %v3419
    %v3421 = vrot.slane %v3416, %v3420
    %v3487 = vunpack.c.l.b16 %v3352
    %v3488 = vunpack.c.l.b16 %v3353
    %v3489 = vunpack.c.l.b16 %v3354
    %v3490 = vunpack.c.l.b16 %v3355
    %v3491 = vunpack.c.l.b16 %v3356
    %v3492 = vunpack.c.l.b16 %v3357
    %v3493 = vunpack.c.l.b16 %v3358
    %v3494 = vunpack.c.l.b16 %v3359
    %v3495 = vunpack.c.l.b16 %v3360
    %v3496 = vunpack.c.l.b16 %v3361
    %v3497 = vunpack.c.l.b16 %v3362
    %v3498 = vunpack.c.l.b16 %v3363
    %v3499 = vunpack.c.l.b16 %v3364
    %v3500 = vunpack.c.l.b16 %v3365
    %v3501 = vunpack.c.l.b16 %v3366
    %v3502 = vunpack.c.l.b16 %v3367
    %v3503 = vunpack.c.l.b16 %v3368
    %v3504 = vunpack.c.l.b16 %v3369
    %v3505 = vunpack.c.l.b16 %v3370
    %v3506 = vunpack.c.l.b16 %v3371
    %v3507 = vunpack.c.l.b16 %v3372
    %v3508 = vunpack.c.l.b16 %v3373
    %v3509 = vunpack.c.l.b16 %v3374
    %v3510 = vunpack.c.l.b16 %v3375
    %v3511 = vunpack.c.l.b16 %v3376
    %v3512 = vunpack.c.l.b16 %v3377
    %v3513 = vunpack.c.l.b16 %v3378
    %v3514 = vunpack.c.l.b16 %v3379
    %v3515 = vunpack.c.l.b16 %v3380
    %v3516 = vunpack.c.l.b16 %v3381
    %v3517 = vunpack.c.l.b16 %v3382
    %v3518 = vunpack.c.l.b16 %v3383
    %v3519 = vunpack.c.l.b16 %v3384
    %v3520 = vunpack.c.l.b16 %v3385
    %v3521 = vunpack.c.l.b16 %v3386
    %v3522 = vunpack.c.l.b16 %v3387
    %v3523 = vunpack.c.l.b16 %v3388
    %v3524 = vunpack.c.l.b16 %v3389
    %v3525 = vunpack.c.l.b16 %v3390
    %v3526 = vunpack.c.l.b16 %v3391
    %v3527 = vunpack.c.l.b16 %v3392
    %v3528 = vunpack.c.l.b16 %v3393
    %v3529 = vunpack.c.l.b16 %v3394
    %v3530 = vunpack.c.l.b16 %v3395
    %v3531 = vunpack.c.l.b16 %v3396
    %v3532 = vunpack.c.l.b16 %v3397
    %v3533 = vunpack.c.l.b16 %v3398
    %v3534 = vunpack.c.l.b16 %v3399
    %v3535 = vunpack.c.l.b16 %v3400
    %v3536 = vunpack.c.l.b16 %v3401
    %v3537 = vunpack.c.l.b16 %v3402
    %v3538 = vunpack.c.l.b16 %v3403
    %v3539 = vunpack.c.l.b16 %v3404
    %v3540 = vunpack.c.l.b16 %v3405
    %v3541 = vunpack.c.l.b16 %v3406
    %v3542 = vunpack.c.l.b16 %v3407
    %v3543 = vunpack.c.l.b16 %v3408
    %v3544 = vunpack.c.l.b16 %v3409
    %v3545 = vunpack.c.l.b16 %v3410
    %v3546 = vunpack.c.l.b16 %v3411
    %v3547 = vunpack.c.l.b16 %v3412
    %v3548 = vunpack.c.l.b16 %v3413
    %v3549 = vunpack.c.l.b16 %v3414
    %v3550 = vunpack.c.l.b16 %v3415
    %v3551 = vpack.c.b16 %v3488, %v3487
    %v3552 = vpack.c.b16 %v3490, %v3489
    %v3553 = vpack.c.b16 %v3492, %v3491
    %v3554 = vpack.c.b16 %v3494, %v3493
    %v3555 = vpack.c.b16 %v3496, %v3495
    %v3556 = vpack.c.b16 %v3498, %v3497
    %v3557 = vpack.c.b16 %v3500, %v3499
    %v3558 = vpack.c.b16 %v3502, %v3501
    %v3559 = vpack.c.b16 %v3504, %v3503
    %v3560 = vpack.c.b16 %v3506, %v3505
    %v3561 = vpack.c.b16 %v3508, %v3507
    %v3562 = vpack.c.b16 %v3510, %v3509
    %v3563 = vpack.c.b16 %v3512, %v3511
    %v3564 = vpack.c.b16 %v3514, %v3513
    %v3565 = vpack.c.b16 %v3516, %v3515
    %v3566 = vpack.c.b16 %v3518, %v3517
    %v3567 = vpack.c.b16 %v3520, %v3519
    %v3568 = vpack.c.b16 %v3522, %v3521
    %v3569 = vpack.c.b16 %v3524, %v3523
    %v3570 = vpack.c.b16 %v3526, %v3525
    %v3571 = vpack.c.b16 %v3528, %v3527
    %v3572 = vpack.c.b16 %v3530, %v3529
    %v3573 = vpack.c.b16 %v3532, %v3531
    %v3574 = vpack.c.b16 %v3534, %v3533
    %v3575 = vpack.c.b16 %v3536, %v3535
    %v3576 = vpack.c.b16 %v3538, %v3537
    %v3577 = vpack.c.b16 %v3540, %v3539
    %v3578 = vpack.c.b16 %v3542, %v3541
    %v3579 = vpack.c.b16 %v3544, %v3543
    %v3580 = vpack.c.b16 %v3546, %v3545
    %v3581 = vpack.c.b16 %v3548, %v3547
    %v3582 = vpack.c.b16 %v3550, %v3549
    %3615 = vmatprep.subr.bf16.mxu0 0
    %3616 = vmatpush1.bf16.msra.mxu0 %v3558
    %3617 = vmatprep.subr.bf16.mxu0 0
    %3618 = vmatpush1.bf16.msra.mxu0 %v3557
    %3619 = vmatprep.subr.bf16.mxu0 0
    %3620 = vmatpush1.bf16.msra.mxu0 %v3556
    %3621 = vmatprep.subr.bf16.mxu0 0
    %3622 = vmatpush1.bf16.msra.mxu0 %v3555
    %3623 = vmatprep.subr.bf16.mxu0 0
    %3624 = vmatpush1.bf16.msra.mxu0 %v3554
    %3625 = vmatprep.subr.bf16.mxu0 0
    %3626 = vmatpush1.bf16.msra.mxu0 %v3553
    %3627 = vmatprep.subr.bf16.mxu0 0
    %3628 = vmatpush1.bf16.msra.mxu0 %v3552
    %3629 = vmatprep.subr.bf16.mxu0 0
    %3630 = vmatpush1.bf16.msra.mxu0 %v3551
    %3631 = vmatprep.subr.bf16.mxu0 0
    %3632 = vmatpush2.bf16.msra.mxu0 %v3566
    %3633 = vmatprep.subr.bf16.mxu0 0
    %3634 = vmatpush2.bf16.msra.mxu0 %v3565
    %3635 = vmatprep.subr.bf16.mxu0 0
    %3636 = vmatpush2.bf16.msra.mxu0 %v3564
    %3637 = vmatprep.subr.bf16.mxu0 0
    %3638 = vmatpush2.bf16.msra.mxu0 %v3563
    %3639 = vmatprep.subr.bf16.mxu0 0
    %3640 = vmatpush2.bf16.msra.mxu0 %v3562
    %3641 = vmatprep.subr.bf16.mxu0 0
    %3642 = vmatpush2.bf16.msra.mxu0 %v3561
    %3643 = vmatprep.subr.bf16.mxu0 0
    %3644 = vmatpush2.bf16.msra.mxu0 %v3560
    %3645 = vmatprep.subr.bf16.mxu0 0
    %3646 = vmatpush2.bf16.msra.mxu0 %v3559
    %3647 = vmatprep.mubr.bf16.mxu0 %v3337
    %3648 = vmatmul.mubr.bf16.gmra.mxu0 %v3336
    %v3649 = vpop.f32.mrf.mxu0
    %v3650 = vadd.f32 %v3421, %v3649
    %v3651 = vpop.f32.mrf.mxu0
    %v3652 = vpop.f32.mrf.mxu0
    %v3653 = vadd.f32 %v3421, %v3652
    %v3654 = vpop.f32.mrf.mxu0
    %3655 = vmatprep.mubr.bf16.mxu0 %v3341
    %3656 = vmatmul.mubr.bf16.gmra.mxu0 %v3340
    %v3657 = vpop.f32.mrf.mxu0
    %v3658 = vadd.f32 %v3421, %v3657
    %v3659 = vpop.f32.mrf.mxu0
    %v3660 = vpop.f32.mrf.mxu0
    %v3661 = vadd.f32 %v3421, %v3660
    %v3662 = vpop.f32.mrf.mxu0
    %3663 = vmatprep.mubr.bf16.mxu0 %v3345
    %3664 = vmatmul.mubr.bf16.gmra.mxu0 %v3344
    %v3665 = vpop.f32.mrf.mxu0
    %v3666 = vadd.f32 %v3421, %v3665
    %v3667 = vpop.f32.mrf.mxu0
    %v3668 = vpop.f32.mrf.mxu0
    %v3669 = vadd.f32 %v3421, %v3668
    %v3670 = vpop.f32.mrf.mxu0
    %3671 = vmatprep.mubr.bf16.mxu0 %v3349
    %3672 = vmatmul.mubr.bf16.gmra.mxu0 %v3348
    %v3673 = vpop.f32.mrf.mxu0
    %v3674 = vadd.f32 %v3421, %v3673
    %v3675 = vpop.f32.mrf.mxu0
    %v3676 = vpop.f32.mrf.mxu0
    %v3677 = vadd.f32 %v3421, %v3676
    %v3678 = vpop.f32.mrf.mxu0
    %3679 = vdwg.mxu0
    %3680 = vmatprep.subr.bf16.mxu0 0
    %3681 = vmatpush1.bf16.msra.mxu0 %v3574
    %3682 = vmatprep.subr.bf16.mxu0 0
    %3683 = vmatpush1.bf16.msra.mxu0 %v3573
    %3684 = vmatprep.subr.bf16.mxu0 0
    %3685 = vmatpush1.bf16.msra.mxu0 %v3572
    %3686 = vmatprep.subr.bf16.mxu0 0
    %3687 = vmatpush1.bf16.msra.mxu0 %v3571
    %3688 = vmatprep.subr.bf16.mxu0 0
    %3689 = vmatpush1.bf16.msra.mxu0 %v3570
    %3690 = vmatprep.subr.bf16.mxu0 0
    %3691 = vmatpush1.bf16.msra.mxu0 %v3569
    %3692 = vmatprep.subr.bf16.mxu0 0
    %3693 = vmatpush1.bf16.msra.mxu0 %v3568
    %3694 = vmatprep.subr.bf16.mxu0 0
    %3695 = vmatpush1.bf16.msra.mxu0 %v3567
    %3696 = vmatprep.subr.bf16.mxu0 0
    %3697 = vmatpush2.bf16.msra.mxu0 %v3582
    %3698 = vmatprep.subr.bf16.mxu0 0
    %3699 = vmatpush2.bf16.msra.mxu0 %v3581
    %3700 = vmatprep.subr.bf16.mxu0 0
    %3701 = vmatpush2.bf16.msra.mxu0 %v3580
    %3702 = vmatprep.subr.bf16.mxu0 0
    %3703 = vmatpush2.bf16.msra.mxu0 %v3579
    %3704 = vmatprep.subr.bf16.mxu0 0
    %3705 = vmatpush2.bf16.msra.mxu0 %v3578
    %3706 = vmatprep.subr.bf16.mxu0 0
    %3707 = vmatpush2.bf16.msra.mxu0 %v3577
    %3708 = vmatprep.subr.bf16.mxu0 0
    %3709 = vmatpush2.bf16.msra.mxu0 %v3576
    %3710 = vmatprep.subr.bf16.mxu0 0
    %3711 = vmatpush2.bf16.msra.mxu0 %v3575
    %3712 = vmatprep.mubr.bf16.mxu0 %v3339
    %3713 = vmatmul.mubr.bf16.gmra.mxu0 %v3338
    %v3714 = vpop.f32.mrf.mxu0
    %v3715 = vadd.f32 %v3650, %v3714
    %v3716 = vpop.f32.mrf.mxu0
    %v3717 = vpop.f32.mrf.mxu0
    %v3718 = vadd.f32 %v3653, %v3717
    %v3719 = vpop.f32.mrf.mxu0
    %3720 = vmatprep.mubr.bf16.mxu0 %v3343
    %3721 = vmatmul.mubr.bf16.gmra.mxu0 %v3342
    %v3722 = vpop.f32.mrf.mxu0
    %v3723 = vadd.f32 %v3658, %v3722
    %v3724 = vpop.f32.mrf.mxu0
    %v3725 = vpop.f32.mrf.mxu0
    %v3726 = vadd.f32 %v3661, %v3725
    %v3727 = vpop.f32.mrf.mxu0
    %3728 = vmatprep.mubr.bf16.mxu0 %v3347
    %3729 = vmatmul.mubr.bf16.gmra.mxu0 %v3346
    %v3730 = vpop.f32.mrf.mxu0
    %v3731 = vadd.f32 %v3666, %v3730
    %v3732 = vpop.f32.mrf.mxu0
    %v3733 = vpop.f32.mrf.mxu0
    %v3734 = vadd.f32 %v3669, %v3733
    %v3735 = vpop.f32.mrf.mxu0
    %3736 = vmatprep.mubr.bf16.mxu0 %v3351
    %3737 = vmatmul.mubr.bf16.gmra.mxu0 %v3350
    %v3738 = vpop.f32.mrf.mxu0
    %v3739 = vadd.f32 %v3674, %v3738
    %v3740 = vpop.f32.mrf.mxu0
    %v3741 = vpop.f32.mrf.mxu0
    %v3742 = vadd.f32 %v3677, %v3741
    %v3743 = vpop.f32.mrf.mxu0
    %3744 = vdwg.mxu0
    %3745 = vst [vmem:[%s9] sm:$0xff] %v3715
    %3746 = vst [vmem:[%s9 + $0x8] sm:$0xff] %v3718
    %3747 = vst [vmem:[%s9 + $0x10] sm:$0xff] %v3723
    %3748 = vst [vmem:[%s9 + $0x18] sm:$0xff] %v3726
    %3749 = vst [vmem:[%s9 + $0x20] sm:$0xff] %v3731
    %3750 = vst [vmem:[%s9 + $0x28] sm:$0xff] %v3734
    %3751 = vst [vmem:[%s9 + $0x30] sm:$0xff] %v3739
    %3752 = vst [vmem:[%s9 + $0x38] sm:$0xff] %v3742
    // Predicated region
    $region50: #{encoder_forward.1} parent=1 // pred_check
      _
    $region51: #{encoder_forward.1} parent=1 // pred_check_branch
      %3754 = sbr.rel (0) target = $region53
    $region52: #{encoder_forward.1} parent=1 // pred_region
      _
    $region53: #{encoder_forward.1} parent=1 // pred_fallthru
      _
    // Predicated region
    $region54: #{encoder_forward.1} parent=1 // pred_check
      _
    $region55: #{encoder_forward.1} parent=1 // pred_check_branch
      %3756 = sbr.rel (0) target = $region57
    $region56: #{encoder_forward.1} parent=1 // pred_region
      _
    $region57: #{encoder_forward.1} parent=1 // pred_fallthru
      _
    %3757 = vsyncpa [#allocation3], 1
    %3758 = vsyncpa [#allocation5], 1

</llo_original>
